<compile_context>
chip_gen: v7x
topology: tpu7x:2x2x1
jax: 0.10.0
libtpu: 0.0.40
codegen_flags: <defaults>
</compile_context>

<pallas_src>
import functools

import jax
import jax.numpy as jnp
from jax.experimental import pallas as pl
from jax.experimental.pallas import tpu as pltpu


def _round_up(n, m):
    return ((n + m - 1) // m) * m


def _pick_chunk_t(seq_len, max_chunk=8):
    for c in range(min(max_chunk, seq_len), 0, -1):
        if seq_len % c == 0:
            return c
    return seq_len


def lstm_chunk_kernel(x_ref, wx_ref, whh_ref, b_ref, hT_ref,
                      gx_scr, h_scr, c_scr, *, bp, unroll):
    """One grid step = one chunk of timesteps.

    x_ref  : (chunk_t*bp, EP)   bf16  embedded tokens, rows ordered [t, batch]
    wx_ref : (EP, 4*HP)         bf16  input-projection weights, gate order [i,f,o,g]
    whh_ref: (HP, 4*HP)         bf16  recurrent weights, gate order [i,f,o,g]
    b_ref  : (1, 4*HP)          f32   fused bias (b_ih + b_hh); padded lanes are 0
    hT_ref : (bp, HP)           f32   final hidden state (written on last chunk)
    gx_scr : (chunk_t*bp, 4*HP) f32   per-chunk precomputed input projection
    h_scr, c_scr : (bp, HP)     f32   h/c carried across grid steps
    """
    rows, _ = x_ref.shape
    chunk_t = rows // bp
    hp = h_scr.shape[1]

    c_idx = pl.program_id(0)

    @pl.when(c_idx == 0)
    def _init():
        h_scr[...] = jnp.zeros_like(h_scr)
        c_scr[...] = jnp.zeros_like(c_scr)

    # (1) Input projection for the WHOLE chunk in one large MXU matmul; the bias
    #     broadcast is folded in here, once per chunk, off the serial chain.
    gx = jnp.dot(x_ref[...], wx_ref[...], preferred_element_type=jnp.float32)
    gx_scr[...] = gx + b_ref[...]

    whh = whh_ref[...]
    h0 = h_scr[...]
    c0 = c_scr[...]

    def step(t, carry):
        h, c = carry
        # Only the (bp, HP)@(HP, 4*HP) recurrent matmul stays on the serial
        # critical path; h is cast to bf16 for the MXU, state math stays in f32.
        row0 = pl.multiple_of(t * bp, bp)
        g = gx_scr[pl.ds(row0, bp), :] + jnp.dot(
            h.astype(whh.dtype), whh, preferred_element_type=jnp.float32)
        # Gate lanes packed [i, f, o, g]: ONE wide sigmoid + ONE tanh per step.
        sig = jax.nn.sigmoid(g[:, :3 * hp])
        g_cell = jnp.tanh(g[:, 3 * hp:])
        i = sig[:, 0 * hp:1 * hp]
        f = sig[:, 1 * hp:2 * hp]
        o = sig[:, 2 * hp:3 * hp]
        c_new = f * c + i * g_cell
        h_new = o * jnp.tanh(c_new)
        return h_new, c_new

    h, c = jax.lax.fori_loop(0, chunk_t, step, (h0, c0), unroll=unroll)
    h_scr[...] = h
    c_scr[...] = c

    @pl.when(c_idx == pl.num_programs(0) - 1)
    def _finalize():
        hT_ref[...] = h.astype(hT_ref.dtype)


def _run_lstm_kernel(x2d, wx, whh, bias, *, chunk_t, n_chunks, BP, EP, HP,
                     vmem_limit, single_buffer_weights):
    G = 4 * HP

    def const_spec(shape):
        zero_map = lambda c: (0,) * len(shape)
        if single_buffer_weights:
            # Constant-index blocks: double buffering only doubles VMEM footprint.
            return pl.BlockSpec(shape, zero_map, pipeline_mode=pl.Buffered(1))
        return pl.BlockSpec(shape, zero_map)

    kernel = functools.partial(lstm_chunk_kernel, bp=BP, unroll=min(4, chunk_t))
    return pl.pallas_call(
        kernel,
        out_shape=jax.ShapeDtypeStruct((BP, HP), jnp.float32),
        grid_spec=pltpu.PrefetchScalarGridSpec(
            num_scalar_prefetch=0,
            grid=(n_chunks,),                    # serial recurrence over seq chunks
            in_specs=[
                # x chunk: default double-buffered -> DMA of chunk c+1 overlaps
                # compute of chunk c.
                pl.BlockSpec((chunk_t * BP, EP), lambda c: (c, 0)),
                const_spec((EP, G)),             # W_x
                const_spec((HP, G)),             # W_hh
                const_spec((1, G)),              # fused bias
            ],
            out_specs=pl.BlockSpec((BP, HP), lambda c: (0, 0)),
            scratch_shapes=[
                pltpu.VMEM((chunk_t * BP, G), jnp.float32),  # per-chunk X proj
                pltpu.VMEM((BP, HP), jnp.float32),           # h carry
                pltpu.VMEM((BP, HP), jnp.float32),           # c carry
            ],
        ),
        compiler_params=pltpu.CompilerParams(
            dimension_semantics=("arbitrary",),
            vmem_limit_bytes=vmem_limit,
        ),
    )(x2d, wx, whh, bias)


def simple_lstm_baseline_forward(seq, params, *, chunk_t=None):
    """seq: (seq_len, batch) int32 token ids. Returns preds of shape (batch,)."""
    emb_table = params["embedding"]          # (vocab, emb) f32
    wx = params["w_x_p"]                     # (EP, 4*HP) bf16
    whh = params["w_hh_p"]                   # (HP, 4*HP) bf16
    bias = params["b_p"]                     # (1, 4*HP)  f32

    seq_len, batch = seq.shape
    emb_dim = emb_table.shape[1]
    hidden = params["w_hh_t"].shape[0]
    HP = whh.shape[0]
    EP = wx.shape[0]
    G = 4 * HP
    assert wx.shape == (EP, G) and bias.shape == (1, G)

    BP = _round_up(batch, 16)                # sublane-friendly (f32: 8, bf16: 16)
    if chunk_t is None:
        chunk_t = _pick_chunk_t(seq_len)
    assert seq_len % chunk_t == 0, "TODO(synk): ragged last chunk not handled"
    n_chunks = seq_len // chunk_t

    # Embedding gather + pad + bf16 cast (wrapper glue).
    x = emb_table[seq]                                           # (T, batch, emb)
    x = jnp.pad(x, ((0, 0), (0, BP - batch), (0, EP - emb_dim)))
    x2d = x.reshape(seq_len * BP, EP).astype(jnp.bfloat16)       # (T*BP, EP) bf16

    est_vmem = (
        2 * (chunk_t * BP) * EP * 2          # x chunk, double-buffered, bf16
        + 2 * (EP + HP) * G * 2              # weights (worst case 2 bufs), bf16
        + 2 * 8 * G * 4                      # bias (sublane-padded), f32
        + 2 * BP * HP * 4                    # output block
        + (chunk_t * BP) * G * 4             # gx scratch
        + 2 * BP * HP * 4                    # h/c carry
    )
    vmem_limit = int(min(max(4 * est_vmem, 16 * 2 ** 20), 64 * 2 ** 20))

    call = functools.partial(_run_lstm_kernel, x2d, wx, whh, bias,
                             chunk_t=chunk_t, n_chunks=n_chunks,
                             BP=BP, EP=EP, HP=HP, vmem_limit=vmem_limit)
    try:
        h_pad = call(single_buffer_weights=True)
    except Exception:
        # TODO(synk): pl.Buffered(1) (single-buffered constant weights) not
        # supported on this jax build; fall back to default double buffering.
        h_pad = call(single_buffer_weights=False)

    # FC head hoisted out of the kernel (used once; keeps the kernel output a
    # lane-dense (BP, 128) block instead of a lane-width-1 store).
    h = h_pad[:batch, :hidden]
    z = h @ params["w1_t"] + params["b1"]
    preds = z @ params["w2_t"] + params["b2"]
    return preds.reshape(-1)                 # preds.view(-1)


def init_params(key, vocab_size, hidden_dim, emb_dim):
    ks = jax.random.split(key, 9)
    scale = 0.1
    embedding = scale * jax.random.normal(ks[0], (vocab_size, emb_dim), jnp.float32)
    embedding = embedding.at[1].set(0.0)     # padding_idx=1 -> zero row
    w_ih = scale * jax.random.normal(ks[1], (4 * hidden_dim, emb_dim), jnp.float32)
    w_hh = scale * jax.random.normal(ks[2], (4 * hidden_dim, hidden_dim), jnp.float32)
    b_ih = scale * jax.random.normal(ks[3], (4 * hidden_dim,), jnp.float32)
    b_hh = scale * jax.random.normal(ks[4], (4 * hidden_dim,), jnp.float32)
    w1 = scale * jax.random.normal(ks[5], (hidden_dim // 2, hidden_dim), jnp.float32)
    b1 = scale * jax.random.normal(ks[6], (hidden_dim // 2,), jnp.float32)
    w2 = scale * jax.random.normal(ks[7], (1, hidden_dim // 2), jnp.float32)
    b2 = scale * jax.random.normal(ks[8], (1,), jnp.float32)

    H = hidden_dim
    HP = _round_up(H, 128)                   # each gate gets a full 128-lane block
    EP = _round_up(emb_dim, 128)             # x feature dim padded to lane width
    G = 4 * HP
    b_sum = b_ih + b_hh

    # Packed gate order [i, f, o, g] (PyTorch source order is i, f, g, o) so the
    # kernel runs ONE sigmoid over lanes [0, 3*HP) and ONE tanh over [3*HP, 4*HP).
    gate_src = (0, 1, 3, 2)
    w_x_p = jnp.zeros((EP, G), jnp.float32)
    w_hh_p = jnp.zeros((HP, G), jnp.float32)
    b_p = jnp.zeros((1, G), jnp.float32)
    for dst, src in enumerate(gate_src):
        cols = slice(dst * HP, dst * HP + H)
        rows = slice(src * H, (src + 1) * H)
        w_x_p = w_x_p.at[:emb_dim, cols].set(w_ih[rows, :].T)
        w_hh_p = w_hh_p.at[:H, cols].set(w_hh[rows, :].T)
        b_p = b_p.at[0, cols].set(b_sum[rows])

    # Padded-lane invariant: padded gate lanes must have exactly-zero weights AND
    # bias so the padding of c/h provably stays 0 through the recurrence
    # (sigmoid(0)*0 == 0, tanh(0) == 0). Do not add e.g. forget-gate bias init
    # to padded lanes.
    lane = jnp.arange(G)
    is_pad = (lane % HP) >= H
    assert bool(jnp.all(jnp.where(is_pad, b_p[0], 0.0) == 0.0))
    assert bool(jnp.all(jnp.where(is_pad[None, :], w_x_p, 0.0) == 0.0))
    assert bool(jnp.all(jnp.where(is_pad[None, :], w_hh_p, 0.0) == 0.0))

    return {
        "embedding": embedding,
        # raw forms (pure-JAX reference + FC head)
        "w_ih_t": w_ih.T,                    # (emb, 4H)
        "w_hh_t": w_hh.T,                    # (hidden, 4H)
        "b": b_sum.reshape(1, -1),           # (1, 4H)
        "w1_t": w1.T,                        # (hidden, hidden//2)
        "b1": b1.reshape(1, -1),
        "w2_t": w2.T,                        # (hidden//2, 1)
        "b2": b2.reshape(1, -1),
        # packed, padded, bf16 kernel inputs (gate order [i, f, o, g])
        "w_x_p": w_x_p.astype(jnp.bfloat16),   # (EP, 4*HP)
        "w_hh_p": w_hh_p.astype(jnp.bfloat16),  # (HP, 4*HP)
        "b_p": b_p,                             # (1, 4*HP) f32
    }


def reference_forward(seq, params, lstm_matmul_dtype=jnp.float32):
    """Pure-JAX reference (PyTorch gate order). lstm_matmul_dtype=bf16 mimics the
    kernel's MXU casts for a tight check; f32 gives the exact baseline."""
    x = params["embedding"][seq]
    Wx = params["w_ih_t"].astype(lstm_matmul_dtype)
    Wh = params["w_hh_t"].astype(lstm_matmul_dtype)
    b = params["b"]
    hidden = params["w_hh_t"].shape[0]
    seq_len, batch, _ = x.shape
    h = jnp.zeros((batch, hidden), jnp.float32)
    c = jnp.zeros((batch, hidden), jnp.float32)
    for t in range(seq_len):
        gates = (jnp.dot(x[t].astype(lstm_matmul_dtype), Wx,
                         preferred_element_type=jnp.float32)
                 + jnp.dot(h.astype(lstm_matmul_dtype), Wh,
                           preferred_element_type=jnp.float32)
                 + b)
        i = jax.nn.sigmoid(gates[:, 0:hidden])
        f = jax.nn.sigmoid(gates[:, hidden:2 * hidden])
        g = jnp.tanh(gates[:, 2 * hidden:3 * hidden])
        o = jax.nn.sigmoid(gates[:, 3 * hidden:4 * hidden])
        c = f * c + i * g
        h = o * jnp.tanh(c)
    z = h @ params["w1_t"] + params["b1"]
    preds = z @ params["w2_t"] + params["b2"]
    return preds.reshape(-1)


if __name__ == "__main__":
    key = jax.random.PRNGKey(0)
    vocab_size, hidden_dim, emb_dim = 50, 32, 64
    seq_len, batch = 8, 2

    pkey, skey = jax.random.split(key)
    params = init_params(pkey, vocab_size, hidden_dim, emb_dim)
    seq = jax.random.randint(skey, (seq_len, batch), 0, vocab_size, dtype=jnp.int32)

    # chunk_t=4 -> grid=(2,) exercises the cross-chunk h/c carry.
    preds = simple_lstm_baseline_forward(seq, params, chunk_t=4)
    preds = jax.block_until_ready(preds)
    assert preds.shape == (batch,)

    # Tight check vs. a reference using the same bf16 MXU casts.
    ref_bf16 = reference_forward(seq, params, lstm_matmul_dtype=jnp.bfloat16)
    assert jnp.allclose(preds, ref_bf16, atol=1e-2, rtol=1e-2), (preds, ref_bf16)
    # Looser check vs. the pure-f32 reference (bf16 matmul inputs in the kernel).
    ref_f32 = reference_forward(seq, params, lstm_matmul_dtype=jnp.float32)
    assert jnp.allclose(preds, ref_f32, atol=5e-2, rtol=5e-2), (preds, ref_f32)

    print("KERNEL_OK")
</pallas_src>

<mosaic_0001>
module attributes {stable_mosaic.version = 11 : i64} {
  func.func @lstm_chunk_kernel(%arg0: i32, %arg1: memref<64x128xbf16, #tpu.memory_space<vmem>>, %arg2: memref<128x512xbf16, #tpu.memory_space<vmem>>, %arg3: memref<128x512xbf16, #tpu.memory_space<vmem>>, %arg4: memref<1x512xf32, #tpu.memory_space<vmem>>, %arg5: memref<16x128xf32, #tpu.memory_space<vmem>>, %arg6: memref<64x512xf32, #tpu.memory_space<vmem>>, %arg7: memref<16x128xf32, #tpu.memory_space<vmem>>, %arg8: memref<16x128xf32, #tpu.memory_space<vmem>>) attributes {dimension_semantics = [#tpu.dimension_semantics<arbitrary>], iteration_bounds = array<i64: 2>, scalar_prefetch = 0 : i64, scratch_operands = 3 : i64, tpu.core_type = #tpu.core_type<tc>, window_params = [{transform_indices = @transform_0, window_bounds = array<i64: 64, 128>}, {pipeline_mode = #tpu.pipeline_mode<synchronous>, transform_indices = @transform_1, window_bounds = array<i64: 128, 512>}, {pipeline_mode = #tpu.pipeline_mode<synchronous>, transform_indices = @transform_2, window_bounds = array<i64: 128, 512>}, {pipeline_mode = #tpu.pipeline_mode<synchronous>, transform_indices = @transform_3, window_bounds = array<i64: 1, 512>}, {pipeline_mode = #tpu.pipeline_mode<synchronous>, transform_indices = @transform_4, window_bounds = array<i64: 16, 128>}]} {
    %c0_i32 = arith.constant 0 : i32
    %0 = arith.cmpi eq, %arg0, %c0_i32 : i32
    %1 = arith.extui %0 : i1 to i32
    %c0_i32_0 = arith.constant 0 : i32
    %2 = arith.cmpi ne, %1, %c0_i32_0 : i32
    scf.if %2 {
      %cst_36 = arith.constant 0.000000e+00 : f32
      %110 = vector.broadcast %cst_36 : f32 to vector<16x128xf32>
      %c0_37 = arith.constant 0 : index
      %c0_38 = arith.constant 0 : index
      %111 = vector.load %arg7[%c0_37, %c0_38] : memref<16x128xf32, #tpu.memory_space<vmem>>, vector<16x128xf32>
      tpu.vector_store %arg7[%c0_37, %c0_38], %110 {strides = array<i32>} : memref<16x128xf32, #tpu.memory_space<vmem>>, vector<16x128xf32>,
      %cst_39 = arith.constant 0.000000e+00 : f32
      %112 = vector.broadcast %cst_39 : f32 to vector<16x128xf32>
      %c0_40 = arith.constant 0 : index
      %c0_41 = arith.constant 0 : index
      %113 = vector.load %arg8[%c0_40, %c0_41] : memref<16x128xf32, #tpu.memory_space<vmem>>, vector<16x128xf32>
      tpu.vector_store %arg8[%c0_40, %c0_41], %112 {strides = array<i32>} : memref<16x128xf32, #tpu.memory_space<vmem>>, vector<16x128xf32>,
    } else {
    }
    %c0 = arith.constant 0 : index
    %c0_1 = arith.constant 0 : index
    %3 = vector.load %arg1[%c0, %c0_1] : memref<64x128xbf16, #tpu.memory_space<vmem>>, vector<64x128xbf16>
    %c0_2 = arith.constant 0 : index
    %c0_3 = arith.constant 0 : index
    %4 = vector.load %arg2[%c0_2, %c0_3] : memref<128x512xbf16, #tpu.memory_space<vmem>>, vector<128x512xbf16>
    %cst = arith.constant dense<0.000000e+00> : vector<64x512xf32>
    %5 = tpu.matmul %3, %4, %cst {dimension_numbers = #tpu.dot_dimension_numbers<[1], [0], [0], [1], [0, 0, 1, 1], [], []>} : vector<64x128xbf16>, vector<128x512xbf16>, vector<64x512xf32> -> vector<64x512xf32>
    %c0_4 = arith.constant 0 : index
    %c0_5 = arith.constant 0 : index
    %6 = vector.load %arg4[%c0_4, %c0_5] : memref<1x512xf32, #tpu.memory_space<vmem>>, vector<1x512xf32>
    %7 = vector.broadcast %6 : vector<1x512xf32> to vector<64x512xf32>
    %8 = arith.addf %5, %7 : vector<64x512xf32>
    %c0_6 = arith.constant 0 : index
    %c0_7 = arith.constant 0 : index
    %9 = vector.load %arg6[%c0_6, %c0_7] : memref<64x512xf32, #tpu.memory_space<vmem>>, vector<64x512xf32>
    tpu.vector_store %arg6[%c0_6, %c0_7], %8 {strides = array<i32>} : memref<64x512xf32, #tpu.memory_space<vmem>>, vector<64x512xf32>,
    %c0_8 = arith.constant 0 : index
    %c0_9 = arith.constant 0 : index
    %10 = vector.load %arg3[%c0_8, %c0_9] : memref<128x512xbf16, #tpu.memory_space<vmem>>, vector<128x512xbf16>
    %c0_10 = arith.constant 0 : index
    %c0_11 = arith.constant 0 : index
    %11 = vector.load %arg7[%c0_10, %c0_11] : memref<16x128xf32, #tpu.memory_space<vmem>>, vector<16x128xf32>
    %c0_12 = arith.constant 0 : index
    %c0_13 = arith.constant 0 : index
    %12 = vector.load %arg8[%c0_12, %c0_13] : memref<16x128xf32, #tpu.memory_space<vmem>>, vector<16x128xf32>
    %c0_i32_14 = arith.constant 0 : i32
    %c16_i32 = arith.constant 16 : i32
    %13 = arith.muli %c0_i32_14, %c16_i32 : i32
    %14 = tpu.assume_multiple %13, 16 : i32
    %15 = arith.index_cast %14 : i32 to index
    %c0_15 = arith.constant 0 : index
    %16 = vector.load %arg6[%15, %c0_15] : memref<64x512xf32, #tpu.memory_space<vmem>>, vector<16x512xf32>
    %17 = arith.truncf %11 : vector<16x128xf32> to vector<16x128xbf16>
    %cst_16 = arith.constant dense<0.000000e+00> : vector<16x512xf32>
    %18 = tpu.matmul %17, %10, %cst_16 {dimension_numbers = #tpu.dot_dimension_numbers<[1], [0], [0], [1], [0, 0, 1, 1], [], []>} : vector<16x128xbf16>, vector<128x512xbf16>, vector<16x512xf32> -> vector<16x512xf32>
    %19 = arith.addf %16, %18 : vector<16x512xf32>
    %20 = vector.extract_strided_slice %19 {offsets = [0, 0], sizes = [16, 384], strides = [1, 1]} : vector<16x512xf32> to vector<16x384xf32>
    %21 = arith.negf %20 : vector<16x384xf32>
    %22 = math.exp %21 : vector<16x384xf32>
    %cst_17 = arith.constant 1.000000e+00 : f32
    %23 = vector.broadcast %cst_17 : f32 to vector<16x384xf32>
    %24 = arith.addf %23, %22 : vector<16x384xf32>
    %25 = arith.divf %23, %24 : vector<16x384xf32>
    %26 = vector.extract_strided_slice %19 {offsets = [0, 384], sizes = [16, 128], strides = [1, 1]} : vector<16x512xf32> to vector<16x128xf32>
    %27 = math.tanh %26 : vector<16x128xf32>
    %28 = vector.extract_strided_slice %25 {offsets = [0, 0], sizes = [16, 128], strides = [1, 1]} : vector<16x384xf32> to vector<16x128xf32>
    %29 = vector.extract_strided_slice %25 {offsets = [0, 128], sizes = [16, 128], strides = [1, 1]} : vector<16x384xf32> to vector<16x128xf32>
    %30 = vector.extract_strided_slice %25 {offsets = [0, 256], sizes = [16, 128], strides = [1, 1]} : vector<16x384xf32> to vector<16x128xf32>
    %31 = arith.mulf %29, %12 : vector<16x128xf32>
    %32 = arith.mulf %28, %27 : vector<16x128xf32>
    %33 = arith.addf %31, %32 : vector<16x128xf32>
    %34 = math.tanh %33 : vector<16x128xf32>
    %35 = arith.mulf %30, %34 : vector<16x128xf32>
    %c1_i32 = arith.constant 1 : i32
    %c16_i32_18 = arith.constant 16 : i32
    %36 = arith.muli %c1_i32, %c16_i32_18 : i32
    %37 = tpu.assume_multiple %36, 16 : i32
    %38 = arith.index_cast %37 : i32 to index
    %c0_19 = arith.constant 0 : index
    %39 = vector.load %arg6[%38, %c0_19] : memref<64x512xf32, #tpu.memory_space<vmem>>, vector<16x512xf32>
    %40 = arith.truncf %35 : vector<16x128xf32> to vector<16x128xbf16>
    %cst_20 = arith.constant dense<0.000000e+00> : vector<16x512xf32>
    %41 = tpu.matmul %40, %10, %cst_20 {dimension_numbers = #tpu.dot_dimension_numbers<[1], [0], [0], [1], [0, 0, 1, 1], [], []>} : vector<16x128xbf16>, vector<128x512xbf16>, vector<16x512xf32> -> vector<16x512xf32>
    %42 = arith.addf %39, %41 : vector<16x512xf32>
    %43 = vector.extract_strided_slice %42 {offsets = [0, 0], sizes = [16, 384], strides = [1, 1]} : vector<16x512xf32> to vector<16x384xf32>
    %44 = arith.negf %43 : vector<16x384xf32>
    %45 = math.exp %44 : vector<16x384xf32>
    %cst_21 = arith.constant 1.000000e+00 : f32
    %46 = vector.broadcast %cst_21 : f32 to vector<16x384xf32>
    %47 = arith.addf %46, %45 : vector<16x384xf32>
    %48 = arith.divf %46, %47 : vector<16x384xf32>
    %49 = vector.extract_strided_slice %42 {offsets = [0, 384], sizes = [16, 128], strides = [1, 1]} : vector<16x512xf32> to vector<16x128xf32>
    %50 = math.tanh %49 : vector<16x128xf32>
    %51 = vector.extract_strided_slice %48 {offsets = [0, 0], sizes = [16, 128], strides = [1, 1]} : vector<16x384xf32> to vector<16x128xf32>
    %52 = vector.extract_strided_slice %48 {offsets = [0, 128], sizes = [16, 128], strides = [1, 1]} : vector<16x384xf32> to vector<16x128xf32>
    %53 = vector.extract_strided_slice %48 {offsets = [0, 256], sizes = [16, 128], strides = [1, 1]} : vector<16x384xf32> to vector<16x128xf32>
    %54 = arith.mulf %52, %33 : vector<16x128xf32>
    %55 = arith.mulf %51, %50 : vector<16x128xf32>
    %56 = arith.addf %54, %55 : vector<16x128xf32>
    %57 = math.tanh %56 : vector<16x128xf32>
    %58 = arith.mulf %53, %57 : vector<16x128xf32>
    %c2_i32 = arith.constant 2 : i32
    %c16_i32_22 = arith.constant 16 : i32
    %59 = arith.muli %c2_i32, %c16_i32_22 : i32
    %60 = tpu.assume_multiple %59, 16 : i32
    %61 = arith.index_cast %60 : i32 to index
    %c0_23 = arith.constant 0 : index
    %62 = vector.load %arg6[%61, %c0_23] : memref<64x512xf32, #tpu.memory_space<vmem>>, vector<16x512xf32>
    %63 = arith.truncf %58 : vector<16x128xf32> to vector<16x128xbf16>
    %cst_24 = arith.constant dense<0.000000e+00> : vector<16x512xf32>
    %64 = tpu.matmul %63, %10, %cst_24 {dimension_numbers = #tpu.dot_dimension_numbers<[1], [0], [0], [1], [0, 0, 1, 1], [], []>} : vector<16x128xbf16>, vector<128x512xbf16>, vector<16x512xf32> -> vector<16x512xf32>
    %65 = arith.addf %62, %64 : vector<16x512xf32>
    %66 = vector.extract_strided_slice %65 {offsets = [0, 0], sizes = [16, 384], strides = [1, 1]} : vector<16x512xf32> to vector<16x384xf32>
    %67 = arith.negf %66 : vector<16x384xf32>
    %68 = math.exp %67 : vector<16x384xf32>
    %cst_25 = arith.constant 1.000000e+00 : f32
    %69 = vector.broadcast %cst_25 : f32 to vector<16x384xf32>
    %70 = arith.addf %69, %68 : vector<16x384xf32>
    %71 = arith.divf %69, %70 : vector<16x384xf32>
    %72 = vector.extract_strided_slice %65 {offsets = [0, 384], sizes = [16, 128], strides = [1, 1]} : vector<16x512xf32> to vector<16x128xf32>
    %73 = math.tanh %72 : vector<16x128xf32>
    %74 = vector.extract_strided_slice %71 {offsets = [0, 0], sizes = [16, 128], strides = [1, 1]} : vector<16x384xf32> to vector<16x128xf32>
    %75 = vector.extract_strided_slice %71 {offsets = [0, 128], sizes = [16, 128], strides = [1, 1]} : vector<16x384xf32> to vector<16x128xf32>
    %76 = vector.extract_strided_slice %71 {offsets = [0, 256], sizes = [16, 128], strides = [1, 1]} : vector<16x384xf32> to vector<16x128xf32>
    %77 = arith.mulf %75, %56 : vector<16x128xf32>
    %78 = arith.mulf %74, %73 : vector<16x128xf32>
    %79 = arith.addf %77, %78 : vector<16x128xf32>
    %80 = math.tanh %79 : vector<16x128xf32>
    %81 = arith.mulf %76, %80 : vector<16x128xf32>
    %c3_i32 = arith.constant 3 : i32
    %c16_i32_26 = arith.constant 16 : i32
    %82 = arith.muli %c3_i32, %c16_i32_26 : i32
    %83 = tpu.assume_multiple %82, 16 : i32
    %84 = arith.index_cast %83 : i32 to index
    %c0_27 = arith.constant 0 : index
    %85 = vector.load %arg6[%84, %c0_27] : memref<64x512xf32, #tpu.memory_space<vmem>>, vector<16x512xf32>
    %86 = arith.truncf %81 : vector<16x128xf32> to vector<16x128xbf16>
    %cst_28 = arith.constant dense<0.000000e+00> : vector<16x512xf32>
    %87 = tpu.matmul %86, %10, %cst_28 {dimension_numbers = #tpu.dot_dimension_numbers<[1], [0], [0], [1], [0, 0, 1, 1], [], []>} : vector<16x128xbf16>, vector<128x512xbf16>, vector<16x512xf32> -> vector<16x512xf32>
    %88 = arith.addf %85, %87 : vector<16x512xf32>
    %89 = vector.extract_strided_slice %88 {offsets = [0, 0], sizes = [16, 384], strides = [1, 1]} : vector<16x512xf32> to vector<16x384xf32>
    %90 = arith.negf %89 : vector<16x384xf32>
    %91 = math.exp %90 : vector<16x384xf32>
    %cst_29 = arith.constant 1.000000e+00 : f32
    %92 = vector.broadcast %cst_29 : f32 to vector<16x384xf32>
    %93 = arith.addf %92, %91 : vector<16x384xf32>
    %94 = arith.divf %92, %93 : vector<16x384xf32>
    %95 = vector.extract_strided_slice %88 {offsets = [0, 384], sizes = [16, 128], strides = [1, 1]} : vector<16x512xf32> to vector<16x128xf32>
    %96 = math.tanh %95 : vector<16x128xf32>
    %97 = vector.extract_strided_slice %94 {offsets = [0, 0], sizes = [16, 128], strides = [1, 1]} : vector<16x384xf32> to vector<16x128xf32>
    %98 = vector.extract_strided_slice %94 {offsets = [0, 128], sizes = [16, 128], strides = [1, 1]} : vector<16x384xf32> to vector<16x128xf32>
    %99 = vector.extract_strided_slice %94 {offsets = [0, 256], sizes = [16, 128], strides = [1, 1]} : vector<16x384xf32> to vector<16x128xf32>
    %100 = arith.mulf %98, %79 : vector<16x128xf32>
    %101 = arith.mulf %97, %96 : vector<16x128xf32>
    %102 = arith.addf %100, %101 : vector<16x128xf32>
    %103 = math.tanh %102 : vector<16x128xf32>
    %104 = arith.mulf %99, %103 : vector<16x128xf32>
    %c4_i32 = arith.constant 4 : i32
    %c0_30 = arith.constant 0 : index
    %c0_31 = arith.constant 0 : index
    %105 = vector.load %arg7[%c0_30, %c0_31] : memref<16x128xf32, #tpu.memory_space<vmem>>, vector<16x128xf32>
    tpu.vector_store %arg7[%c0_30, %c0_31], %104 {strides = array<i32>} : memref<16x128xf32, #tpu.memory_space<vmem>>, vector<16x128xf32>,
    %c0_32 = arith.constant 0 : index
    %c0_33 = arith.constant 0 : index
    %106 = vector.load %arg8[%c0_32, %c0_33] : memref<16x128xf32, #tpu.memory_space<vmem>>, vector<16x128xf32>
    tpu.vector_store %arg8[%c0_32, %c0_33], %102 {strides = array<i32>} : memref<16x128xf32, #tpu.memory_space<vmem>>, vector<16x128xf32>,
    %c1_i32_34 = arith.constant 1 : i32
    %107 = arith.cmpi eq, %arg0, %c1_i32_34 : i32
    %108 = arith.extui %107 : i1 to i32
    %c0_i32_35 = arith.constant 0 : i32
    %109 = arith.cmpi ne, %108, %c0_i32_35 : i32
    scf.if %109 {
      %c0_36 = arith.constant 0 : index
      %c0_37 = arith.constant 0 : index
      %110 = vector.load %arg5[%c0_36, %c0_37] : memref<16x128xf32, #tpu.memory_space<vmem>>, vector<16x128xf32>
      tpu.vector_store %arg5[%c0_36, %c0_37], %104 {strides = array<i32>} : memref<16x128xf32, #tpu.memory_space<vmem>>, vector<16x128xf32>,
    } else {
    }
    return
  }
  func.func @transform_0(%arg0: i32) -> (i32, i32) {
    %c0_i32 = arith.constant 0 : i32
    %c0_i32_0 = arith.constant 0 : i32
    return %arg0, %c0_i32 : i32, i32
  }
  func.func @transform_1(%arg0: i32) -> (i32, i32) {
    %c0_i32 = arith.constant 0 : i32
    %c0_i32_0 = arith.constant 0 : i32
    %c0_i32_1 = arith.constant 0 : i32
    return %c0_i32, %c0_i32_0 : i32, i32
  }
  func.func @transform_2(%arg0: i32) -> (i32, i32) {
    %c0_i32 = arith.constant 0 : i32
    %c0_i32_0 = arith.constant 0 : i32
    %c0_i32_1 = arith.constant 0 : i32
    return %c0_i32, %c0_i32_0 : i32, i32
  }
  func.func @transform_3(%arg0: i32) -> (i32, i32) {
    %c0_i32 = arith.constant 0 : i32
    %c0_i32_0 = arith.constant 0 : i32
    %c0_i32_1 = arith.constant 0 : i32
    return %c0_i32, %c0_i32_0 : i32, i32
  }
  func.func @transform_4(%arg0: i32) -> (i32, i32) {
    %c0_i32 = arith.constant 0 : i32
    %c0_i32_0 = arith.constant 0 : i32
    %c0_i32_1 = arith.constant 0 : i32
    return %c0_i32, %c0_i32_0 : i32, i32
  }
}

module attributes {stable_mosaic.version = 11 : i64} {
  func.func @lstm_chunk_kernel(%arg0: i32, %arg1: memref<64x128xbf16, #tpu.memory_space<vmem>>, %arg2: memref<128x512xbf16, #tpu.memory_space<vmem>>, %arg3: memref<128x512xbf16, #tpu.memory_space<vmem>>, %arg4: memref<1x512xf32, #tpu.memory_space<vmem>>, %arg5: memref<16x128xf32, #tpu.memory_space<vmem>>, %arg6: memref<64x512xf32, #tpu.memory_space<vmem>>, %arg7: memref<16x128xf32, #tpu.memory_space<vmem>>, %arg8: memref<16x128xf32, #tpu.memory_space<vmem>>) attributes {dimension_semantics = [#tpu.dimension_semantics<arbitrary>], iteration_bounds = array<i64: 2>, scalar_prefetch = 0 : i64, scratch_operands = 3 : i64, tpu.core_type = #tpu.core_type<tc>, window_params = [{transform_indices = @transform_0, window_bounds = array<i64: 64, 128>}, {pipeline_mode = #tpu.pipeline_mode<synchronous>, transform_indices = @transform_1, window_bounds = array<i64: 128, 512>}, {pipeline_mode = #tpu.pipeline_mode<synchronous>, transform_indices = @transform_2, window_bounds = array<i64: 128, 512>}, {pipeline_mode = #tpu.pipeline_mode<synchronous>, transform_indices = @transform_3, window_bounds = array<i64: 1, 512>}, {pipeline_mode = #tpu.pipeline_mode<synchronous>, transform_indices = @transform_4, window_bounds = array<i64: 16, 128>}]} {
    %c0_i32 = arith.constant 0 : i32
    %0 = arith.cmpi eq, %arg0, %c0_i32 : i32
    %1 = arith.extui %0 : i1 to i32
    %c0_i32_0 = arith.constant 0 : i32
    %2 = arith.cmpi ne, %1, %c0_i32_0 : i32
    scf.if %2 {
      %cst_36 = arith.constant 0.000000e+00 : f32
      %110 = vector.broadcast %cst_36 : f32 to vector<16x128xf32>
      %c0_37 = arith.constant 0 : index
      %c0_38 = arith.constant 0 : index
      %111 = vector.load %arg7[%c0_37, %c0_38] : memref<16x128xf32, #tpu.memory_space<vmem>>, vector<16x128xf32>
      tpu.vector_store %arg7[%c0_37, %c0_38], %110 {strides = array<i32>} : memref<16x128xf32, #tpu.memory_space<vmem>>, vector<16x128xf32>,
      %cst_39 = arith.constant 0.000000e+00 : f32
      %112 = vector.broadcast %cst_39 : f32 to vector<16x128xf32>
      %c0_40 = arith.constant 0 : index
      %c0_41 = arith.constant 0 : index
      %113 = vector.load %arg8[%c0_40, %c0_41] : memref<16x128xf32, #tpu.memory_space<vmem>>, vector<16x128xf32>
      tpu.vector_store %arg8[%c0_40, %c0_41], %112 {strides = array<i32>} : memref<16x128xf32, #tpu.memory_space<vmem>>, vector<16x128xf32>,
    } else {
    }
    %c0 = arith.constant 0 : index
    %c0_1 = arith.constant 0 : index
    %3 = vector.load %arg1[%c0, %c0_1] : memref<64x128xbf16, #tpu.memory_space<vmem>>, vector<64x128xbf16>
    %c0_2 = arith.constant 0 : index
    %c0_3 = arith.constant 0 : index
    %4 = vector.load %arg2[%c0_2, %c0_3] : memref<128x512xbf16, #tpu.memory_space<vmem>>, vector<128x512xbf16>
    %cst = arith.constant dense<0.000000e+00> : vector<64x512xf32>
    %5 = tpu.matmul %3, %4, %cst {dimension_numbers = #tpu.dot_dimension_numbers<[1], [0], [0], [1], [0, 0, 1, 1], [], []>} : vector<64x128xbf16>, vector<128x512xbf16>, vector<64x512xf32> -> vector<64x512xf32>
    %c0_4 = arith.constant 0 : index
    %c0_5 = arith.constant 0 : index
    %6 = vector.load %arg4[%c0_4, %c0_5] : memref<1x512xf32, #tpu.memory_space<vmem>>, vector<1x512xf32>
    %7 = vector.broadcast %6 : vector<1x512xf32> to vector<64x512xf32>
    %8 = arith.addf %5, %7 : vector<64x512xf32>
    %c0_6 = arith.constant 0 : index
    %c0_7 = arith.constant 0 : index
    %9 = vector.load %arg6[%c0_6, %c0_7] : memref<64x512xf32, #tpu.memory_space<vmem>>, vector<64x512xf32>
    tpu.vector_store %arg6[%c0_6, %c0_7], %8 {strides = array<i32>} : memref<64x512xf32, #tpu.memory_space<vmem>>, vector<64x512xf32>,
    %c0_8 = arith.constant 0 : index
    %c0_9 = arith.constant 0 : index
    %10 = vector.load %arg3[%c0_8, %c0_9] : memref<128x512xbf16, #tpu.memory_space<vmem>>, vector<128x512xbf16>
    %c0_10 = arith.constant 0 : index
    %c0_11 = arith.constant 0 : index
    %11 = vector.load %arg7[%c0_10, %c0_11] : memref<16x128xf32, #tpu.memory_space<vmem>>, vector<16x128xf32>
    %c0_12 = arith.constant 0 : index
    %c0_13 = arith.constant 0 : index
    %12 = vector.load %arg8[%c0_12, %c0_13] : memref<16x128xf32, #tpu.memory_space<vmem>>, vector<16x128xf32>
    %c0_i32_14 = arith.constant 0 : i32
    %c16_i32 = arith.constant 16 : i32
    %13 = arith.muli %c0_i32_14, %c16_i32 : i32
    %14 = tpu.assume_multiple %13, 16 : i32
    %15 = arith.index_cast %14 : i32 to index
    %c0_15 = arith.constant 0 : index
    %16 = vector.load %arg6[%15, %c0_15] : memref<64x512xf32, #tpu.memory_space<vmem>>, vector<16x512xf32>
    %17 = arith.truncf %11 : vector<16x128xf32> to vector<16x128xbf16>
    %cst_16 = arith.constant dense<0.000000e+00> : vector<16x512xf32>
    %18 = tpu.matmul %17, %10, %cst_16 {dimension_numbers = #tpu.dot_dimension_numbers<[1], [0], [0], [1], [0, 0, 1, 1], [], []>} : vector<16x128xbf16>, vector<128x512xbf16>, vector<16x512xf32> -> vector<16x512xf32>
    %19 = arith.addf %16, %18 : vector<16x512xf32>
    %20 = vector.extract_strided_slice %19 {offsets = [0, 0], sizes = [16, 384], strides = [1, 1]} : vector<16x512xf32> to vector<16x384xf32>
    %21 = arith.negf %20 : vector<16x384xf32>
    %22 = math.exp %21 : vector<16x384xf32>
    %cst_17 = arith.constant 1.000000e+00 : f32
    %23 = vector.broadcast %cst_17 : f32 to vector<16x384xf32>
    %24 = arith.addf %23, %22 : vector<16x384xf32>
    %25 = arith.divf %23, %24 : vector<16x384xf32>
    %26 = vector.extract_strided_slice %19 {offsets = [0, 384], sizes = [16, 128], strides = [1, 1]} : vector<16x512xf32> to vector<16x128xf32>
    %27 = math.tanh %26 : vector<16x128xf32>
    %28 = vector.extract_strided_slice %25 {offsets = [0, 0], sizes = [16, 128], strides = [1, 1]} : vector<16x384xf32> to vector<16x128xf32>
    %29 = vector.extract_strided_slice %25 {offsets = [0, 128], sizes = [16, 128], strides = [1, 1]} : vector<16x384xf32> to vector<16x128xf32>
    %30 = vector.extract_strided_slice %25 {offsets = [0, 256], sizes = [16, 128], strides = [1, 1]} : vector<16x384xf32> to vector<16x128xf32>
    %31 = arith.mulf %29, %12 : vector<16x128xf32>
    %32 = arith.mulf %28, %27 : vector<16x128xf32>
    %33 = arith.addf %31, %32 : vector<16x128xf32>
    %34 = math.tanh %33 : vector<16x128xf32>
    %35 = arith.mulf %30, %34 : vector<16x128xf32>
    %c1_i32 = arith.constant 1 : i32
    %c16_i32_18 = arith.constant 16 : i32
    %36 = arith.muli %c1_i32, %c16_i32_18 : i32
    %37 = tpu.assume_multiple %36, 16 : i32
    %38 = arith.index_cast %37 : i32 to index
    %c0_19 = arith.constant 0 : index
    %39 = vector.load %arg6[%38, %c0_19] : memref<64x512xf32, #tpu.memory_space<vmem>>, vector<16x512xf32>
    %40 = arith.truncf %35 : vector<16x128xf32> to vector<16x128xbf16>
    %cst_20 = arith.constant dense<0.000000e+00> : vector<16x512xf32>
    %41 = tpu.matmul %40, %10, %cst_20 {dimension_numbers = #tpu.dot_dimension_numbers<[1], [0], [0], [1], [0, 0, 1, 1], [], []>} : vector<16x128xbf16>, vector<128x512xbf16>, vector<16x512xf32> -> vector<16x512xf32>
    %42 = arith.addf %39, %41 : vector<16x512xf32>
    %43 = vector.extract_strided_slice %42 {offsets = [0, 0], sizes = [16, 384], strides = [1, 1]} : vector<16x512xf32> to vector<16x384xf32>
    %44 = arith.negf %43 : vector<16x384xf32>
    %45 = math.exp %44 : vector<16x384xf32>
    %cst_21 = arith.constant 1.000000e+00 : f32
    %46 = vector.broadcast %cst_21 : f32 to vector<16x384xf32>
    %47 = arith.addf %46, %45 : vector<16x384xf32>
    %48 = arith.divf %46, %47 : vector<16x384xf32>
    %49 = vector.extract_strided_slice %42 {offsets = [0, 384], sizes = [16, 128], strides = [1, 1]} : vector<16x512xf32> to vector<16x128xf32>
    %50 = math.tanh %49 : vector<16x128xf32>
    %51 = vector.extract_strided_slice %48 {offsets = [0, 0], sizes = [16, 128], strides = [1, 1]} : vector<16x384xf32> to vector<16x128xf32>
    %52 = vector.extract_strided_slice %48 {offsets = [0, 128], sizes = [16, 128], strides = [1, 1]} : vector<16x384xf32> to vector<16x128xf32>
    %53 = vector.extract_strided_slice %48 {offsets = [0, 256], sizes = [16, 128], strides = [1, 1]} : vector<16x384xf32> to vector<16x128xf32>
    %54 = arith.mulf %52, %33 : vector<16x128xf32>
    %55 = arith.mulf %51, %50 : vector<16x128xf32>
    %56 = arith.addf %54, %55 : vector<16x128xf32>
    %57 = math.tanh %56 : vector<16x128xf32>
    %58 = arith.mulf %53, %57 : vector<16x128xf32>
    %c2_i32 = arith.constant 2 : i32
    %c16_i32_22 = arith.constant 16 : i32
    %59 = arith.muli %c2_i32, %c16_i32_22 : i32
    %60 = tpu.assume_multiple %59, 16 : i32
    %61 = arith.index_cast %60 : i32 to index
    %c0_23 = arith.constant 0 : index
    %62 = vector.load %arg6[%61, %c0_23] : memref<64x512xf32, #tpu.memory_space<vmem>>, vector<16x512xf32>
    %63 = arith.truncf %58 : vector<16x128xf32> to vector<16x128xbf16>
    %cst_24 = arith.constant dense<0.000000e+00> : vector<16x512xf32>
    %64 = tpu.matmul %63, %10, %cst_24 {dimension_numbers = #tpu.dot_dimension_numbers<[1], [0], [0], [1], [0, 0, 1, 1], [], []>} : vector<16x128xbf16>, vector<128x512xbf16>, vector<16x512xf32> -> vector<16x512xf32>
    %65 = arith.addf %62, %64 : vector<16x512xf32>
    %66 = vector.extract_strided_slice %65 {offsets = [0, 0], sizes = [16, 384], strides = [1, 1]} : vector<16x512xf32> to vector<16x384xf32>
    %67 = arith.negf %66 : vector<16x384xf32>
    %68 = math.exp %67 : vector<16x384xf32>
    %cst_25 = arith.constant 1.000000e+00 : f32
    %69 = vector.broadcast %cst_25 : f32 to vector<16x384xf32>
    %70 = arith.addf %69, %68 : vector<16x384xf32>
    %71 = arith.divf %69, %70 : vector<16x384xf32>
    %72 = vector.extract_strided_slice %65 {offsets = [0, 384], sizes = [16, 128], strides = [1, 1]} : vector<16x512xf32> to vector<16x128xf32>
    %73 = math.tanh %72 : vector<16x128xf32>
    %74 = vector.extract_strided_slice %71 {offsets = [0, 0], sizes = [16, 128], strides = [1, 1]} : vector<16x384xf32> to vector<16x128xf32>
    %75 = vector.extract_strided_slice %71 {offsets = [0, 128], sizes = [16, 128], strides = [1, 1]} : vector<16x384xf32> to vector<16x128xf32>
    %76 = vector.extract_strided_slice %71 {offsets = [0, 256], sizes = [16, 128], strides = [1, 1]} : vector<16x384xf32> to vector<16x128xf32>
    %77 = arith.mulf %75, %56 : vector<16x128xf32>
    %78 = arith.mulf %74, %73 : vector<16x128xf32>
    %79 = arith.addf %77, %78 : vector<16x128xf32>
    %80 = math.tanh %79 : vector<16x128xf32>
    %81 = arith.mulf %76, %80 : vector<16x128xf32>
    %c3_i32 = arith.constant 3 : i32
    %c16_i32_26 = arith.constant 16 : i32
    %82 = arith.muli %c3_i32, %c16_i32_26 : i32
    %83 = tpu.assume_multiple %82, 16 : i32
    %84 = arith.index_cast %83 : i32 to index
    %c0_27 = arith.constant 0 : index
    %85 = vector.load %arg6[%84, %c0_27] : memref<64x512xf32, #tpu.memory_space<vmem>>, vector<16x512xf32>
    %86 = arith.truncf %81 : vector<16x128xf32> to vector<16x128xbf16>
    %cst_28 = arith.constant dense<0.000000e+00> : vector<16x512xf32>
    %87 = tpu.matmul %86, %10, %cst_28 {dimension_numbers = #tpu.dot_dimension_numbers<[1], [0], [0], [1], [0, 0, 1, 1], [], []>} : vector<16x128xbf16>, vector<128x512xbf16>, vector<16x512xf32> -> vector<16x512xf32>
    %88 = arith.addf %85, %87 : vector<16x512xf32>
    %89 = vector.extract_strided_slice %88 {offsets = [0, 0], sizes = [16, 384], strides = [1, 1]} : vector<16x512xf32> to vector<16x384xf32>
    %90 = arith.negf %89 : vector<16x384xf32>
    %91 = math.exp %90 : vector<16x384xf32>
    %cst_29 = arith.constant 1.000000e+00 : f32
    %92 = vector.broadcast %cst_29 : f32 to vector<16x384xf32>
    %93 = arith.addf %92, %91 : vector<16x384xf32>
    %94 = arith.divf %92, %93 : vector<16x384xf32>
    %95 = vector.extract_strided_slice %88 {offsets = [0, 384], sizes = [16, 128], strides = [1, 1]} : vector<16x512xf32> to vector<16x128xf32>
    %96 = math.tanh %95 : vector<16x128xf32>
    %97 = vector.extract_strided_slice %94 {offsets = [0, 0], sizes = [16, 128], strides = [1, 1]} : vector<16x384xf32> to vector<16x128xf32>
    %98 = vector.extract_strided_slice %94 {offsets = [0, 128], sizes = [16, 128], strides = [1, 1]} : vector<16x384xf32> to vector<16x128xf32>
    %99 = vector.extract_strided_slice %94 {offsets = [0, 256], sizes = [16, 128], strides = [1, 1]} : vector<16x384xf32> to vector<16x128xf32>
    %100 = arith.mulf %98, %79 : vector<16x128xf32>
    %101 = arith.mulf %97, %96 : vector<16x128xf32>
    %102 = arith.addf %100, %101 : vector<16x128xf32>
    %103 = math.tanh %102 : vector<16x128xf32>
    %104 = arith.mulf %99, %103 : vector<16x128xf32>
    %c4_i32 = arith.constant 4 : i32
    %c0_30 = arith.constant 0 : index
    %c0_31 = arith.constant 0 : index
    %105 = vector.load %arg7[%c0_30, %c0_31] : memref<16x128xf32, #tpu.memory_space<vmem>>, vector<16x128xf32>
    tpu.vector_store %arg7[%c0_30, %c0_31], %104 {strides = array<i32>} : memref<16x128xf32, #tpu.memory_space<vmem>>, vector<16x128xf32>,
    %c0_32 = arith.constant 0 : index
    %c0_33 = arith.constant 0 : index
    %106 = vector.load %arg8[%c0_32, %c0_33] : memref<16x128xf32, #tpu.memory_space<vmem>>, vector<16x128xf32>
    tpu.vector_store %arg8[%c0_32, %c0_33], %102 {strides = array<i32>} : memref<16x128xf32, #tpu.memory_space<vmem>>, vector<16x128xf32>,
    %c1_i32_34 = arith.constant 1 : i32
    %107 = arith.cmpi eq, %arg0, %c1_i32_34 : i32
    %108 = arith.extui %107 : i1 to i32
    %c0_i32_35 = arith.constant 0 : i32
    %109 = arith.cmpi ne, %108, %c0_i32_35 : i32
    scf.if %109 {
      %c0_36 = arith.constant 0 : index
      %c0_37 = arith.constant 0 : index
      %110 = vector.load %arg5[%c0_36, %c0_37] : memref<16x128xf32, #tpu.memory_space<vmem>>, vector<16x128xf32>
      tpu.vector_store %arg5[%c0_36, %c0_37], %104 {strides = array<i32>} : memref<16x128xf32, #tpu.memory_space<vmem>>, vector<16x128xf32>,
    } else {
    }
    return
  }
  func.func @transform_0(%arg0: i32) -> (i32, i32) {
    %c0_i32 = arith.constant 0 : i32
    %c0_i32_0 = arith.constant 0 : i32
    return %arg0, %c0_i32 : i32, i32
  }
  func.func @transform_1(%arg0: i32) -> (i32, i32) {
    %c0_i32 = arith.constant 0 : i32
    %c0_i32_0 = arith.constant 0 : i32
    %c0_i32_1 = arith.constant 0 : i32
    return %c0_i32, %c0_i32_0 : i32, i32
  }
  func.func @transform_2(%arg0: i32) -> (i32, i32) {
    %c0_i32 = arith.constant 0 : i32
    %c0_i32_0 = arith.constant 0 : i32
    %c0_i32_1 = arith.constant 0 : i32
    return %c0_i32, %c0_i32_0 : i32, i32
  }
  func.func @transform_3(%arg0: i32) -> (i32, i32) {
    %c0_i32 = arith.constant 0 : i32
    %c0_i32_0 = arith.constant 0 : i32
    %c0_i32_1 = arith.constant 0 : i32
    return %c0_i32, %c0_i32_0 : i32, i32
  }
  func.func @transform_4(%arg0: i32) -> (i32, i32) {
    %c0_i32 = arith.constant 0 : i32
    %c0_i32_0 = arith.constant 0 : i32
    %c0_i32_1 = arith.constant 0 : i32
    return %c0_i32, %c0_i32_0 : i32, i32
  }
}

</mosaic_0001>

<llo_original>
// kernel: tpu_custom_call.1
$region0: #{tpu_custom_call.1}
  #allocation0 [shape = 'u32[]', space=smem, size = 0x4, offset = 0x4, fixed_abs, tag = 'smem constant byte address 0x4 - core index']
  #allocation1 [shape = 'u32[144,128]{1,0:T(1,128)}', space=vmem, size = 0x12000, scoped, tag = 'internal scratch']
  #allocation2 [shape = 'f32[64,512]{1,0:T(8,128)}', space=vmem, size = 0x20000, scoped, tag = 'scratch operand']
  #allocation3 [shape = 'f32[16,128]{1,0:T(8,128)}', space=vmem, size = 0x2000, scoped, tag = 'scratch operand']
  #allocation4 [shape = 'f32[16,128]{1,0:T(8,128)}', space=vmem, size = 0x2000, scoped, tag = 'scratch operand']
  %s0 = inlined_call_operand.hbm [shape: bf16[128,128], index: 0, kind: input, shape index: {}]
  %s1 = inlined_call_operand.hbm [shape: bf16[128,512], index: 1, kind: input, shape index: {}]
  %s2 = inlined_call_operand.hbm [shape: bf16[128,512], index: 2, kind: input, shape index: {}]
  %s3 = inlined_call_operand.vmem [shape: f32[1,512], index: 3, kind: input, shape index: {}]
  %s4 = inlined_call_operand.hbm [shape: f32[16,128], index: 4, kind: output, shape index: {}]
  %s5 = sld [smem:[#allocation0]]
  $region69: #{tpu_custom_call.1} parent=0
    _
  %s7 = ssub.s32 1, %s5
  %s8 = scalar_select 0, %s7, %s5
  $region1: #{tpu_custom_call.1} parent=0
    #allocation5 [shape = 'u8[32768]{0}', space=vmem, size = 0x8000, scoped, tag = 'input window, operand 0']
    #allocation6 [shape = 's32[2]{0}', space=sflag, size = 0x8, scoped, tag = 'scoped memory for tpu_custom_call.1']
    #allocation7 [shape = 's32[2]{0}', space=sflag, size = 0x8, scoped, tag = 'scoped memory for tpu_custom_call.1']
    #allocation8 [shape = 'u8[131072]{0}', space=vmem, size = 0x20000, scoped, tag = 'input window, operand 1, single buffered']
    #allocation9 [shape = 's32[1]{0}', space=sflag, size = 0x4, scoped, tag = 'scoped memory for tpu_custom_call.1']
    #allocation10 [shape = 'u8[131072]{0}', space=vmem, size = 0x20000, scoped, tag = 'input window, operand 2, single buffered']
    #allocation11 [shape = 'u8[8192]{0}', space=vmem, size = 0x2000, scoped, tag = 'output window, operand 0, single buffered']
    %9 = vsyncpa [#allocation6], 0
    %s10 = scalar_lea.sflag [#allocation6], 1
    %11 = vsyncpa %s10, 0
    %12 = vsyncpa [#allocation9], 0
    %13 = vsyncpa [#allocation7], 0
    loop: start=0, step=1, limit=4
    $region2: #{tpu_custom_call.1} parent=1 // loop_pre_header
      _
    $region3: #{tpu_custom_call.1} parent=1 // loop_header
      %s15 = sphi 0, %s19
      %p16 = scmp.ge.s32.totalorder %s15, 4
      %s25 = sphi 0, %s27
      %s28 = sphi 0, %s25
      %s29 = sphi 0, %s28
      %s45 = sphi 0, %s29
      %s49 = sphi 0, %s49
      %s51 = sphi 0, %s49
      %s52 = sphi 0, %s51
      %s66 = sphi 0, %s52
      %s70 = sphi 0, %s70
      %s72 = sphi 0, %s70
      %s73 = sphi 0, %s72
      %s87 = sphi 0, %s73
      %s91 = sphi 0, %s91
      %s93 = sphi 0, %s91
      %s94 = sphi 0, %s93
      %s108 = sphi 0, %s94
      %s112 = sphi 0, %s112
      %s114 = sphi 0, %s112
      %s115 = sphi 0, %s114
      %s129 = sphi 0, %s115
    $region4: #{tpu_custom_call.1} parent=1 // loop_header_branch
      %18 = sbr.rel (%p16) target = $region8
    $region5: #{tpu_custom_call.1} parent=1 // loop_body
      %s20 = ssub.s32 %s15, 1
      %s21 = ssub.s32 %s15, 2
      %s22 = sadd.s32 %s15, 1
      %s23 = ssub.s32 %s15, %s22
      %p24 = scmp.eq.s32.totalorder %s23, 0
      %s26 = sadd.s32 %s25, 1
      %s27 = scalar_select %p24, %s25, %s26
      %p30 = pneg %p24
      %p31 = scmp.eq.s32.totalorder %s15, 1
      %p32 = por %p30, %p31
      %p33 = scmp.ne.s32.totalorder %s25, %s28
      %p34 = scmp.eq.s32.totalorder %s15, 0
      %p35 = por %p33, %p34
      %p36 = scmp.ne.s32.totalorder %s25, %s28
      %p37 = scmp.eq.s32.totalorder %s20, 1
      %p38 = por %p36, %p37
      %p39 = scmp.ne.s32.totalorder %s28, %s29
      %p40 = scmp.eq.s32.totalorder %s20, 0
      %p41 = por %p39, %p40
      %p42 = scmp.ne.s32.totalorder %s28, %s29
      %p43 = scmp.eq.s32.totalorder %s21, 1
      %p44 = por %p42, %p43
      %p46 = scmp.ne.s32.totalorder %s29, %s45
      %p47 = scmp.eq.s32.totalorder %s21, 0
      %p48 = por %p46, %p47
      %s50 = sadd.s32 %s49, 1
      %p53 = scmp.eq.s32.totalorder %s15, 1
      %p54 = scmp.ne.s32.totalorder %s49, %s51
      %p55 = scmp.eq.s32.totalorder %s15, 0
      %p56 = por %p54, %p55
      %p57 = scmp.ne.s32.totalorder %s49, %s51
      %p58 = scmp.eq.s32.totalorder %s20, 1
      %p59 = por %p57, %p58
      %p60 = scmp.ne.s32.totalorder %s51, %s52
      %p61 = scmp.eq.s32.totalorder %s20, 0
      %p62 = por %p60, %p61
      %p63 = scmp.ne.s32.totalorder %s51, %s52
      %p64 = scmp.eq.s32.totalorder %s21, 1
      %p65 = por %p63, %p64
      %p67 = scmp.ne.s32.totalorder %s52, %s66
      %p68 = scmp.eq.s32.totalorder %s21, 0
      %p69 = por %p67, %p68
      %s71 = sadd.s32 %s70, 1
      %p74 = scmp.eq.s32.totalorder %s15, 1
      %p75 = scmp.ne.s32.totalorder %s70, %s72
      %p76 = scmp.eq.s32.totalorder %s15, 0
      %p77 = por %p75, %p76
      %p78 = scmp.ne.s32.totalorder %s70, %s72
      %p79 = scmp.eq.s32.totalorder %s20, 1
      %p80 = por %p78, %p79
      %p81 = scmp.ne.s32.totalorder %s72, %s73
      %p82 = scmp.eq.s32.totalorder %s20, 0
      %p83 = por %p81, %p82
      %p84 = scmp.ne.s32.totalorder %s72, %s73
      %p85 = scmp.eq.s32.totalorder %s21, 1
      %p86 = por %p84, %p85
      %p88 = scmp.ne.s32.totalorder %s73, %s87
      %p89 = scmp.eq.s32.totalorder %s21, 0
      %p90 = por %p88, %p89
      %s92 = sadd.s32 %s91, 1
      %p95 = scmp.eq.s32.totalorder %s15, 1
      %p96 = scmp.ne.s32.totalorder %s91, %s93
      %p97 = scmp.eq.s32.totalorder %s15, 0
      %p98 = por %p96, %p97
      %p99 = scmp.ne.s32.totalorder %s91, %s93
      %p100 = scmp.eq.s32.totalorder %s20, 1
      %p101 = por %p99, %p100
      %p102 = scmp.ne.s32.totalorder %s93, %s94
      %p103 = scmp.eq.s32.totalorder %s20, 0
      %p104 = por %p102, %p103
      %p105 = scmp.ne.s32.totalorder %s93, %s94
      %p106 = scmp.eq.s32.totalorder %s21, 1
      %p107 = por %p105, %p106
      %p109 = scmp.ne.s32.totalorder %s94, %s108
      %p110 = scmp.eq.s32.totalorder %s21, 0
      %p111 = por %p109, %p110
      %s113 = sadd.s32 %s112, 1
      %p116 = scmp.eq.s32.totalorder %s15, 1
      %p117 = scmp.ne.s32.totalorder %s112, %s114
      %p118 = scmp.eq.s32.totalorder %s15, 0
      %p119 = por %p117, %p118
      %p120 = scmp.ne.s32.totalorder %s112, %s114
      %p121 = scmp.eq.s32.totalorder %s20, 1
      %p122 = por %p120, %p121
      %p123 = scmp.ne.s32.totalorder %s114, %s115
      %p124 = scmp.eq.s32.totalorder %s20, 0
      %p125 = por %p123, %p124
      %p126 = scmp.ne.s32.totalorder %s114, %s115
      %p127 = scmp.eq.s32.totalorder %s21, 1
      %p128 = por %p126, %p127
      %p130 = scmp.ne.s32.totalorder %s115, %s129
      %p131 = scmp.eq.s32.totalorder %s21, 0
      %p132 = por %p130, %p131
      %p133 = scmp.le.s32.totalorder 1, %s15
      %p134 = scmp.lt.s32.totalorder %s15, 3
      %p135 = pnand %p133, %p134
      %p136 = pneg %p135
      // Predicated region
      $region9: #{tpu_custom_call.1} parent=5 // pred_check
        _
      $region10: #{tpu_custom_call.1} parent=5 // pred_check_branch
        %138 = sbr.rel (%p135) target = $region12
      $region11: #{tpu_custom_call.1} parent=5 // pred_region
        %s139 = ssub.s32 %s15, 1
        // Predicated region
        $region13: #{tpu_custom_call.1} parent=11 // pred_check
          %p140 = pneg %p62
        $region14: #{tpu_custom_call.1} parent=11 // pred_check_branch
          %142 = sbr.rel (%p140) target = $region16
        $region15: #{tpu_custom_call.1} parent=11 // pred_region
          %s144 = ssub.s32 4096, 4096
          %145 = vsyncadd [#allocation9], %s144
          %s146 = sshll.u32 [#allocation8], 4
          %s147 = int_to_ptr.vmem [resolvable:$true] %s146
          %152 = dma.hbm_to_vmem [thread:$0]  %s1, 4096, %s147, [#allocation9], 256, 256, 16
        $region16: #{tpu_custom_call.1} parent=11 // pred_fallthru
          _
        // Predicated region
        $region17: #{tpu_custom_call.1} parent=11 // pred_check
          %p153 = pneg %p83
        $region18: #{tpu_custom_call.1} parent=11 // pred_check_branch
          %155 = sbr.rel (%p153) target = $region20
        $region19: #{tpu_custom_call.1} parent=11 // pred_region
          %s157 = ssub.s32 4096, 4096
          %158 = vsyncadd [#allocation9], %s157
          %s159 = sshll.u32 [#allocation10], 4
          %s160 = int_to_ptr.vmem [resolvable:$true] %s159
          %165 = dma.hbm_to_vmem [thread:$0]  %s2, 4096, %s160, [#allocation9], 256, 256, 16
        $region20: #{tpu_custom_call.1} parent=11 // pred_fallthru
          _
        // Predicated region
        $region21: #{tpu_custom_call.1} parent=11 // pred_check
          %p166 = pneg %p104
        $region22: #{tpu_custom_call.1} parent=11 // pred_check_branch
          %168 = sbr.rel (%p166) target = $region24
        $region23: #{tpu_custom_call.1} parent=11 // pred_region
          _
        $region24: #{tpu_custom_call.1} parent=11 // pred_fallthru
          _
      $region12: #{tpu_custom_call.1} parent=5 // pred_fallthru
        _
      %p169 = scmp.lt.s32.totalorder %s15, 2
      // Predicated region
      $region25: #{tpu_custom_call.1} parent=5 // pred_check
        %p170 = pneg %p169
      $region26: #{tpu_custom_call.1} parent=5 // pred_check_branch
        %172 = sbr.rel (%p170) target = $region28
      $region27: #{tpu_custom_call.1} parent=5 // pred_region
        // Predicated region
        $region29: #{tpu_custom_call.1} parent=27 // pred_check
          %p173 = pneg %p35
        $region30: #{tpu_custom_call.1} parent=27 // pred_check_branch
          %175 = sbr.rel (%p173) target = $region32
        $region31: #{tpu_custom_call.1} parent=27 // pred_region
          %s176 = sand.u32 %s25, 1
          %s177 = scalar_lea.sflag [#allocation6], %s176
          %s178 = sand.u32 %s25, 1
          %s179 = smul.addr %s178, 32
          %s180 = scalar_lea.vmem [#allocation5], %s179
          %s181 = smul.u32 8, %s15
          %s183 = ssub.s32 512, 512
          %184 = vsyncadd %s177, %s183
          %s185 = smul.addr %s181, 64
          %s186 = scalar_lea.hbm %s0, %s185
          %s187 = sshll.u32 %s180, 4
          %s188 = int_to_ptr.vmem [resolvable:$true] %s187
          %193 = dma.hbm_to_vmem [thread:$0]  %s186, 512, %s188, %s177, 64, 64, 4
        $region32: #{tpu_custom_call.1} parent=27 // pred_fallthru
          _
      $region28: #{tpu_custom_call.1} parent=5 // pred_fallthru
        _
      %p194 = scmp.le.s32.totalorder 1, %s15
      %p195 = scmp.lt.s32.totalorder %s15, 3
      %p196 = pnand %p194, %p195
      %p197 = pneg %p196
      // Predicated region
      $region33: #{tpu_custom_call.1} parent=5 // pred_check
        _
      $region34: #{tpu_custom_call.1} parent=5 // pred_check_branch
        %199 = sbr.rel (%p196) target = $region36
      $region35: #{tpu_custom_call.1} parent=5 // pred_region
        %s200 = ssub.s32 %s15, 1
        %s201 = sand.u32 %s28, 1
        %s202 = scalar_lea.sflag [#allocation6], %s201
        %s203 = sand.u32 %s28, 1
        %s204 = smul.addr %s203, 32
        %s205 = scalar_lea.vmem [#allocation5], %s204
        // Predicated region
        $region37: #{tpu_custom_call.1} parent=35 // pred_check
          %p206 = pneg %p41
        $region38: #{tpu_custom_call.1} parent=35 // pred_check_branch
          %208 = sbr.rel (%p206) target = $region40
        $region39: #{tpu_custom_call.1} parent=35 // pred_region
          %209 = dma.done %s202, 512
        $region40: #{tpu_custom_call.1} parent=35 // pred_fallthru
          _
        // Predicated region
        $region41: #{tpu_custom_call.1} parent=35 // pred_check
          %p210 = pneg %p62
        $region42: #{tpu_custom_call.1} parent=35 // pred_check_branch
          %212 = sbr.rel (%p210) target = $region44
        $region43: #{tpu_custom_call.1} parent=35 // pred_region
          %213 = dma.done [#allocation9], 4096
        $region44: #{tpu_custom_call.1} parent=35 // pred_fallthru
          _
        // Predicated region
        $region45: #{tpu_custom_call.1} parent=35 // pred_check
          %p214 = pneg %p83
        $region46: #{tpu_custom_call.1} parent=35 // pred_check_branch
          %216 = sbr.rel (%p214) target = $region48
        $region47: #{tpu_custom_call.1} parent=35 // pred_region
          %217 = dma.done [#allocation9], 4096
        $region48: #{tpu_custom_call.1} parent=35 // pred_fallthru
          _
        %s218 = sand.u32 %s28, 1
        %s219 = scalar_lea.sflag [#allocation6], %s218
        %s220 = sand.u32 %s28, 1
        %s221 = smul.addr %s220, 32
        %s222 = scalar_lea.vmem [#allocation5], %s221
        %p223 = pneg %p41
        %p224 = pneg %p38
        %p225 = pneg %p62
        %p226 = pneg %p59
        %p227 = pneg %p83
        %p228 = pneg %p80
        %p229 = pneg %p104
        %p230 = pneg %p101
        %p231 = pneg %p125
        %p232 = pneg %p122
        %s233 = smul.u32 8, %s20
        %p235 = scmp.eq.s32.totalorder %s20, 0
        // Predicated region
        $region49: #{tpu_custom_call.1} parent=35 // pred_check
          %p236 = pneg %p235
        $region50: #{tpu_custom_call.1} parent=35 // pred_check_branch
          %238 = sbr.rel (%p236) target = $region52
        $region51: #{tpu_custom_call.1} parent=35 // pred_region
          %239 = vst [vmem:[#allocation3] sm:$0xff] 0.0
          %240 = vst [vmem:[#allocation3 + $0x8] sm:$0xff] 0.0
          %241 = vst [vmem:[#allocation4] sm:$0xff] 0.0
          %242 = vst [vmem:[#allocation4 + $0x8] sm:$0xff] 0.0
        $region52: #{tpu_custom_call.1} parent=35 // pred_fallthru
          _
        %v243 = vld [vmem:[%s205] sm:$0xf]
        %v244 = vld [vmem:[%s205 + $0x4] sm:$0xf]
        %v245 = vld [vmem:[%s205 + $0x8] sm:$0xf]
        %v246 = vld [vmem:[%s205 + $0xc] sm:$0xf]
        %v247 = vld [vmem:[%s205 + $0x10] sm:$0xf]
        %v248 = vld [vmem:[%s205 + $0x14] sm:$0xf]
        %v249 = vld [vmem:[%s205 + $0x18] sm:$0xf]
        %v250 = vld [vmem:[%s205 + $0x1c] sm:$0xf]
        %v251 = vld [vmem:[#allocation8] sm:$0xff]
        %v252 = vld [vmem:[#allocation8 + $0x8] sm:$0xff]
        %v253 = vld [vmem:[#allocation8 + $0x10] sm:$0xff]
        %v254 = vld [vmem:[#allocation8 + $0x18] sm:$0xff]
        %v255 = vld [vmem:[#allocation8 + $0x20] sm:$0xff]
        %v256 = vld [vmem:[#allocation8 + $0x28] sm:$0xff]
        %v257 = vld [vmem:[#allocation8 + $0x30] sm:$0xff]
        %v258 = vld [vmem:[#allocation8 + $0x38] sm:$0xff]
        %v259 = vld [vmem:[#allocation8 + $0x40] sm:$0xff]
        %v260 = vld [vmem:[#allocation8 + $0x48] sm:$0xff]
        %v261 = vld [vmem:[#allocation8 + $0x50] sm:$0xff]
        %v262 = vld [vmem:[#allocation8 + $0x58] sm:$0xff]
        %v263 = vld [vmem:[#allocation8 + $0x60] sm:$0xff]
        %v264 = vld [vmem:[#allocation8 + $0x68] sm:$0xff]
        %v265 = vld [vmem:[#allocation8 + $0x70] sm:$0xff]
        %v266 = vld [vmem:[#allocation8 + $0x78] sm:$0xff]
        %v267 = vld [vmem:[#allocation8 + $0x80] sm:$0xff]
        %v268 = vld [vmem:[#allocation8 + $0x88] sm:$0xff]
        %v269 = vld [vmem:[#allocation8 + $0x90] sm:$0xff]
        %v270 = vld [vmem:[#allocation8 + $0x98] sm:$0xff]
        %v271 = vld [vmem:[#allocation8 + $0xa0] sm:$0xff]
        %v272 = vld [vmem:[#allocation8 + $0xa8] sm:$0xff]
        %v273 = vld [vmem:[#allocation8 + $0xb0] sm:$0xff]
        %v274 = vld [vmem:[#allocation8 + $0xb8] sm:$0xff]
        %v275 = vld [vmem:[#allocation8 + $0xc0] sm:$0xff]
        %v276 = vld [vmem:[#allocation8 + $0xc8] sm:$0xff]
        %v277 = vld [vmem:[#allocation8 + $0xd0] sm:$0xff]
        %v278 = vld [vmem:[#allocation8 + $0xd8] sm:$0xff]
        %v279 = vld [vmem:[#allocation8 + $0xe0] sm:$0xff]
        %v280 = vld [vmem:[#allocation8 + $0xe8] sm:$0xff]
        %v281 = vld [vmem:[#allocation8 + $0xf0] sm:$0xff]
        %v282 = vld [vmem:[#allocation8 + $0xf8] sm:$0xff]
        %v283 = vld [vmem:[%s3] sm:$0xf]
        %v285 = vlaneseq
        %v286 = vshrl.u32 %v285, 7
        %v287 = vsub.s32 0, %v286
        %v288 = vrot.slane %v283, %v287
        %v289 = vlaneseq
        %v290 = vshrl.u32 %v289, 7
        %v291 = vsub.s32 1, %v290
        %v292 = vrot.slane %v283, %v291
        %v293 = vlaneseq
        %v294 = vshrl.u32 %v293, 7
        %v295 = vsub.s32 2, %v294
        %v296 = vrot.slane %v283, %v295
        %v297 = vlaneseq
        %v298 = vshrl.u32 %v297, 7
        %v299 = vsub.s32 3, %v298
        %v300 = vrot.slane %v283, %v299
        %v313 = vunpack.c.l.b16 %v243
        %v314 = vunpack.c.l.b16 %v244
        %v315 = vunpack.c.l.b16 %v245
        %v316 = vunpack.c.l.b16 %v246
        %v317 = vunpack.c.l.b16 %v247
        %v318 = vunpack.c.l.b16 %v248
        %v319 = vunpack.c.l.b16 %v249
        %v320 = vunpack.c.l.b16 %v250
        %v321 = vpack.c.b16 %v314, %v313
        %v322 = vpack.c.b16 %v316, %v315
        %v323 = vpack.c.b16 %v318, %v317
        %v324 = vpack.c.b16 %v320, %v319
        %v361 = vunpack.c.l.b16 %v251
        %v362 = vunpack.c.h.b16 %v251
        %v363 = vunpack.c.l.b16 %v252
        %v364 = vunpack.c.h.b16 %v252
        %v365 = vunpack.c.l.b16 %v253
        %v366 = vunpack.c.h.b16 %v253
        %v367 = vunpack.c.l.b16 %v254
        %v368 = vunpack.c.h.b16 %v254
        %v369 = vunpack.c.l.b16 %v255
        %v370 = vunpack.c.h.b16 %v255
        %v371 = vunpack.c.l.b16 %v256
        %v372 = vunpack.c.h.b16 %v256
        %v373 = vunpack.c.l.b16 %v257
        %v374 = vunpack.c.h.b16 %v257
        %v375 = vunpack.c.l.b16 %v258
        %v376 = vunpack.c.h.b16 %v258
        %v377 = vunpack.c.l.b16 %v259
        %v378 = vunpack.c.h.b16 %v259
        %v379 = vunpack.c.l.b16 %v260
        %v380 = vunpack.c.h.b16 %v260
        %v381 = vunpack.c.l.b16 %v261
        %v382 = vunpack.c.h.b16 %v261
        %v383 = vunpack.c.l.b16 %v262
        %v384 = vunpack.c.h.b16 %v262
        %v385 = vunpack.c.l.b16 %v263
        %v386 = vunpack.c.h.b16 %v263
        %v387 = vunpack.c.l.b16 %v264
        %v388 = vunpack.c.h.b16 %v264
        %v389 = vunpack.c.l.b16 %v265
        %v390 = vunpack.c.h.b16 %v265
        %v391 = vunpack.c.l.b16 %v266
        %v392 = vunpack.c.h.b16 %v266
        %v393 = vunpack.c.l.b16 %v267
        %v394 = vunpack.c.h.b16 %v267
        %v395 = vunpack.c.l.b16 %v268
        %v396 = vunpack.c.h.b16 %v268
        %v397 = vunpack.c.l.b16 %v269
        %v398 = vunpack.c.h.b16 %v269
        %v399 = vunpack.c.l.b16 %v270
        %v400 = vunpack.c.h.b16 %v270
        %v401 = vunpack.c.l.b16 %v271
        %v402 = vunpack.c.h.b16 %v271
        %v403 = vunpack.c.l.b16 %v272
        %v404 = vunpack.c.h.b16 %v272
        %v405 = vunpack.c.l.b16 %v273
        %v406 = vunpack.c.h.b16 %v273
        %v407 = vunpack.c.l.b16 %v274
        %v408 = vunpack.c.h.b16 %v274
        %v409 = vunpack.c.l.b16 %v275
        %v410 = vunpack.c.h.b16 %v275
        %v411 = vunpack.c.l.b16 %v276
        %v412 = vunpack.c.h.b16 %v276
        %v413 = vunpack.c.l.b16 %v277
        %v414 = vunpack.c.h.b16 %v277
        %v415 = vunpack.c.l.b16 %v278
        %v416 = vunpack.c.h.b16 %v278
        %v417 = vunpack.c.l.b16 %v279
        %v418 = vunpack.c.h.b16 %v279
        %v419 = vunpack.c.l.b16 %v280
        %v420 = vunpack.c.h.b16 %v280
        %v421 = vunpack.c.l.b16 %v281
        %v422 = vunpack.c.h.b16 %v281
        %v423 = vunpack.c.l.b16 %v282
        %v424 = vunpack.c.h.b16 %v282
        %v425 = vpack.c.b16 %v365, %v361
        %v426 = vpack.c.b16 %v366, %v362
        %v427 = vpack.c.b16 %v367, %v363
        %v428 = vpack.c.b16 %v368, %v364
        %v429 = vpack.c.b16 %v373, %v369
        %v430 = vpack.c.b16 %v374, %v370
        %v431 = vpack.c.b16 %v375, %v371
        %v432 = vpack.c.b16 %v376, %v372
        %v433 = vpack.c.b16 %v381, %v377
        %v434 = vpack.c.b16 %v382, %v378
        %v435 = vpack.c.b16 %v383, %v379
        %v436 = vpack.c.b16 %v384, %v380
        %v437 = vpack.c.b16 %v389, %v385
        %v438 = vpack.c.b16 %v390, %v386
        %v439 = vpack.c.b16 %v391, %v387
        %v440 = vpack.c.b16 %v392, %v388
        %v441 = vpack.c.b16 %v397, %v393
        %v442 = vpack.c.b16 %v398, %v394
        %v443 = vpack.c.b16 %v399, %v395
        %v444 = vpack.c.b16 %v400, %v396
        %v445 = vpack.c.b16 %v405, %v401
        %v446 = vpack.c.b16 %v406, %v402
        %v447 = vpack.c.b16 %v407, %v403
        %v448 = vpack.c.b16 %v408, %v404
        %v449 = vpack.c.b16 %v413, %v409
        %v450 = vpack.c.b16 %v414, %v410
        %v451 = vpack.c.b16 %v415, %v411
        %v452 = vpack.c.b16 %v416, %v412
        %v453 = vpack.c.b16 %v421, %v417
        %v454 = vpack.c.b16 %v422, %v418
        %v455 = vpack.c.b16 %v423, %v419
        %v456 = vpack.c.b16 %v424, %v420
        %489 = vmatprep.subr.bf16.mxu0 %v426
        %490 = vmatpush1.bf16.msra.mxu0 %v425
        %491 = vmatprep.subr.bf16.mxu0 %v430
        %492 = vmatpush1.bf16.msra.mxu0 %v429
        %493 = vmatprep.subr.bf16.mxu0 %v434
        %494 = vmatpush1.bf16.msra.mxu0 %v433
        %495 = vmatprep.subr.bf16.mxu0 %v438
        %496 = vmatpush1.bf16.msra.mxu0 %v437
        %497 = vmatprep.subr.bf16.mxu0 %v442
        %498 = vmatpush1.bf16.msra.mxu0 %v441
        %499 = vmatprep.subr.bf16.mxu0 %v446
        %500 = vmatpush1.bf16.msra.mxu0 %v445
        %501 = vmatprep.subr.bf16.mxu0 %v450
        %502 = vmatpush1.bf16.msra.mxu0 %v449
        %503 = vmatprep.subr.bf16.mxu0 %v454
        %504 = vmatpush1.bf16.msra.mxu0 %v453
        %505 = vmatprep.subr.bf16.mxu0 0
        %506 = vmatpush1.bf16.msra.mxu0 0
        %507 = vmatprep.subr.bf16.mxu0 0
        %508 = vmatpush1.bf16.msra.mxu0 0
        %509 = vmatprep.subr.bf16.mxu0 0
        %510 = vmatpush1.bf16.msra.mxu0 0
        %511 = vmatprep.subr.bf16.mxu0 0
        %512 = vmatpush1.bf16.msra.mxu0 0
        %513 = vmatprep.subr.bf16.mxu0 0
        %514 = vmatpush1.bf16.msra.mxu0 0
        %515 = vmatprep.subr.bf16.mxu0 0
        %516 = vmatpush1.bf16.msra.mxu0 0
        %517 = vmatprep.subr.bf16.mxu0 0
        %518 = vmatpush1.bf16.msra.mxu0 0
        %519 = vmatprep.subr.bf16.mxu0 0
        %520 = vmatpush1.bf16.msra.mxu0 0
        %521 = vmatprep.mubr.bf16.mxu0 0
        %522 = vmatmul.mubr.bf16.gmra.mrb[0].mxu0 %v321
        %v523 = vpop.f32.mrb[0].mxu0
        %v524 = vadd.f32 %v288, %v523
        %v525 = vpop.f32.mrb[0].mxu0
        %v526 = vadd.f32 %v292, %v525
        %v527 = vpop.f32.mrb[0].mxu0
        %v528 = vadd.f32 %v288, %v527
        %v529 = vpop.f32.mrb[0].mxu0
        %v530 = vadd.f32 %v292, %v529
        %531 = vmatprep.mubr.bf16.mxu0 0
        %532 = vmatmul.mubr.bf16.gmra.mrb[0].mxu0 %v322
        %v533 = vpop.f32.mrb[0].mxu0
        %v534 = vadd.f32 %v288, %v533
        %v535 = vpop.f32.mrb[0].mxu0
        %v536 = vadd.f32 %v292, %v535
        %v537 = vpop.f32.mrb[0].mxu0
        %v538 = vadd.f32 %v288, %v537
        %v539 = vpop.f32.mrb[0].mxu0
        %v540 = vadd.f32 %v292, %v539
        %541 = vmatprep.mubr.bf16.mxu0 0
        %542 = vmatmul.mubr.bf16.gmra.mrb[0].mxu0 %v323
        %v543 = vpop.f32.mrb[0].mxu0
        %v544 = vadd.f32 %v288, %v543
        %v545 = vpop.f32.mrb[0].mxu0
        %v546 = vadd.f32 %v292, %v545
        %v547 = vpop.f32.mrb[0].mxu0
        %v548 = vadd.f32 %v288, %v547
        %v549 = vpop.f32.mrb[0].mxu0
        %v550 = vadd.f32 %v292, %v549
        %551 = vmatprep.mubr.bf16.mxu0 0
        %552 = vmatmul.mubr.bf16.gmra.mrb[0].mxu0 %v324
        %v553 = vpop.f32.mrb[0].mxu0
        %v554 = vadd.f32 %v288, %v553
        %v555 = vpop.f32.mrb[0].mxu0
        %v556 = vadd.f32 %v292, %v555
        %v557 = vpop.f32.mrb[0].mxu0
        %v558 = vadd.f32 %v288, %v557
        %v559 = vpop.f32.mrb[0].mxu0
        %v560 = vadd.f32 %v292, %v559
        %561 = vdwg.mxu0
        %562 = vmatprep.subr.bf16.mxu0 %v428
        %563 = vmatpush1.bf16.msra.mxu0 %v427
        %564 = vmatprep.subr.bf16.mxu0 %v432
        %565 = vmatpush1.bf16.msra.mxu0 %v431
        %566 = vmatprep.subr.bf16.mxu0 %v436
        %567 = vmatpush1.bf16.msra.mxu0 %v435
        %568 = vmatprep.subr.bf16.mxu0 %v440
        %569 = vmatpush1.bf16.msra.mxu0 %v439
        %570 = vmatprep.subr.bf16.mxu0 %v444
        %571 = vmatpush1.bf16.msra.mxu0 %v443
        %572 = vmatprep.subr.bf16.mxu0 %v448
        %573 = vmatpush1.bf16.msra.mxu0 %v447
        %574 = vmatprep.subr.bf16.mxu0 %v452
        %575 = vmatpush1.bf16.msra.mxu0 %v451
        %576 = vmatprep.subr.bf16.mxu0 %v456
        %577 = vmatpush1.bf16.msra.mxu0 %v455
        %578 = vmatprep.subr.bf16.mxu0 0
        %579 = vmatpush1.bf16.msra.mxu0 0
        %580 = vmatprep.subr.bf16.mxu0 0
        %581 = vmatpush1.bf16.msra.mxu0 0
        %582 = vmatprep.subr.bf16.mxu0 0
        %583 = vmatpush1.bf16.msra.mxu0 0
        %584 = vmatprep.subr.bf16.mxu0 0
        %585 = vmatpush1.bf16.msra.mxu0 0
        %586 = vmatprep.subr.bf16.mxu0 0
        %587 = vmatpush1.bf16.msra.mxu0 0
        %588 = vmatprep.subr.bf16.mxu0 0
        %589 = vmatpush1.bf16.msra.mxu0 0
        %590 = vmatprep.subr.bf16.mxu0 0
        %591 = vmatpush1.bf16.msra.mxu0 0
        %592 = vmatprep.subr.bf16.mxu0 0
        %593 = vmatpush1.bf16.msra.mxu0 0
        %594 = vmatprep.mubr.bf16.mxu0 0
        %595 = vmatmul.mubr.bf16.gmra.mrb[0].mxu0 %v321
        %v596 = vpop.f32.mrb[0].mxu0
        %v597 = vadd.f32 %v296, %v596
        %v598 = vpop.f32.mrb[0].mxu0
        %v599 = vadd.f32 %v300, %v598
        %v600 = vpop.f32.mrb[0].mxu0
        %v601 = vadd.f32 %v296, %v600
        %v602 = vpop.f32.mrb[0].mxu0
        %v603 = vadd.f32 %v300, %v602
        %604 = vmatprep.mubr.bf16.mxu0 0
        %605 = vmatmul.mubr.bf16.gmra.mrb[0].mxu0 %v322
        %v606 = vpop.f32.mrb[0].mxu0
        %v607 = vadd.f32 %v296, %v606
        %v608 = vpop.f32.mrb[0].mxu0
        %v609 = vadd.f32 %v300, %v608
        %v610 = vpop.f32.mrb[0].mxu0
        %v611 = vadd.f32 %v296, %v610
        %v612 = vpop.f32.mrb[0].mxu0
        %v613 = vadd.f32 %v300, %v612
        %614 = vmatprep.mubr.bf16.mxu0 0
        %615 = vmatmul.mubr.bf16.gmra.mrb[0].mxu0 %v323
        %v616 = vpop.f32.mrb[0].mxu0
        %v617 = vadd.f32 %v296, %v616
        %v618 = vpop.f32.mrb[0].mxu0
        %v619 = vadd.f32 %v300, %v618
        %v620 = vpop.f32.mrb[0].mxu0
        %v621 = vadd.f32 %v296, %v620
        %v622 = vpop.f32.mrb[0].mxu0
        %v623 = vadd.f32 %v300, %v622
        %624 = vmatprep.mubr.bf16.mxu0 0
        %625 = vmatmul.mubr.bf16.gmra.mrb[0].mxu0 %v324
        %v626 = vpop.f32.mrb[0].mxu0
        %v627 = vadd.f32 %v296, %v626
        %v628 = vpop.f32.mrb[0].mxu0
        %v629 = vadd.f32 %v300, %v628
        %v630 = vpop.f32.mrb[0].mxu0
        %v631 = vadd.f32 %v296, %v630
        %v632 = vpop.f32.mrb[0].mxu0
        %v633 = vadd.f32 %v300, %v632
        %634 = vdwg.mxu0
        %635 = vst [vmem:[#allocation2] sm:$0xff] %v524
        %636 = vst [vmem:[#allocation2 + $0x8] sm:$0xff] %v526
        %637 = vst [vmem:[#allocation2 + $0x10] sm:$0xff] %v597
        %638 = vst [vmem:[#allocation2 + $0x18] sm:$0xff] %v599
        %639 = vst [vmem:[#allocation2 + $0x20] sm:$0xff] %v528
        %640 = vst [vmem:[#allocation2 + $0x28] sm:$0xff] %v530
        %641 = vst [vmem:[#allocation2 + $0x30] sm:$0xff] %v601
        %642 = vst [vmem:[#allocation2 + $0x38] sm:$0xff] %v603
        %643 = vst [vmem:[#allocation2 + $0x40] sm:$0xff] %v534
        %644 = vst [vmem:[#allocation2 + $0x48] sm:$0xff] %v536
        %645 = vst [vmem:[#allocation2 + $0x50] sm:$0xff] %v607
        %646 = vst [vmem:[#allocation2 + $0x58] sm:$0xff] %v609
        %647 = vst [vmem:[#allocation2 + $0x60] sm:$0xff] %v538
        %648 = vst [vmem:[#allocation2 + $0x68] sm:$0xff] %v540
        %649 = vst [vmem:[#allocation2 + $0x70] sm:$0xff] %v611
        %650 = vst [vmem:[#allocation2 + $0x78] sm:$0xff] %v613
        %651 = vst [vmem:[#allocation2 + $0x80] sm:$0xff] %v544
        %652 = vst [vmem:[#allocation2 + $0x88] sm:$0xff] %v546
        %653 = vst [vmem:[#allocation2 + $0x90] sm:$0xff] %v617
        %654 = vst [vmem:[#allocation2 + $0x98] sm:$0xff] %v619
        %655 = vst [vmem:[#allocation2 + $0xa0] sm:$0xff] %v548
        %656 = vst [vmem:[#allocation2 + $0xa8] sm:$0xff] %v550
        %657 = vst [vmem:[#allocation2 + $0xb0] sm:$0xff] %v621
        %658 = vst [vmem:[#allocation2 + $0xb8] sm:$0xff] %v623
        %659 = vst [vmem:[#allocation2 + $0xc0] sm:$0xff] %v554
        %660 = vst [vmem:[#allocation2 + $0xc8] sm:$0xff] %v556
        %661 = vst [vmem:[#allocation2 + $0xd0] sm:$0xff] %v627
        %662 = vst [vmem:[#allocation2 + $0xd8] sm:$0xff] %v629
        %663 = vst [vmem:[#allocation2 + $0xe0] sm:$0xff] %v558
        %664 = vst [vmem:[#allocation2 + $0xe8] sm:$0xff] %v560
        %665 = vst [vmem:[#allocation2 + $0xf0] sm:$0xff] %v631
        %666 = vst [vmem:[#allocation2 + $0xf8] sm:$0xff] %v633
        %v667 = vld [vmem:[#allocation10] sm:$0xff]
        %v668 = vld [vmem:[#allocation10 + $0x8] sm:$0xff]
        %v669 = vld [vmem:[#allocation10 + $0x10] sm:$0xff]
        %v670 = vld [vmem:[#allocation10 + $0x18] sm:$0xff]
        %v671 = vld [vmem:[#allocation10 + $0x20] sm:$0xff]
        %v672 = vld [vmem:[#allocation10 + $0x28] sm:$0xff]
        %v673 = vld [vmem:[#allocation10 + $0x30] sm:$0xff]
        %v674 = vld [vmem:[#allocation10 + $0x38] sm:$0xff]
        %v675 = vld [vmem:[#allocation10 + $0x40] sm:$0xff]
        %v676 = vld [vmem:[#allocation10 + $0x48] sm:$0xff]
        %v677 = vld [vmem:[#allocation10 + $0x50] sm:$0xff]
        %v678 = vld [vmem:[#allocation10 + $0x58] sm:$0xff]
        %v679 = vld [vmem:[#allocation10 + $0x60] sm:$0xff]
        %v680 = vld [vmem:[#allocation10 + $0x68] sm:$0xff]
        %v681 = vld [vmem:[#allocation10 + $0x70] sm:$0xff]
        %v682 = vld [vmem:[#allocation10 + $0x78] sm:$0xff]
        %v683 = vld [vmem:[#allocation10 + $0x80] sm:$0xff]
        %v684 = vld [vmem:[#allocation10 + $0x88] sm:$0xff]
        %v685 = vld [vmem:[#allocation10 + $0x90] sm:$0xff]
        %v686 = vld [vmem:[#allocation10 + $0x98] sm:$0xff]
        %v687 = vld [vmem:[#allocation10 + $0xa0] sm:$0xff]
        %v688 = vld [vmem:[#allocation10 + $0xa8] sm:$0xff]
        %v689 = vld [vmem:[#allocation10 + $0xb0] sm:$0xff]
        %v690 = vld [vmem:[#allocation10 + $0xb8] sm:$0xff]
        %v691 = vld [vmem:[#allocation10 + $0xc0] sm:$0xff]
        %v692 = vld [vmem:[#allocation10 + $0xc8] sm:$0xff]
        %v693 = vld [vmem:[#allocation10 + $0xd0] sm:$0xff]
        %v694 = vld [vmem:[#allocation10 + $0xd8] sm:$0xff]
        %v695 = vld [vmem:[#allocation10 + $0xe0] sm:$0xff]
        %v696 = vld [vmem:[#allocation10 + $0xe8] sm:$0xff]
        %v697 = vld [vmem:[#allocation10 + $0xf0] sm:$0xff]
        %v698 = vld [vmem:[#allocation10 + $0xf8] sm:$0xff]
        %v699 = vld [vmem:[#allocation3] sm:$0xff]
        %v700 = vld [vmem:[#allocation3 + $0x8] sm:$0xff]
        %v701 = vld [vmem:[#allocation4] sm:$0xff]
        %v702 = vld [vmem:[#allocation4 + $0x8] sm:$0xff]
        %s703 = smul.u32 0, 4
        %s704 = smul.addr %s703, 8
        %s705 = scalar_lea.vmem [#allocation2], %s704
        %v706 = vld [vmem:[%s705] sm:$0xff]
        %v707 = vld [vmem:[%s705 + $0x8] sm:$0xff]
        %v708 = vld [vmem:[%s705 + $0x10] sm:$0xff]
        %v709 = vld [vmem:[%s705 + $0x18] sm:$0xff]
        %v710 = vld [vmem:[%s705 + $0x20] sm:$0xff]
        %v711 = vld [vmem:[%s705 + $0x28] sm:$0xff]
        %v712 = vld [vmem:[%s705 + $0x30] sm:$0xff]
        %v713 = vld [vmem:[%s705 + $0x38] sm:$0xff]
        %v714 = vpack.c.bf16 %v700, %v699
        %v747 = vunpack.c.l.b16 %v667
        %v748 = vunpack.c.h.b16 %v667
        %v749 = vunpack.c.l.b16 %v668
        %v750 = vunpack.c.h.b16 %v668
        %v751 = vunpack.c.l.b16 %v669
        %v752 = vunpack.c.h.b16 %v669
        %v753 = vunpack.c.l.b16 %v670
        %v754 = vunpack.c.h.b16 %v670
        %v755 = vunpack.c.l.b16 %v671
        %v756 = vunpack.c.h.b16 %v671
        %v757 = vunpack.c.l.b16 %v672
        %v758 = vunpack.c.h.b16 %v672
        %v759 = vunpack.c.l.b16 %v673
        %v760 = vunpack.c.h.b16 %v673
        %v761 = vunpack.c.l.b16 %v674
        %v762 = vunpack.c.h.b16 %v674
        %v763 = vunpack.c.l.b16 %v675
        %v764 = vunpack.c.h.b16 %v675
        %v765 = vunpack.c.l.b16 %v676
        %v766 = vunpack.c.h.b16 %v676
        %v767 = vunpack.c.l.b16 %v677
        %v768 = vunpack.c.h.b16 %v677
        %v769 = vunpack.c.l.b16 %v678
        %v770 = vunpack.c.h.b16 %v678
        %v771 = vunpack.c.l.b16 %v679
        %v772 = vunpack.c.h.b16 %v679
        %v773 = vunpack.c.l.b16 %v680
        %v774 = vunpack.c.h.b16 %v680
        %v775 = vunpack.c.l.b16 %v681
        %v776 = vunpack.c.h.b16 %v681
        %v777 = vunpack.c.l.b16 %v682
        %v778 = vunpack.c.h.b16 %v682
        %v779 = vunpack.c.l.b16 %v683
        %v780 = vunpack.c.h.b16 %v683
        %v781 = vunpack.c.l.b16 %v684
        %v782 = vunpack.c.h.b16 %v684
        %v783 = vunpack.c.l.b16 %v685
        %v784 = vunpack.c.h.b16 %v685
        %v785 = vunpack.c.l.b16 %v686
        %v786 = vunpack.c.h.b16 %v686
        %v787 = vunpack.c.l.b16 %v687
        %v788 = vunpack.c.h.b16 %v687
        %v789 = vunpack.c.l.b16 %v688
        %v790 = vunpack.c.h.b16 %v688
        %v791 = vunpack.c.l.b16 %v689
        %v792 = vunpack.c.h.b16 %v689
        %v793 = vunpack.c.l.b16 %v690
        %v794 = vunpack.c.h.b16 %v690
        %v795 = vunpack.c.l.b16 %v691
        %v796 = vunpack.c.h.b16 %v691
        %v797 = vunpack.c.l.b16 %v692
        %v798 = vunpack.c.h.b16 %v692
        %v799 = vunpack.c.l.b16 %v693
        %v800 = vunpack.c.h.b16 %v693
        %v801 = vunpack.c.l.b16 %v694
        %v802 = vunpack.c.h.b16 %v694
        %v803 = vunpack.c.l.b16 %v695
        %v804 = vunpack.c.h.b16 %v695
        %v805 = vunpack.c.l.b16 %v696
        %v806 = vunpack.c.h.b16 %v696
        %v807 = vunpack.c.l.b16 %v697
        %v808 = vunpack.c.h.b16 %v697
        %v809 = vunpack.c.l.b16 %v698
        %v810 = vunpack.c.h.b16 %v698
        %v811 = vpack.c.b16 %v751, %v747
        %v812 = vpack.c.b16 %v752, %v748
        %v813 = vpack.c.b16 %v753, %v749
        %v814 = vpack.c.b16 %v754, %v750
        %v815 = vpack.c.b16 %v759, %v755
        %v816 = vpack.c.b16 %v760, %v756
        %v817 = vpack.c.b16 %v761, %v757
        %v818 = vpack.c.b16 %v762, %v758
        %v819 = vpack.c.b16 %v767, %v763
        %v820 = vpack.c.b16 %v768, %v764
        %v821 = vpack.c.b16 %v769, %v765
        %v822 = vpack.c.b16 %v770, %v766
        %v823 = vpack.c.b16 %v775, %v771
        %v824 = vpack.c.b16 %v776, %v772
        %v825 = vpack.c.b16 %v777, %v773
        %v826 = vpack.c.b16 %v778, %v774
        %v827 = vpack.c.b16 %v783, %v779
        %v828 = vpack.c.b16 %v784, %v780
        %v829 = vpack.c.b16 %v785, %v781
        %v830 = vpack.c.b16 %v786, %v782
        %v831 = vpack.c.b16 %v791, %v787
        %v832 = vpack.c.b16 %v792, %v788
        %v833 = vpack.c.b16 %v793, %v789
        %v834 = vpack.c.b16 %v794, %v790
        %v835 = vpack.c.b16 %v799, %v795
        %v836 = vpack.c.b16 %v800, %v796
        %v837 = vpack.c.b16 %v801, %v797
        %v838 = vpack.c.b16 %v802, %v798
        %v839 = vpack.c.b16 %v807, %v803
        %v840 = vpack.c.b16 %v808, %v804
        %v841 = vpack.c.b16 %v809, %v805
        %v842 = vpack.c.b16 %v810, %v806
        %875 = vmatprep.subr.bf16.mxu0 %v812
        %876 = vmatpush1.bf16.msra.mxu0 %v811
        %877 = vmatprep.subr.bf16.mxu0 %v816
        %878 = vmatpush1.bf16.msra.mxu0 %v815
        %879 = vmatprep.subr.bf16.mxu0 %v820
        %880 = vmatpush1.bf16.msra.mxu0 %v819
        %881 = vmatprep.subr.bf16.mxu0 %v824
        %882 = vmatpush1.bf16.msra.mxu0 %v823
        %883 = vmatprep.subr.bf16.mxu0 %v828
        %884 = vmatpush1.bf16.msra.mxu0 %v827
        %885 = vmatprep.subr.bf16.mxu0 %v832
        %886 = vmatpush1.bf16.msra.mxu0 %v831
        %887 = vmatprep.subr.bf16.mxu0 %v836
        %888 = vmatpush1.bf16.msra.mxu0 %v835
        %889 = vmatprep.subr.bf16.mxu0 %v840
        %890 = vmatpush1.bf16.msra.mxu0 %v839
        %891 = vmatprep.subr.bf16.mxu0 0
        %892 = vmatpush1.bf16.msra.mxu0 0
        %893 = vmatprep.subr.bf16.mxu0 0
        %894 = vmatpush1.bf16.msra.mxu0 0
        %895 = vmatprep.subr.bf16.mxu0 0
        %896 = vmatpush1.bf16.msra.mxu0 0
        %897 = vmatprep.subr.bf16.mxu0 0
        %898 = vmatpush1.bf16.msra.mxu0 0
        %899 = vmatprep.subr.bf16.mxu0 0
        %900 = vmatpush1.bf16.msra.mxu0 0
        %901 = vmatprep.subr.bf16.mxu0 0
        %902 = vmatpush1.bf16.msra.mxu0 0
        %903 = vmatprep.subr.bf16.mxu0 0
        %904 = vmatpush1.bf16.msra.mxu0 0
        %905 = vmatprep.subr.bf16.mxu0 0
        %906 = vmatpush1.bf16.msra.mxu0 0
        %907 = vmatprep.mubr.bf16.mxu0 0
        %908 = vmatmul.mubr.bf16.gmra.mrb[0].mxu0 %v714
        %v909 = vpop.f32.mrb[0].mxu0
        %v910 = vadd.f32 0.0, %v909
        %v911 = vpop.f32.mrb[0].mxu0
        %v912 = vadd.f32 0.0, %v911
        %v913 = vpop.f32.mrb[0].mxu0
        %v914 = vadd.f32 0.0, %v913
        %v915 = vpop.f32.mrb[0].mxu0
        %v916 = vadd.f32 0.0, %v915
        %917 = vdwg.mxu0
        %918 = vmatprep.subr.bf16.mxu0 %v814
        %919 = vmatpush1.bf16.msra.mxu0 %v813
        %920 = vmatprep.subr.bf16.mxu0 %v818
        %921 = vmatpush1.bf16.msra.mxu0 %v817
        %922 = vmatprep.subr.bf16.mxu0 %v822
        %923 = vmatpush1.bf16.msra.mxu0 %v821
        %924 = vmatprep.subr.bf16.mxu0 %v826
        %925 = vmatpush1.bf16.msra.mxu0 %v825
        %926 = vmatprep.subr.bf16.mxu0 %v830
        %927 = vmatpush1.bf16.msra.mxu0 %v829
        %928 = vmatprep.subr.bf16.mxu0 %v834
        %929 = vmatpush1.bf16.msra.mxu0 %v833
        %930 = vmatprep.subr.bf16.mxu0 %v838
        %931 = vmatpush1.bf16.msra.mxu0 %v837
        %932 = vmatprep.subr.bf16.mxu0 %v842
        %933 = vmatpush1.bf16.msra.mxu0 %v841
        %934 = vmatprep.subr.bf16.mxu0 0
        %935 = vmatpush1.bf16.msra.mxu0 0
        %936 = vmatprep.subr.bf16.mxu0 0
        %937 = vmatpush1.bf16.msra.mxu0 0
        %938 = vmatprep.subr.bf16.mxu0 0
        %939 = vmatpush1.bf16.msra.mxu0 0
        %940 = vmatprep.subr.bf16.mxu0 0
        %941 = vmatpush1.bf16.msra.mxu0 0
        %942 = vmatprep.subr.bf16.mxu0 0
        %943 = vmatpush1.bf16.msra.mxu0 0
        %944 = vmatprep.subr.bf16.mxu0 0
        %945 = vmatpush1.bf16.msra.mxu0 0
        %946 = vmatprep.subr.bf16.mxu0 0
        %947 = vmatpush1.bf16.msra.mxu0 0
        %948 = vmatprep.subr.bf16.mxu0 0
        %949 = vmatpush1.bf16.msra.mxu0 0
        %950 = vmatprep.mubr.bf16.mxu0 0
        %951 = vmatmul.mubr.bf16.gmra.mrb[0].mxu0 %v714
        %v952 = vpop.f32.mrb[0].mxu0
        %v953 = vadd.f32 0.0, %v952
        %v954 = vpop.f32.mrb[0].mxu0
        %v955 = vadd.f32 0.0, %v954
        %v956 = vpop.f32.mrb[0].mxu0
        %v957 = vadd.f32 0.0, %v956
        %v958 = vpop.f32.mrb[0].mxu0
        %v959 = vadd.f32 0.0, %v958
        %960 = vdwg.mxu0
        %v961 = vadd.f32 %v706, %v910
        %v962 = vadd.f32 %v707, %v912
        %v963 = vadd.f32 %v708, %v953
        %v964 = vadd.f32 %v709, %v955
        %v965 = vadd.f32 %v710, %v914
        %v966 = vadd.f32 %v711, %v916
        %v967 = vadd.f32 %v712, %v957
        %v968 = vadd.f32 %v713, %v959
        %v969 = vxor.u32 %v961, 2147483648
        %v970 = vxor.u32 %v962, 2147483648
        %v971 = vxor.u32 %v963, 2147483648
        %v972 = vxor.u32 %v965, 2147483648
        %v973 = vxor.u32 %v966, 2147483648
        %v974 = vxor.u32 %v967, 2147483648
        %v975 = vmul.f32 %v969, 1.442695
        %v976 = vpow.pop %v975
        %v977 = vmul.f32 %v970, 1.442695
        %v978 = vpow.pop %v977
        %v979 = vmul.f32 %v971, 1.442695
        %v980 = vpow.pop %v979
        %v981 = vmul.f32 %v972, 1.442695
        %v982 = vpow.pop %v981
        %v983 = vmul.f32 %v973, 1.442695
        %v984 = vpow.pop %v983
        %v985 = vmul.f32 %v974, 1.442695
        %v986 = vpow.pop %v985
        %v987 = vadd.f32 %v976, 1.0
        %v988 = vadd.f32 %v978, 1.0
        %v989 = vadd.f32 %v980, 1.0
        %v990 = vadd.f32 %v982, 1.0
        %v991 = vadd.f32 %v984, 1.0
        %v992 = vadd.f32 %v986, 1.0
        %v993 = vrcp.pop %v987
        %v994 = vmul.f32 1.0, %v993
        %v995 = vrcp.pop %v988
        %v996 = vmul.f32 1.0, %v995
        %v997 = vrcp.pop %v989
        %v998 = vmul.f32 1.0, %v997
        %v999 = vrcp.pop %v990
        %v1000 = vmul.f32 1.0, %v999
        %v1001 = vrcp.pop %v991
        %v1002 = vmul.f32 1.0, %v1001
        %v1003 = vrcp.pop %v992
        %v1004 = vmul.f32 1.0, %v1003
        %v1005 = vtanh.pop %v964
        %v1006 = vtanh.pop %v968
        %v1007 = vmul.f32 %v996, %v701
        %v1008 = vmul.f32 %v1002, %v702
        %v1009 = vmul.f32 %v994, %v1005
        %v1010 = vmul.f32 %v1000, %v1006
        %v1011 = vadd.f32 %v1007, %v1009
        %v1012 = vadd.f32 %v1008, %v1010
        %v1013 = vtanh.pop %v1011
        %v1014 = vtanh.pop %v1012
        %v1015 = vmul.f32 %v998, %v1013
        %v1016 = vmul.f32 %v1004, %v1014
        %s1017 = smul.u32 2, 4
        %s1018 = smul.addr %s1017, 8
        %s1019 = scalar_lea.vmem [#allocation2], %s1018
        %v1020 = vld [vmem:[%s1019] sm:$0xff]
        %v1021 = vld [vmem:[%s1019 + $0x8] sm:$0xff]
        %v1022 = vld [vmem:[%s1019 + $0x10] sm:$0xff]
        %v1023 = vld [vmem:[%s1019 + $0x18] sm:$0xff]
        %v1024 = vld [vmem:[%s1019 + $0x20] sm:$0xff]
        %v1025 = vld [vmem:[%s1019 + $0x28] sm:$0xff]
        %v1026 = vld [vmem:[%s1019 + $0x30] sm:$0xff]
        %v1027 = vld [vmem:[%s1019 + $0x38] sm:$0xff]
        %v1028 = vpack.c.bf16 %v1016, %v1015
        %1029 = vmatprep.subr.bf16.mxu0 %v812
        %1030 = vmatpush1.bf16.msra.mxu0 %v811
        %1031 = vmatprep.subr.bf16.mxu0 %v816
        %1032 = vmatpush1.bf16.msra.mxu0 %v815
        %1033 = vmatprep.subr.bf16.mxu0 %v820
        %1034 = vmatpush1.bf16.msra.mxu0 %v819
        %1035 = vmatprep.subr.bf16.mxu0 %v824
        %1036 = vmatpush1.bf16.msra.mxu0 %v823
        %1037 = vmatprep.subr.bf16.mxu0 %v828
        %1038 = vmatpush1.bf16.msra.mxu0 %v827
        %1039 = vmatprep.subr.bf16.mxu0 %v832
        %1040 = vmatpush1.bf16.msra.mxu0 %v831
        %1041 = vmatprep.subr.bf16.mxu0 %v836
        %1042 = vmatpush1.bf16.msra.mxu0 %v835
        %1043 = vmatprep.subr.bf16.mxu0 %v840
        %1044 = vmatpush1.bf16.msra.mxu0 %v839
        %1045 = vmatprep.subr.bf16.mxu0 0
        %1046 = vmatpush1.bf16.msra.mxu0 0
        %1047 = vmatprep.subr.bf16.mxu0 0
        %1048 = vmatpush1.bf16.msra.mxu0 0
        %1049 = vmatprep.subr.bf16.mxu0 0
        %1050 = vmatpush1.bf16.msra.mxu0 0
        %1051 = vmatprep.subr.bf16.mxu0 0
        %1052 = vmatpush1.bf16.msra.mxu0 0
        %1053 = vmatprep.subr.bf16.mxu0 0
        %1054 = vmatpush1.bf16.msra.mxu0 0
        %1055 = vmatprep.subr.bf16.mxu0 0
        %1056 = vmatpush1.bf16.msra.mxu0 0
        %1057 = vmatprep.subr.bf16.mxu0 0
        %1058 = vmatpush1.bf16.msra.mxu0 0
        %1059 = vmatprep.subr.bf16.mxu0 0
        %1060 = vmatpush1.bf16.msra.mxu0 0
        %1061 = vmatprep.mubr.bf16.mxu0 0
        %1062 = vmatmul.mubr.bf16.gmra.mrb[0].mxu0 %v1028
        %v1063 = vpop.f32.mrb[0].mxu0
        %v1064 = vadd.f32 0.0, %v1063
        %v1065 = vpop.f32.mrb[0].mxu0
        %v1066 = vadd.f32 0.0, %v1065
        %v1067 = vpop.f32.mrb[0].mxu0
        %v1068 = vadd.f32 0.0, %v1067
        %v1069 = vpop.f32.mrb[0].mxu0
        %v1070 = vadd.f32 0.0, %v1069
        %1071 = vdwg.mxu0
        %1072 = vmatprep.subr.bf16.mxu0 %v814
        %1073 = vmatpush1.bf16.msra.mxu0 %v813
        %1074 = vmatprep.subr.bf16.mxu0 %v818
        %1075 = vmatpush1.bf16.msra.mxu0 %v817
        %1076 = vmatprep.subr.bf16.mxu0 %v822
        %1077 = vmatpush1.bf16.msra.mxu0 %v821
        %1078 = vmatprep.subr.bf16.mxu0 %v826
        %1079 = vmatpush1.bf16.msra.mxu0 %v825
        %1080 = vmatprep.subr.bf16.mxu0 %v830
        %1081 = vmatpush1.bf16.msra.mxu0 %v829
        %1082 = vmatprep.subr.bf16.mxu0 %v834
        %1083 = vmatpush1.bf16.msra.mxu0 %v833
        %1084 = vmatprep.subr.bf16.mxu0 %v838
        %1085 = vmatpush1.bf16.msra.mxu0 %v837
        %1086 = vmatprep.subr.bf16.mxu0 %v842
        %1087 = vmatpush1.bf16.msra.mxu0 %v841
        %1088 = vmatprep.subr.bf16.mxu0 0
        %1089 = vmatpush1.bf16.msra.mxu0 0
        %1090 = vmatprep.subr.bf16.mxu0 0
        %1091 = vmatpush1.bf16.msra.mxu0 0
        %1092 = vmatprep.subr.bf16.mxu0 0
        %1093 = vmatpush1.bf16.msra.mxu0 0
        %1094 = vmatprep.subr.bf16.mxu0 0
        %1095 = vmatpush1.bf16.msra.mxu0 0
        %1096 = vmatprep.subr.bf16.mxu0 0
        %1097 = vmatpush1.bf16.msra.mxu0 0
        %1098 = vmatprep.subr.bf16.mxu0 0
        %1099 = vmatpush1.bf16.msra.mxu0 0
        %1100 = vmatprep.subr.bf16.mxu0 0
        %1101 = vmatpush1.bf16.msra.mxu0 0
        %1102 = vmatprep.subr.bf16.mxu0 0
        %1103 = vmatpush1.bf16.msra.mxu0 0
        %1104 = vmatprep.mubr.bf16.mxu0 0
        %1105 = vmatmul.mubr.bf16.gmra.mrb[0].mxu0 %v1028
        %v1106 = vpop.f32.mrb[0].mxu0
        %v1107 = vadd.f32 0.0, %v1106
        %v1108 = vpop.f32.mrb[0].mxu0
        %v1109 = vadd.f32 0.0, %v1108
        %v1110 = vpop.f32.mrb[0].mxu0
        %v1111 = vadd.f32 0.0, %v1110
        %v1112 = vpop.f32.mrb[0].mxu0
        %v1113 = vadd.f32 0.0, %v1112
        %1114 = vdwg.mxu0
        %v1115 = vadd.f32 %v1020, %v1064
        %v1116 = vadd.f32 %v1021, %v1066
        %v1117 = vadd.f32 %v1022, %v1107
        %v1118 = vadd.f32 %v1023, %v1109
        %v1119 = vadd.f32 %v1024, %v1068
        %v1120 = vadd.f32 %v1025, %v1070
        %v1121 = vadd.f32 %v1026, %v1111
        %v1122 = vadd.f32 %v1027, %v1113
        %v1123 = vxor.u32 %v1115, 2147483648
        %v1124 = vxor.u32 %v1116, 2147483648
        %v1125 = vxor.u32 %v1117, 2147483648
        %v1126 = vxor.u32 %v1119, 2147483648
        %v1127 = vxor.u32 %v1120, 2147483648
        %v1128 = vxor.u32 %v1121, 2147483648
        %v1129 = vmul.f32 %v1123, 1.442695
        %v1130 = vpow.pop %v1129
        %v1131 = vmul.f32 %v1124, 1.442695
        %v1132 = vpow.pop %v1131
        %v1133 = vmul.f32 %v1125, 1.442695
        %v1134 = vpow.pop %v1133
        %v1135 = vmul.f32 %v1126, 1.442695
        %v1136 = vpow.pop %v1135
        %v1137 = vmul.f32 %v1127, 1.442695
        %v1138 = vpow.pop %v1137
        %v1139 = vmul.f32 %v1128, 1.442695
        %v1140 = vpow.pop %v1139
        %v1141 = vadd.f32 %v1130, 1.0
        %v1142 = vadd.f32 %v1132, 1.0
        %v1143 = vadd.f32 %v1134, 1.0
        %v1144 = vadd.f32 %v1136, 1.0
        %v1145 = vadd.f32 %v1138, 1.0
        %v1146 = vadd.f32 %v1140, 1.0
        %v1147 = vrcp.pop %v1141
        %v1148 = vmul.f32 1.0, %v1147
        %v1149 = vrcp.pop %v1142
        %v1150 = vmul.f32 1.0, %v1149
        %v1151 = vrcp.pop %v1143
        %v1152 = vmul.f32 1.0, %v1151
        %v1153 = vrcp.pop %v1144
        %v1154 = vmul.f32 1.0, %v1153
        %v1155 = vrcp.pop %v1145
        %v1156 = vmul.f32 1.0, %v1155
        %v1157 = vrcp.pop %v1146
        %v1158 = vmul.f32 1.0, %v1157
        %v1159 = vtanh.pop %v1118
        %v1160 = vtanh.pop %v1122
        %v1161 = vmul.f32 %v1150, %v1011
        %v1162 = vmul.f32 %v1156, %v1012
        %v1163 = vmul.f32 %v1148, %v1159
        %v1164 = vmul.f32 %v1154, %v1160
        %v1165 = vadd.f32 %v1161, %v1163
        %v1166 = vadd.f32 %v1162, %v1164
        %v1167 = vtanh.pop %v1165
        %v1168 = vtanh.pop %v1166
        %v1169 = vmul.f32 %v1152, %v1167
        %v1170 = vmul.f32 %v1158, %v1168
        %s1171 = smul.u32 4, 4
        %s1172 = smul.addr %s1171, 8
        %s1173 = scalar_lea.vmem [#allocation2], %s1172
        %v1174 = vld [vmem:[%s1173] sm:$0xff]
        %v1175 = vld [vmem:[%s1173 + $0x8] sm:$0xff]
        %v1176 = vld [vmem:[%s1173 + $0x10] sm:$0xff]
        %v1177 = vld [vmem:[%s1173 + $0x18] sm:$0xff]
        %v1178 = vld [vmem:[%s1173 + $0x20] sm:$0xff]
        %v1179 = vld [vmem:[%s1173 + $0x28] sm:$0xff]
        %v1180 = vld [vmem:[%s1173 + $0x30] sm:$0xff]
        %v1181 = vld [vmem:[%s1173 + $0x38] sm:$0xff]
        %v1182 = vpack.c.bf16 %v1170, %v1169
        %1183 = vmatprep.subr.bf16.mxu0 %v812
        %1184 = vmatpush1.bf16.msra.mxu0 %v811
        %1185 = vmatprep.subr.bf16.mxu0 %v816
        %1186 = vmatpush1.bf16.msra.mxu0 %v815
        %1187 = vmatprep.subr.bf16.mxu0 %v820
        %1188 = vmatpush1.bf16.msra.mxu0 %v819
        %1189 = vmatprep.subr.bf16.mxu0 %v824
        %1190 = vmatpush1.bf16.msra.mxu0 %v823
        %1191 = vmatprep.subr.bf16.mxu0 %v828
        %1192 = vmatpush1.bf16.msra.mxu0 %v827
        %1193 = vmatprep.subr.bf16.mxu0 %v832
        %1194 = vmatpush1.bf16.msra.mxu0 %v831
        %1195 = vmatprep.subr.bf16.mxu0 %v836
        %1196 = vmatpush1.bf16.msra.mxu0 %v835
        %1197 = vmatprep.subr.bf16.mxu0 %v840
        %1198 = vmatpush1.bf16.msra.mxu0 %v839
        %1199 = vmatprep.subr.bf16.mxu0 0
        %1200 = vmatpush1.bf16.msra.mxu0 0
        %1201 = vmatprep.subr.bf16.mxu0 0
        %1202 = vmatpush1.bf16.msra.mxu0 0
        %1203 = vmatprep.subr.bf16.mxu0 0
        %1204 = vmatpush1.bf16.msra.mxu0 0
        %1205 = vmatprep.subr.bf16.mxu0 0
        %1206 = vmatpush1.bf16.msra.mxu0 0
        %1207 = vmatprep.subr.bf16.mxu0 0
        %1208 = vmatpush1.bf16.msra.mxu0 0
        %1209 = vmatprep.subr.bf16.mxu0 0
        %1210 = vmatpush1.bf16.msra.mxu0 0
        %1211 = vmatprep.subr.bf16.mxu0 0
        %1212 = vmatpush1.bf16.msra.mxu0 0
        %1213 = vmatprep.subr.bf16.mxu0 0
        %1214 = vmatpush1.bf16.msra.mxu0 0
        %1215 = vmatprep.mubr.bf16.mxu0 0
        %1216 = vmatmul.mubr.bf16.gmra.mrb[0].mxu0 %v1182
        %v1217 = vpop.f32.mrb[0].mxu0
        %v1218 = vadd.f32 0.0, %v1217
        %v1219 = vpop.f32.mrb[0].mxu0
        %v1220 = vadd.f32 0.0, %v1219
        %v1221 = vpop.f32.mrb[0].mxu0
        %v1222 = vadd.f32 0.0, %v1221
        %v1223 = vpop.f32.mrb[0].mxu0
        %v1224 = vadd.f32 0.0, %v1223
        %1225 = vdwg.mxu0
        %1226 = vmatprep.subr.bf16.mxu0 %v814
        %1227 = vmatpush1.bf16.msra.mxu0 %v813
        %1228 = vmatprep.subr.bf16.mxu0 %v818
        %1229 = vmatpush1.bf16.msra.mxu0 %v817
        %1230 = vmatprep.subr.bf16.mxu0 %v822
        %1231 = vmatpush1.bf16.msra.mxu0 %v821
        %1232 = vmatprep.subr.bf16.mxu0 %v826
        %1233 = vmatpush1.bf16.msra.mxu0 %v825
        %1234 = vmatprep.subr.bf16.mxu0 %v830
        %1235 = vmatpush1.bf16.msra.mxu0 %v829
        %1236 = vmatprep.subr.bf16.mxu0 %v834
        %1237 = vmatpush1.bf16.msra.mxu0 %v833
        %1238 = vmatprep.subr.bf16.mxu0 %v838
        %1239 = vmatpush1.bf16.msra.mxu0 %v837
        %1240 = vmatprep.subr.bf16.mxu0 %v842
        %1241 = vmatpush1.bf16.msra.mxu0 %v841
        %1242 = vmatprep.subr.bf16.mxu0 0
        %1243 = vmatpush1.bf16.msra.mxu0 0
        %1244 = vmatprep.subr.bf16.mxu0 0
        %1245 = vmatpush1.bf16.msra.mxu0 0
        %1246 = vmatprep.subr.bf16.mxu0 0
        %1247 = vmatpush1.bf16.msra.mxu0 0
        %1248 = vmatprep.subr.bf16.mxu0 0
        %1249 = vmatpush1.bf16.msra.mxu0 0
        %1250 = vmatprep.subr.bf16.mxu0 0
        %1251 = vmatpush1.bf16.msra.mxu0 0
        %1252 = vmatprep.subr.bf16.mxu0 0
        %1253 = vmatpush1.bf16.msra.mxu0 0
        %1254 = vmatprep.subr.bf16.mxu0 0
        %1255 = vmatpush1.bf16.msra.mxu0 0
        %1256 = vmatprep.subr.bf16.mxu0 0
        %1257 = vmatpush1.bf16.msra.mxu0 0
        %1258 = vmatprep.mubr.bf16.mxu0 0
        %1259 = vmatmul.mubr.bf16.gmra.mrb[0].mxu0 %v1182
        %v1260 = vpop.f32.mrb[0].mxu0
        %v1261 = vadd.f32 0.0, %v1260
        %v1262 = vpop.f32.mrb[0].mxu0
        %v1263 = vadd.f32 0.0, %v1262
        %v1264 = vpop.f32.mrb[0].mxu0
        %v1265 = vadd.f32 0.0, %v1264
        %v1266 = vpop.f32.mrb[0].mxu0
        %v1267 = vadd.f32 0.0, %v1266
        %1268 = vdwg.mxu0
        %v1269 = vadd.f32 %v1174, %v1218
        %v1270 = vadd.f32 %v1175, %v1220
        %v1271 = vadd.f32 %v1176, %v1261
        %v1272 = vadd.f32 %v1177, %v1263
        %v1273 = vadd.f32 %v1178, %v1222
        %v1274 = vadd.f32 %v1179, %v1224
        %v1275 = vadd.f32 %v1180, %v1265
        %v1276 = vadd.f32 %v1181, %v1267
        %v1277 = vxor.u32 %v1269, 2147483648
        %v1278 = vxor.u32 %v1270, 2147483648
        %v1279 = vxor.u32 %v1271, 2147483648
        %v1280 = vxor.u32 %v1273, 2147483648
        %v1281 = vxor.u32 %v1274, 2147483648
        %v1282 = vxor.u32 %v1275, 2147483648
        %v1283 = vmul.f32 %v1277, 1.442695
        %v1284 = vpow.pop %v1283
        %v1285 = vmul.f32 %v1278, 1.442695
        %v1286 = vpow.pop %v1285
        %v1287 = vmul.f32 %v1279, 1.442695
        %v1288 = vpow.pop %v1287
        %v1289 = vmul.f32 %v1280, 1.442695
        %v1290 = vpow.pop %v1289
        %v1291 = vmul.f32 %v1281, 1.442695
        %v1292 = vpow.pop %v1291
        %v1293 = vmul.f32 %v1282, 1.442695
        %v1294 = vpow.pop %v1293
        %v1295 = vadd.f32 %v1284, 1.0
        %v1296 = vadd.f32 %v1286, 1.0
        %v1297 = vadd.f32 %v1288, 1.0
        %v1298 = vadd.f32 %v1290, 1.0
        %v1299 = vadd.f32 %v1292, 1.0
        %v1300 = vadd.f32 %v1294, 1.0
        %v1301 = vrcp.pop %v1295
        %v1302 = vmul.f32 1.0, %v1301
        %v1303 = vrcp.pop %v1296
        %v1304 = vmul.f32 1.0, %v1303
        %v1305 = vrcp.pop %v1297
        %v1306 = vmul.f32 1.0, %v1305
        %v1307 = vrcp.pop %v1298
        %v1308 = vmul.f32 1.0, %v1307
        %v1309 = vrcp.pop %v1299
        %v1310 = vmul.f32 1.0, %v1309
        %v1311 = vrcp.pop %v1300
        %v1312 = vmul.f32 1.0, %v1311
        %v1313 = vtanh.pop %v1272
        %v1314 = vtanh.pop %v1276
        %v1315 = vmul.f32 %v1304, %v1165
        %v1316 = vmul.f32 %v1310, %v1166
        %v1317 = vmul.f32 %v1302, %v1313
        %v1318 = vmul.f32 %v1308, %v1314
        %v1319 = vadd.f32 %v1315, %v1317
        %v1320 = vadd.f32 %v1316, %v1318
        %v1321 = vtanh.pop %v1319
        %v1322 = vtanh.pop %v1320
        %v1323 = vmul.f32 %v1306, %v1321
        %v1324 = vmul.f32 %v1312, %v1322
        %s1325 = smul.u32 6, 4
        %s1326 = smul.addr %s1325, 8
        %s1327 = scalar_lea.vmem [#allocation2], %s1326
        %v1328 = vld [vmem:[%s1327] sm:$0xff]
        %v1329 = vld [vmem:[%s1327 + $0x8] sm:$0xff]
        %v1330 = vld [vmem:[%s1327 + $0x10] sm:$0xff]
        %v1331 = vld [vmem:[%s1327 + $0x18] sm:$0xff]
        %v1332 = vld [vmem:[%s1327 + $0x20] sm:$0xff]
        %v1333 = vld [vmem:[%s1327 + $0x28] sm:$0xff]
        %v1334 = vld [vmem:[%s1327 + $0x30] sm:$0xff]
        %v1335 = vld [vmem:[%s1327 + $0x38] sm:$0xff]
        %v1336 = vpack.c.bf16 %v1324, %v1323
        %1337 = vmatprep.subr.bf16.mxu0 %v812
        %1338 = vmatpush1.bf16.msra.mxu0 %v811
        %1339 = vmatprep.subr.bf16.mxu0 %v816
        %1340 = vmatpush1.bf16.msra.mxu0 %v815
        %1341 = vmatprep.subr.bf16.mxu0 %v820
        %1342 = vmatpush1.bf16.msra.mxu0 %v819
        %1343 = vmatprep.subr.bf16.mxu0 %v824
        %1344 = vmatpush1.bf16.msra.mxu0 %v823
        %1345 = vmatprep.subr.bf16.mxu0 %v828
        %1346 = vmatpush1.bf16.msra.mxu0 %v827
        %1347 = vmatprep.subr.bf16.mxu0 %v832
        %1348 = vmatpush1.bf16.msra.mxu0 %v831
        %1349 = vmatprep.subr.bf16.mxu0 %v836
        %1350 = vmatpush1.bf16.msra.mxu0 %v835
        %1351 = vmatprep.subr.bf16.mxu0 %v840
        %1352 = vmatpush1.bf16.msra.mxu0 %v839
        %1353 = vmatprep.subr.bf16.mxu0 0
        %1354 = vmatpush1.bf16.msra.mxu0 0
        %1355 = vmatprep.subr.bf16.mxu0 0
        %1356 = vmatpush1.bf16.msra.mxu0 0
        %1357 = vmatprep.subr.bf16.mxu0 0
        %1358 = vmatpush1.bf16.msra.mxu0 0
        %1359 = vmatprep.subr.bf16.mxu0 0
        %1360 = vmatpush1.bf16.msra.mxu0 0
        %1361 = vmatprep.subr.bf16.mxu0 0
        %1362 = vmatpush1.bf16.msra.mxu0 0
        %1363 = vmatprep.subr.bf16.mxu0 0
        %1364 = vmatpush1.bf16.msra.mxu0 0
        %1365 = vmatprep.subr.bf16.mxu0 0
        %1366 = vmatpush1.bf16.msra.mxu0 0
        %1367 = vmatprep.subr.bf16.mxu0 0
        %1368 = vmatpush1.bf16.msra.mxu0 0
        %1369 = vmatprep.mubr.bf16.mxu0 0
        %1370 = vmatmul.mubr.bf16.gmra.mrb[0].mxu0 %v1336
        %v1371 = vpop.f32.mrb[0].mxu0
        %v1372 = vadd.f32 0.0, %v1371
        %v1373 = vpop.f32.mrb[0].mxu0
        %v1374 = vadd.f32 0.0, %v1373
        %v1375 = vpop.f32.mrb[0].mxu0
        %v1376 = vadd.f32 0.0, %v1375
        %v1377 = vpop.f32.mrb[0].mxu0
        %v1378 = vadd.f32 0.0, %v1377
        %1379 = vdwg.mxu0
        %1380 = vmatprep.subr.bf16.mxu0 %v814
        %1381 = vmatpush1.bf16.msra.mxu0 %v813
        %1382 = vmatprep.subr.bf16.mxu0 %v818
        %1383 = vmatpush1.bf16.msra.mxu0 %v817
        %1384 = vmatprep.subr.bf16.mxu0 %v822
        %1385 = vmatpush1.bf16.msra.mxu0 %v821
        %1386 = vmatprep.subr.bf16.mxu0 %v826
        %1387 = vmatpush1.bf16.msra.mxu0 %v825
        %1388 = vmatprep.subr.bf16.mxu0 %v830
        %1389 = vmatpush1.bf16.msra.mxu0 %v829
        %1390 = vmatprep.subr.bf16.mxu0 %v834
        %1391 = vmatpush1.bf16.msra.mxu0 %v833
        %1392 = vmatprep.subr.bf16.mxu0 %v838
        %1393 = vmatpush1.bf16.msra.mxu0 %v837
        %1394 = vmatprep.subr.bf16.mxu0 %v842
        %1395 = vmatpush1.bf16.msra.mxu0 %v841
        %1396 = vmatprep.subr.bf16.mxu0 0
        %1397 = vmatpush1.bf16.msra.mxu0 0
        %1398 = vmatprep.subr.bf16.mxu0 0
        %1399 = vmatpush1.bf16.msra.mxu0 0
        %1400 = vmatprep.subr.bf16.mxu0 0
        %1401 = vmatpush1.bf16.msra.mxu0 0
        %1402 = vmatprep.subr.bf16.mxu0 0
        %1403 = vmatpush1.bf16.msra.mxu0 0
        %1404 = vmatprep.subr.bf16.mxu0 0
        %1405 = vmatpush1.bf16.msra.mxu0 0
        %1406 = vmatprep.subr.bf16.mxu0 0
        %1407 = vmatpush1.bf16.msra.mxu0 0
        %1408 = vmatprep.subr.bf16.mxu0 0
        %1409 = vmatpush1.bf16.msra.mxu0 0
        %1410 = vmatprep.subr.bf16.mxu0 0
        %1411 = vmatpush1.bf16.msra.mxu0 0
        %1412 = vmatprep.mubr.bf16.mxu0 0
        %1413 = vmatmul.mubr.bf16.gmra.mrb[0].mxu0 %v1336
        %v1414 = vpop.f32.mrb[0].mxu0
        %v1415 = vadd.f32 0.0, %v1414
        %v1416 = vpop.f32.mrb[0].mxu0
        %v1417 = vadd.f32 0.0, %v1416
        %v1418 = vpop.f32.mrb[0].mxu0
        %v1419 = vadd.f32 0.0, %v1418
        %v1420 = vpop.f32.mrb[0].mxu0
        %v1421 = vadd.f32 0.0, %v1420
        %1422 = vdwg.mxu0
        %v1423 = vadd.f32 %v1328, %v1372
        %v1424 = vadd.f32 %v1329, %v1374
        %v1425 = vadd.f32 %v1330, %v1415
        %v1426 = vadd.f32 %v1331, %v1417
        %v1427 = vadd.f32 %v1332, %v1376
        %v1428 = vadd.f32 %v1333, %v1378
        %v1429 = vadd.f32 %v1334, %v1419
        %v1430 = vadd.f32 %v1335, %v1421
        %v1431 = vxor.u32 %v1423, 2147483648
        %v1432 = vxor.u32 %v1424, 2147483648
        %v1433 = vxor.u32 %v1425, 2147483648
        %v1434 = vxor.u32 %v1427, 2147483648
        %v1435 = vxor.u32 %v1428, 2147483648
        %v1436 = vxor.u32 %v1429, 2147483648
        %v1437 = vmul.f32 %v1431, 1.442695
        %v1438 = vpow.pop %v1437
        %v1439 = vmul.f32 %v1432, 1.442695
        %v1440 = vpow.pop %v1439
        %v1441 = vmul.f32 %v1433, 1.442695
        %v1442 = vpow.pop %v1441
        %v1443 = vmul.f32 %v1434, 1.442695
        %v1444 = vpow.pop %v1443
        %v1445 = vmul.f32 %v1435, 1.442695
        %v1446 = vpow.pop %v1445
        %v1447 = vmul.f32 %v1436, 1.442695
        %v1448 = vpow.pop %v1447
        %v1449 = vadd.f32 %v1438, 1.0
        %v1450 = vadd.f32 %v1440, 1.0
        %v1451 = vadd.f32 %v1442, 1.0
        %v1452 = vadd.f32 %v1444, 1.0
        %v1453 = vadd.f32 %v1446, 1.0
        %v1454 = vadd.f32 %v1448, 1.0
        %v1455 = vrcp.pop %v1449
        %v1456 = vmul.f32 1.0, %v1455
        %v1457 = vrcp.pop %v1450
        %v1458 = vmul.f32 1.0, %v1457
        %v1459 = vrcp.pop %v1451
        %v1460 = vmul.f32 1.0, %v1459
        %v1461 = vrcp.pop %v1452
        %v1462 = vmul.f32 1.0, %v1461
        %v1463 = vrcp.pop %v1453
        %v1464 = vmul.f32 1.0, %v1463
        %v1465 = vrcp.pop %v1454
        %v1466 = vmul.f32 1.0, %v1465
        %v1467 = vtanh.pop %v1426
        %v1468 = vtanh.pop %v1430
        %v1469 = vmul.f32 %v1458, %v1319
        %v1470 = vmul.f32 %v1464, %v1320
        %v1471 = vmul.f32 %v1456, %v1467
        %v1472 = vmul.f32 %v1462, %v1468
        %v1473 = vadd.f32 %v1469, %v1471
        %v1474 = vadd.f32 %v1470, %v1472
        %v1475 = vtanh.pop %v1473
        %v1476 = vtanh.pop %v1474
        %v1477 = vmul.f32 %v1460, %v1475
        %v1478 = vmul.f32 %v1466, %v1476
        %1479 = vst [vmem:[#allocation3] sm:$0xff] %v1477
        %1480 = vst [vmem:[#allocation3 + $0x8] sm:$0xff] %v1478
        %1481 = vst [vmem:[#allocation4] sm:$0xff] %v1473
        %1482 = vst [vmem:[#allocation4 + $0x8] sm:$0xff] %v1474
        %p1483 = scmp.eq.s32.totalorder %s20, 1
        // Predicated region
        $region53: #{tpu_custom_call.1} parent=35 // pred_check
          %p1484 = pneg %p1483
        $region54: #{tpu_custom_call.1} parent=35 // pred_check_branch
          %1486 = sbr.rel (%p1484) target = $region56
        $region55: #{tpu_custom_call.1} parent=35 // pred_region
          %1487 = vst [vmem:[#allocation11] sm:$0xff] %v1477
          %1488 = vst [vmem:[#allocation11 + $0x8] sm:$0xff] %v1478
        $region56: #{tpu_custom_call.1} parent=35 // pred_fallthru
          _
        // Predicated region
        $region57: #{tpu_custom_call.1} parent=35 // pred_check
          %p1489 = pneg %p122
        $region58: #{tpu_custom_call.1} parent=35 // pred_check_branch
          %1491 = sbr.rel (%p1489) target = $region60
        $region59: #{tpu_custom_call.1} parent=35 // pred_region
          %s1493 = ssub.s32 256, 256
          %1494 = vsyncadd [#allocation7], %s1493
          %s1495 = sshll.u32 [#allocation11], 4
          %s1496 = int_to_ptr.vmem [resolvable:$true] %s1495
          %1501 = dma.vmem_to_hbm [thread:$0]  %s1496, 256, %s4, [#allocation7], 128, 128, 8
        $region60: #{tpu_custom_call.1} parent=35 // pred_fallthru
          _
        // Predicated region
        $region61: #{tpu_custom_call.1} parent=35 // pred_check
          %p1502 = pneg %p122
        $region62: #{tpu_custom_call.1} parent=35 // pred_check_branch
          %1504 = sbr.rel (%p1502) target = $region64
        $region63: #{tpu_custom_call.1} parent=35 // pred_region
          %1505 = dma.done [#allocation7], 256
        $region64: #{tpu_custom_call.1} parent=35 // pred_fallthru
          _
      $region36: #{tpu_custom_call.1} parent=5 // pred_fallthru
        _
      %p1506 = scmp.le.s32.totalorder 2, %s15
      // Predicated region
      $region65: #{tpu_custom_call.1} parent=5 // pred_check
        %p1507 = pneg %p1506
      $region66: #{tpu_custom_call.1} parent=5 // pred_check_branch
        %1509 = sbr.rel (%p1507) target = $region68
      $region67: #{tpu_custom_call.1} parent=5 // pred_region
        %s1510 = ssub.s32 %s15, 2
      $region68: #{tpu_custom_call.1} parent=5 // pred_fallthru
        _
    $region6: #{tpu_custom_call.1} parent=1 // loop_footer
      %s19 = sadd.s32 1, %s15
    $region7: #{tpu_custom_call.1} parent=1 // loop_footer_branch
      %14 = sbr.rel target = $region3
    $region8: #{tpu_custom_call.1} parent=1 // loop_exit
      _
    %1511 = vsyncpa [#allocation6], 1
    %s1512 = scalar_lea.sflag [#allocation6], 1
    %1513 = vsyncpa %s1512, 1
    %1514 = vsyncpa [#allocation9], 1
    %1515 = vsyncpa [#allocation7], 1
    %s1516 = scalar_lea.sflag [#allocation7], 1
    %1517 = vsyncpa %s1516, 1

// kernel: tpu_custom_call.1
$region0: #{tpu_custom_call.1}
  #allocation0 [shape = 'u32[]', space=smem, size = 0x4, offset = 0x4, fixed_abs, tag = 'smem constant byte address 0x4 - core index']
  #allocation1 [shape = 'u32[144,128]{1,0:T(1,128)}', space=vmem, size = 0x12000, scoped, tag = 'internal scratch']
  #allocation2 [shape = 'f32[64,512]{1,0:T(8,128)}', space=vmem, size = 0x20000, scoped, tag = 'scratch operand']
  #allocation3 [shape = 'f32[16,128]{1,0:T(8,128)}', space=vmem, size = 0x2000, scoped, tag = 'scratch operand']
  #allocation4 [shape = 'f32[16,128]{1,0:T(8,128)}', space=vmem, size = 0x2000, scoped, tag = 'scratch operand']
  %s0 = inlined_call_operand.hbm [shape: bf16[128,128], index: 0, kind: input, shape index: {}]
  %s1 = inlined_call_operand.hbm [shape: bf16[128,512], index: 1, kind: input, shape index: {}]
  %s2 = inlined_call_operand.hbm [shape: bf16[128,512], index: 2, kind: input, shape index: {}]
  %s3 = inlined_call_operand.vmem [shape: f32[1,512], index: 3, kind: input, shape index: {}]
  %s4 = inlined_call_operand.hbm [shape: f32[16,128], index: 4, kind: output, shape index: {}]
  %s5 = sld [smem:[#allocation0]]
  $region69: #{tpu_custom_call.1} parent=0
    _
  %s7 = ssub.s32 1, %s5
  %s8 = scalar_select 0, %s7, %s5
  $region1: #{tpu_custom_call.1} parent=0
    #allocation5 [shape = 'u8[32768]{0}', space=vmem, size = 0x8000, scoped, tag = 'input window, operand 0']
    #allocation6 [shape = 's32[2]{0}', space=sflag, size = 0x8, scoped, tag = 'scoped memory for tpu_custom_call.1']
    #allocation7 [shape = 's32[2]{0}', space=sflag, size = 0x8, scoped, tag = 'scoped memory for tpu_custom_call.1']
    #allocation8 [shape = 'u8[131072]{0}', space=vmem, size = 0x20000, scoped, tag = 'input window, operand 1, single buffered']
    #allocation9 [shape = 's32[1]{0}', space=sflag, size = 0x4, scoped, tag = 'scoped memory for tpu_custom_call.1']
    #allocation10 [shape = 'u8[131072]{0}', space=vmem, size = 0x20000, scoped, tag = 'input window, operand 2, single buffered']
    #allocation11 [shape = 'u8[8192]{0}', space=vmem, size = 0x2000, scoped, tag = 'output window, operand 0, single buffered']
    %9 = vsyncpa [#allocation6], 0
    %s10 = scalar_lea.sflag [#allocation6], 1
    %11 = vsyncpa %s10, 0
    %12 = vsyncpa [#allocation9], 0
    %13 = vsyncpa [#allocation7], 0
    loop: start=0, step=1, limit=4
    $region2: #{tpu_custom_call.1} parent=1 // loop_pre_header
      _
    $region3: #{tpu_custom_call.1} parent=1 // loop_header
      %s15 = sphi 0, %s19
      %p16 = scmp.ge.s32.totalorder %s15, 4
      %s25 = sphi 0, %s27
      %s28 = sphi 0, %s25
      %s29 = sphi 0, %s28
      %s45 = sphi 0, %s29
      %s49 = sphi 0, %s49
      %s51 = sphi 0, %s49
      %s52 = sphi 0, %s51
      %s66 = sphi 0, %s52
      %s70 = sphi 0, %s70
      %s72 = sphi 0, %s70
      %s73 = sphi 0, %s72
      %s87 = sphi 0, %s73
      %s91 = sphi 0, %s91
      %s93 = sphi 0, %s91
      %s94 = sphi 0, %s93
      %s108 = sphi 0, %s94
      %s112 = sphi 0, %s112
      %s114 = sphi 0, %s112
      %s115 = sphi 0, %s114
      %s129 = sphi 0, %s115
    $region4: #{tpu_custom_call.1} parent=1 // loop_header_branch
      %18 = sbr.rel (%p16) target = $region8
    $region5: #{tpu_custom_call.1} parent=1 // loop_body
      %s20 = ssub.s32 %s15, 1
      %s21 = ssub.s32 %s15, 2
      %s22 = sadd.s32 %s15, 1
      %s23 = ssub.s32 %s15, %s22
      %p24 = scmp.eq.s32.totalorder %s23, 0
      %s26 = sadd.s32 %s25, 1
      %s27 = scalar_select %p24, %s25, %s26
      %p30 = pneg %p24
      %p31 = scmp.eq.s32.totalorder %s15, 1
      %p32 = por %p30, %p31
      %p33 = scmp.ne.s32.totalorder %s25, %s28
      %p34 = scmp.eq.s32.totalorder %s15, 0
      %p35 = por %p33, %p34
      %p36 = scmp.ne.s32.totalorder %s25, %s28
      %p37 = scmp.eq.s32.totalorder %s20, 1
      %p38 = por %p36, %p37
      %p39 = scmp.ne.s32.totalorder %s28, %s29
      %p40 = scmp.eq.s32.totalorder %s20, 0
      %p41 = por %p39, %p40
      %p42 = scmp.ne.s32.totalorder %s28, %s29
      %p43 = scmp.eq.s32.totalorder %s21, 1
      %p44 = por %p42, %p43
      %p46 = scmp.ne.s32.totalorder %s29, %s45
      %p47 = scmp.eq.s32.totalorder %s21, 0
      %p48 = por %p46, %p47
      %s50 = sadd.s32 %s49, 1
      %p53 = scmp.eq.s32.totalorder %s15, 1
      %p54 = scmp.ne.s32.totalorder %s49, %s51
      %p55 = scmp.eq.s32.totalorder %s15, 0
      %p56 = por %p54, %p55
      %p57 = scmp.ne.s32.totalorder %s49, %s51
      %p58 = scmp.eq.s32.totalorder %s20, 1
      %p59 = por %p57, %p58
      %p60 = scmp.ne.s32.totalorder %s51, %s52
      %p61 = scmp.eq.s32.totalorder %s20, 0
      %p62 = por %p60, %p61
      %p63 = scmp.ne.s32.totalorder %s51, %s52
      %p64 = scmp.eq.s32.totalorder %s21, 1
      %p65 = por %p63, %p64
      %p67 = scmp.ne.s32.totalorder %s52, %s66
      %p68 = scmp.eq.s32.totalorder %s21, 0
      %p69 = por %p67, %p68
      %s71 = sadd.s32 %s70, 1
      %p74 = scmp.eq.s32.totalorder %s15, 1
      %p75 = scmp.ne.s32.totalorder %s70, %s72
      %p76 = scmp.eq.s32.totalorder %s15, 0
      %p77 = por %p75, %p76
      %p78 = scmp.ne.s32.totalorder %s70, %s72
      %p79 = scmp.eq.s32.totalorder %s20, 1
      %p80 = por %p78, %p79
      %p81 = scmp.ne.s32.totalorder %s72, %s73
      %p82 = scmp.eq.s32.totalorder %s20, 0
      %p83 = por %p81, %p82
      %p84 = scmp.ne.s32.totalorder %s72, %s73
      %p85 = scmp.eq.s32.totalorder %s21, 1
      %p86 = por %p84, %p85
      %p88 = scmp.ne.s32.totalorder %s73, %s87
      %p89 = scmp.eq.s32.totalorder %s21, 0
      %p90 = por %p88, %p89
      %s92 = sadd.s32 %s91, 1
      %p95 = scmp.eq.s32.totalorder %s15, 1
      %p96 = scmp.ne.s32.totalorder %s91, %s93
      %p97 = scmp.eq.s32.totalorder %s15, 0
      %p98 = por %p96, %p97
      %p99 = scmp.ne.s32.totalorder %s91, %s93
      %p100 = scmp.eq.s32.totalorder %s20, 1
      %p101 = por %p99, %p100
      %p102 = scmp.ne.s32.totalorder %s93, %s94
      %p103 = scmp.eq.s32.totalorder %s20, 0
      %p104 = por %p102, %p103
      %p105 = scmp.ne.s32.totalorder %s93, %s94
      %p106 = scmp.eq.s32.totalorder %s21, 1
      %p107 = por %p105, %p106
      %p109 = scmp.ne.s32.totalorder %s94, %s108
      %p110 = scmp.eq.s32.totalorder %s21, 0
      %p111 = por %p109, %p110
      %s113 = sadd.s32 %s112, 1
      %p116 = scmp.eq.s32.totalorder %s15, 1
      %p117 = scmp.ne.s32.totalorder %s112, %s114
      %p118 = scmp.eq.s32.totalorder %s15, 0
      %p119 = por %p117, %p118
      %p120 = scmp.ne.s32.totalorder %s112, %s114
      %p121 = scmp.eq.s32.totalorder %s20, 1
      %p122 = por %p120, %p121
      %p123 = scmp.ne.s32.totalorder %s114, %s115
      %p124 = scmp.eq.s32.totalorder %s20, 0
      %p125 = por %p123, %p124
      %p126 = scmp.ne.s32.totalorder %s114, %s115
      %p127 = scmp.eq.s32.totalorder %s21, 1
      %p128 = por %p126, %p127
      %p130 = scmp.ne.s32.totalorder %s115, %s129
      %p131 = scmp.eq.s32.totalorder %s21, 0
      %p132 = por %p130, %p131
      %p133 = scmp.le.s32.totalorder 1, %s15
      %p134 = scmp.lt.s32.totalorder %s15, 3
      %p135 = pnand %p133, %p134
      %p136 = pneg %p135
      // Predicated region
      $region9: #{tpu_custom_call.1} parent=5 // pred_check
        _
      $region10: #{tpu_custom_call.1} parent=5 // pred_check_branch
        %138 = sbr.rel (%p135) target = $region12
      $region11: #{tpu_custom_call.1} parent=5 // pred_region
        %s139 = ssub.s32 %s15, 1
        // Predicated region
        $region13: #{tpu_custom_call.1} parent=11 // pred_check
          %p140 = pneg %p62
        $region14: #{tpu_custom_call.1} parent=11 // pred_check_branch
          %142 = sbr.rel (%p140) target = $region16
        $region15: #{tpu_custom_call.1} parent=11 // pred_region
          %s144 = ssub.s32 4096, 4096
          %145 = vsyncadd [#allocation9], %s144
          %s146 = sshll.u32 [#allocation8], 4
          %s147 = int_to_ptr.vmem [resolvable:$true] %s146
          %152 = dma.hbm_to_vmem [thread:$0]  %s1, 4096, %s147, [#allocation9], 256, 256, 16
        $region16: #{tpu_custom_call.1} parent=11 // pred_fallthru
          _
        // Predicated region
        $region17: #{tpu_custom_call.1} parent=11 // pred_check
          %p153 = pneg %p83
        $region18: #{tpu_custom_call.1} parent=11 // pred_check_branch
          %155 = sbr.rel (%p153) target = $region20
        $region19: #{tpu_custom_call.1} parent=11 // pred_region
          %s157 = ssub.s32 4096, 4096
          %158 = vsyncadd [#allocation9], %s157
          %s159 = sshll.u32 [#allocation10], 4
          %s160 = int_to_ptr.vmem [resolvable:$true] %s159
          %165 = dma.hbm_to_vmem [thread:$0]  %s2, 4096, %s160, [#allocation9], 256, 256, 16
        $region20: #{tpu_custom_call.1} parent=11 // pred_fallthru
          _
        // Predicated region
        $region21: #{tpu_custom_call.1} parent=11 // pred_check
          %p166 = pneg %p104
        $region22: #{tpu_custom_call.1} parent=11 // pred_check_branch
          %168 = sbr.rel (%p166) target = $region24
        $region23: #{tpu_custom_call.1} parent=11 // pred_region
          _
        $region24: #{tpu_custom_call.1} parent=11 // pred_fallthru
          _
      $region12: #{tpu_custom_call.1} parent=5 // pred_fallthru
        _
      %p169 = scmp.lt.s32.totalorder %s15, 2
      // Predicated region
      $region25: #{tpu_custom_call.1} parent=5 // pred_check
        %p170 = pneg %p169
      $region26: #{tpu_custom_call.1} parent=5 // pred_check_branch
        %172 = sbr.rel (%p170) target = $region28
      $region27: #{tpu_custom_call.1} parent=5 // pred_region
        // Predicated region
        $region29: #{tpu_custom_call.1} parent=27 // pred_check
          %p173 = pneg %p35
        $region30: #{tpu_custom_call.1} parent=27 // pred_check_branch
          %175 = sbr.rel (%p173) target = $region32
        $region31: #{tpu_custom_call.1} parent=27 // pred_region
          %s176 = sand.u32 %s25, 1
          %s177 = scalar_lea.sflag [#allocation6], %s176
          %s178 = sand.u32 %s25, 1
          %s179 = smul.addr %s178, 32
          %s180 = scalar_lea.vmem [#allocation5], %s179
          %s181 = smul.u32 8, %s15
          %s183 = ssub.s32 512, 512
          %184 = vsyncadd %s177, %s183
          %s185 = smul.addr %s181, 64
          %s186 = scalar_lea.hbm %s0, %s185
          %s187 = sshll.u32 %s180, 4
          %s188 = int_to_ptr.vmem [resolvable:$true] %s187
          %193 = dma.hbm_to_vmem [thread:$0]  %s186, 512, %s188, %s177, 64, 64, 4
        $region32: #{tpu_custom_call.1} parent=27 // pred_fallthru
          _
      $region28: #{tpu_custom_call.1} parent=5 // pred_fallthru
        _
      %p194 = scmp.le.s32.totalorder 1, %s15
      %p195 = scmp.lt.s32.totalorder %s15, 3
      %p196 = pnand %p194, %p195
      %p197 = pneg %p196
      // Predicated region
      $region33: #{tpu_custom_call.1} parent=5 // pred_check
        _
      $region34: #{tpu_custom_call.1} parent=5 // pred_check_branch
        %199 = sbr.rel (%p196) target = $region36
      $region35: #{tpu_custom_call.1} parent=5 // pred_region
        %s200 = ssub.s32 %s15, 1
        %s201 = sand.u32 %s28, 1
        %s202 = scalar_lea.sflag [#allocation6], %s201
        %s203 = sand.u32 %s28, 1
        %s204 = smul.addr %s203, 32
        %s205 = scalar_lea.vmem [#allocation5], %s204
        // Predicated region
        $region37: #{tpu_custom_call.1} parent=35 // pred_check
          %p206 = pneg %p41
        $region38: #{tpu_custom_call.1} parent=35 // pred_check_branch
          %208 = sbr.rel (%p206) target = $region40
        $region39: #{tpu_custom_call.1} parent=35 // pred_region
          %209 = dma.done %s202, 512
        $region40: #{tpu_custom_call.1} parent=35 // pred_fallthru
          _
        // Predicated region
        $region41: #{tpu_custom_call.1} parent=35 // pred_check
          %p210 = pneg %p62
        $region42: #{tpu_custom_call.1} parent=35 // pred_check_branch
          %212 = sbr.rel (%p210) target = $region44
        $region43: #{tpu_custom_call.1} parent=35 // pred_region
          %213 = dma.done [#allocation9], 4096
        $region44: #{tpu_custom_call.1} parent=35 // pred_fallthru
          _
        // Predicated region
        $region45: #{tpu_custom_call.1} parent=35 // pred_check
          %p214 = pneg %p83
        $region46: #{tpu_custom_call.1} parent=35 // pred_check_branch
          %216 = sbr.rel (%p214) target = $region48
        $region47: #{tpu_custom_call.1} parent=35 // pred_region
          %217 = dma.done [#allocation9], 4096
        $region48: #{tpu_custom_call.1} parent=35 // pred_fallthru
          _
        %s218 = sand.u32 %s28, 1
        %s219 = scalar_lea.sflag [#allocation6], %s218
        %s220 = sand.u32 %s28, 1
        %s221 = smul.addr %s220, 32
        %s222 = scalar_lea.vmem [#allocation5], %s221
        %p223 = pneg %p41
        %p224 = pneg %p38
        %p225 = pneg %p62
        %p226 = pneg %p59
        %p227 = pneg %p83
        %p228 = pneg %p80
        %p229 = pneg %p104
        %p230 = pneg %p101
        %p231 = pneg %p125
        %p232 = pneg %p122
        %s233 = smul.u32 8, %s20
        %p235 = scmp.eq.s32.totalorder %s20, 0
        // Predicated region
        $region49: #{tpu_custom_call.1} parent=35 // pred_check
          %p236 = pneg %p235
        $region50: #{tpu_custom_call.1} parent=35 // pred_check_branch
          %238 = sbr.rel (%p236) target = $region52
        $region51: #{tpu_custom_call.1} parent=35 // pred_region
          %239 = vst [vmem:[#allocation3] sm:$0xff] 0.0
          %240 = vst [vmem:[#allocation3 + $0x8] sm:$0xff] 0.0
          %241 = vst [vmem:[#allocation4] sm:$0xff] 0.0
          %242 = vst [vmem:[#allocation4 + $0x8] sm:$0xff] 0.0
        $region52: #{tpu_custom_call.1} parent=35 // pred_fallthru
          _
        %v243 = vld [vmem:[%s205] sm:$0xf]
        %v244 = vld [vmem:[%s205 + $0x4] sm:$0xf]
        %v245 = vld [vmem:[%s205 + $0x8] sm:$0xf]
        %v246 = vld [vmem:[%s205 + $0xc] sm:$0xf]
        %v247 = vld [vmem:[%s205 + $0x10] sm:$0xf]
        %v248 = vld [vmem:[%s205 + $0x14] sm:$0xf]
        %v249 = vld [vmem:[%s205 + $0x18] sm:$0xf]
        %v250 = vld [vmem:[%s205 + $0x1c] sm:$0xf]
        %v251 = vld [vmem:[#allocation8] sm:$0xff]
        %v252 = vld [vmem:[#allocation8 + $0x8] sm:$0xff]
        %v253 = vld [vmem:[#allocation8 + $0x10] sm:$0xff]
        %v254 = vld [vmem:[#allocation8 + $0x18] sm:$0xff]
        %v255 = vld [vmem:[#allocation8 + $0x20] sm:$0xff]
        %v256 = vld [vmem:[#allocation8 + $0x28] sm:$0xff]
        %v257 = vld [vmem:[#allocation8 + $0x30] sm:$0xff]
        %v258 = vld [vmem:[#allocation8 + $0x38] sm:$0xff]
        %v259 = vld [vmem:[#allocation8 + $0x40] sm:$0xff]
        %v260 = vld [vmem:[#allocation8 + $0x48] sm:$0xff]
        %v261 = vld [vmem:[#allocation8 + $0x50] sm:$0xff]
        %v262 = vld [vmem:[#allocation8 + $0x58] sm:$0xff]
        %v263 = vld [vmem:[#allocation8 + $0x60] sm:$0xff]
        %v264 = vld [vmem:[#allocation8 + $0x68] sm:$0xff]
        %v265 = vld [vmem:[#allocation8 + $0x70] sm:$0xff]
        %v266 = vld [vmem:[#allocation8 + $0x78] sm:$0xff]
        %v267 = vld [vmem:[#allocation8 + $0x80] sm:$0xff]
        %v268 = vld [vmem:[#allocation8 + $0x88] sm:$0xff]
        %v269 = vld [vmem:[#allocation8 + $0x90] sm:$0xff]
        %v270 = vld [vmem:[#allocation8 + $0x98] sm:$0xff]
        %v271 = vld [vmem:[#allocation8 + $0xa0] sm:$0xff]
        %v272 = vld [vmem:[#allocation8 + $0xa8] sm:$0xff]
        %v273 = vld [vmem:[#allocation8 + $0xb0] sm:$0xff]
        %v274 = vld [vmem:[#allocation8 + $0xb8] sm:$0xff]
        %v275 = vld [vmem:[#allocation8 + $0xc0] sm:$0xff]
        %v276 = vld [vmem:[#allocation8 + $0xc8] sm:$0xff]
        %v277 = vld [vmem:[#allocation8 + $0xd0] sm:$0xff]
        %v278 = vld [vmem:[#allocation8 + $0xd8] sm:$0xff]
        %v279 = vld [vmem:[#allocation8 + $0xe0] sm:$0xff]
        %v280 = vld [vmem:[#allocation8 + $0xe8] sm:$0xff]
        %v281 = vld [vmem:[#allocation8 + $0xf0] sm:$0xff]
        %v282 = vld [vmem:[#allocation8 + $0xf8] sm:$0xff]
        %v283 = vld [vmem:[%s3] sm:$0xf]
        %v285 = vlaneseq
        %v286 = vshrl.u32 %v285, 7
        %v287 = vsub.s32 0, %v286
        %v288 = vrot.slane %v283, %v287
        %v289 = vlaneseq
        %v290 = vshrl.u32 %v289, 7
        %v291 = vsub.s32 1, %v290
        %v292 = vrot.slane %v283, %v291
        %v293 = vlaneseq
        %v294 = vshrl.u32 %v293, 7
        %v295 = vsub.s32 2, %v294
        %v296 = vrot.slane %v283, %v295
        %v297 = vlaneseq
        %v298 = vshrl.u32 %v297, 7
        %v299 = vsub.s32 3, %v298
        %v300 = vrot.slane %v283, %v299
        %v313 = vunpack.c.l.b16 %v243
        %v314 = vunpack.c.l.b16 %v244
        %v315 = vunpack.c.l.b16 %v245
        %v316 = vunpack.c.l.b16 %v246
        %v317 = vunpack.c.l.b16 %v247
        %v318 = vunpack.c.l.b16 %v248
        %v319 = vunpack.c.l.b16 %v249
        %v320 = vunpack.c.l.b16 %v250
        %v321 = vpack.c.b16 %v314, %v313
        %v322 = vpack.c.b16 %v316, %v315
        %v323 = vpack.c.b16 %v318, %v317
        %v324 = vpack.c.b16 %v320, %v319
        %v361 = vunpack.c.l.b16 %v251
        %v362 = vunpack.c.h.b16 %v251
        %v363 = vunpack.c.l.b16 %v252
        %v364 = vunpack.c.h.b16 %v252
        %v365 = vunpack.c.l.b16 %v253
        %v366 = vunpack.c.h.b16 %v253
        %v367 = vunpack.c.l.b16 %v254
        %v368 = vunpack.c.h.b16 %v254
        %v369 = vunpack.c.l.b16 %v255
        %v370 = vunpack.c.h.b16 %v255
        %v371 = vunpack.c.l.b16 %v256
        %v372 = vunpack.c.h.b16 %v256
        %v373 = vunpack.c.l.b16 %v257
        %v374 = vunpack.c.h.b16 %v257
        %v375 = vunpack.c.l.b16 %v258
        %v376 = vunpack.c.h.b16 %v258
        %v377 = vunpack.c.l.b16 %v259
        %v378 = vunpack.c.h.b16 %v259
        %v379 = vunpack.c.l.b16 %v260
        %v380 = vunpack.c.h.b16 %v260
        %v381 = vunpack.c.l.b16 %v261
        %v382 = vunpack.c.h.b16 %v261
        %v383 = vunpack.c.l.b16 %v262
        %v384 = vunpack.c.h.b16 %v262
        %v385 = vunpack.c.l.b16 %v263
        %v386 = vunpack.c.h.b16 %v263
        %v387 = vunpack.c.l.b16 %v264
        %v388 = vunpack.c.h.b16 %v264
        %v389 = vunpack.c.l.b16 %v265
        %v390 = vunpack.c.h.b16 %v265
        %v391 = vunpack.c.l.b16 %v266
        %v392 = vunpack.c.h.b16 %v266
        %v393 = vunpack.c.l.b16 %v267
        %v394 = vunpack.c.h.b16 %v267
        %v395 = vunpack.c.l.b16 %v268
        %v396 = vunpack.c.h.b16 %v268
        %v397 = vunpack.c.l.b16 %v269
        %v398 = vunpack.c.h.b16 %v269
        %v399 = vunpack.c.l.b16 %v270
        %v400 = vunpack.c.h.b16 %v270
        %v401 = vunpack.c.l.b16 %v271
        %v402 = vunpack.c.h.b16 %v271
        %v403 = vunpack.c.l.b16 %v272
        %v404 = vunpack.c.h.b16 %v272
        %v405 = vunpack.c.l.b16 %v273
        %v406 = vunpack.c.h.b16 %v273
        %v407 = vunpack.c.l.b16 %v274
        %v408 = vunpack.c.h.b16 %v274
        %v409 = vunpack.c.l.b16 %v275
        %v410 = vunpack.c.h.b16 %v275
        %v411 = vunpack.c.l.b16 %v276
        %v412 = vunpack.c.h.b16 %v276
        %v413 = vunpack.c.l.b16 %v277
        %v414 = vunpack.c.h.b16 %v277
        %v415 = vunpack.c.l.b16 %v278
        %v416 = vunpack.c.h.b16 %v278
        %v417 = vunpack.c.l.b16 %v279
        %v418 = vunpack.c.h.b16 %v279
        %v419 = vunpack.c.l.b16 %v280
        %v420 = vunpack.c.h.b16 %v280
        %v421 = vunpack.c.l.b16 %v281
        %v422 = vunpack.c.h.b16 %v281
        %v423 = vunpack.c.l.b16 %v282
        %v424 = vunpack.c.h.b16 %v282
        %v425 = vpack.c.b16 %v365, %v361
        %v426 = vpack.c.b16 %v366, %v362
        %v427 = vpack.c.b16 %v367, %v363
        %v428 = vpack.c.b16 %v368, %v364
        %v429 = vpack.c.b16 %v373, %v369
        %v430 = vpack.c.b16 %v374, %v370
        %v431 = vpack.c.b16 %v375, %v371
        %v432 = vpack.c.b16 %v376, %v372
        %v433 = vpack.c.b16 %v381, %v377
        %v434 = vpack.c.b16 %v382, %v378
        %v435 = vpack.c.b16 %v383, %v379
        %v436 = vpack.c.b16 %v384, %v380
        %v437 = vpack.c.b16 %v389, %v385
        %v438 = vpack.c.b16 %v390, %v386
        %v439 = vpack.c.b16 %v391, %v387
        %v440 = vpack.c.b16 %v392, %v388
        %v441 = vpack.c.b16 %v397, %v393
        %v442 = vpack.c.b16 %v398, %v394
        %v443 = vpack.c.b16 %v399, %v395
        %v444 = vpack.c.b16 %v400, %v396
        %v445 = vpack.c.b16 %v405, %v401
        %v446 = vpack.c.b16 %v406, %v402
        %v447 = vpack.c.b16 %v407, %v403
        %v448 = vpack.c.b16 %v408, %v404
        %v449 = vpack.c.b16 %v413, %v409
        %v450 = vpack.c.b16 %v414, %v410
        %v451 = vpack.c.b16 %v415, %v411
        %v452 = vpack.c.b16 %v416, %v412
        %v453 = vpack.c.b16 %v421, %v417
        %v454 = vpack.c.b16 %v422, %v418
        %v455 = vpack.c.b16 %v423, %v419
        %v456 = vpack.c.b16 %v424, %v420
        %489 = vmatprep.subr.bf16.mxu0 %v426
        %490 = vmatpush1.bf16.msra.mxu0 %v425
        %491 = vmatprep.subr.bf16.mxu0 %v430
        %492 = vmatpush1.bf16.msra.mxu0 %v429
        %493 = vmatprep.subr.bf16.mxu0 %v434
        %494 = vmatpush1.bf16.msra.mxu0 %v433
        %495 = vmatprep.subr.bf16.mxu0 %v438
        %496 = vmatpush1.bf16.msra.mxu0 %v437
        %497 = vmatprep.subr.bf16.mxu0 %v442
        %498 = vmatpush1.bf16.msra.mxu0 %v441
        %499 = vmatprep.subr.bf16.mxu0 %v446
        %500 = vmatpush1.bf16.msra.mxu0 %v445
        %501 = vmatprep.subr.bf16.mxu0 %v450
        %502 = vmatpush1.bf16.msra.mxu0 %v449
        %503 = vmatprep.subr.bf16.mxu0 %v454
        %504 = vmatpush1.bf16.msra.mxu0 %v453
        %505 = vmatprep.subr.bf16.mxu0 0
        %506 = vmatpush1.bf16.msra.mxu0 0
        %507 = vmatprep.subr.bf16.mxu0 0
        %508 = vmatpush1.bf16.msra.mxu0 0
        %509 = vmatprep.subr.bf16.mxu0 0
        %510 = vmatpush1.bf16.msra.mxu0 0
        %511 = vmatprep.subr.bf16.mxu0 0
        %512 = vmatpush1.bf16.msra.mxu0 0
        %513 = vmatprep.subr.bf16.mxu0 0
        %514 = vmatpush1.bf16.msra.mxu0 0
        %515 = vmatprep.subr.bf16.mxu0 0
        %516 = vmatpush1.bf16.msra.mxu0 0
        %517 = vmatprep.subr.bf16.mxu0 0
        %518 = vmatpush1.bf16.msra.mxu0 0
        %519 = vmatprep.subr.bf16.mxu0 0
        %520 = vmatpush1.bf16.msra.mxu0 0
        %521 = vmatprep.mubr.bf16.mxu0 0
        %522 = vmatmul.mubr.bf16.gmra.mrb[0].mxu0 %v321
        %v523 = vpop.f32.mrb[0].mxu0
        %v524 = vadd.f32 %v288, %v523
        %v525 = vpop.f32.mrb[0].mxu0
        %v526 = vadd.f32 %v292, %v525
        %v527 = vpop.f32.mrb[0].mxu0
        %v528 = vadd.f32 %v288, %v527
        %v529 = vpop.f32.mrb[0].mxu0
        %v530 = vadd.f32 %v292, %v529
        %531 = vmatprep.mubr.bf16.mxu0 0
        %532 = vmatmul.mubr.bf16.gmra.mrb[0].mxu0 %v322
        %v533 = vpop.f32.mrb[0].mxu0
        %v534 = vadd.f32 %v288, %v533
        %v535 = vpop.f32.mrb[0].mxu0
        %v536 = vadd.f32 %v292, %v535
        %v537 = vpop.f32.mrb[0].mxu0
        %v538 = vadd.f32 %v288, %v537
        %v539 = vpop.f32.mrb[0].mxu0
        %v540 = vadd.f32 %v292, %v539
        %541 = vmatprep.mubr.bf16.mxu0 0
        %542 = vmatmul.mubr.bf16.gmra.mrb[0].mxu0 %v323
        %v543 = vpop.f32.mrb[0].mxu0
        %v544 = vadd.f32 %v288, %v543
        %v545 = vpop.f32.mrb[0].mxu0
        %v546 = vadd.f32 %v292, %v545
        %v547 = vpop.f32.mrb[0].mxu0
        %v548 = vadd.f32 %v288, %v547
        %v549 = vpop.f32.mrb[0].mxu0
        %v550 = vadd.f32 %v292, %v549
        %551 = vmatprep.mubr.bf16.mxu0 0
        %552 = vmatmul.mubr.bf16.gmra.mrb[0].mxu0 %v324
        %v553 = vpop.f32.mrb[0].mxu0
        %v554 = vadd.f32 %v288, %v553
        %v555 = vpop.f32.mrb[0].mxu0
        %v556 = vadd.f32 %v292, %v555
        %v557 = vpop.f32.mrb[0].mxu0
        %v558 = vadd.f32 %v288, %v557
        %v559 = vpop.f32.mrb[0].mxu0
        %v560 = vadd.f32 %v292, %v559
        %561 = vdwg.mxu0
        %562 = vmatprep.subr.bf16.mxu0 %v428
        %563 = vmatpush1.bf16.msra.mxu0 %v427
        %564 = vmatprep.subr.bf16.mxu0 %v432
        %565 = vmatpush1.bf16.msra.mxu0 %v431
        %566 = vmatprep.subr.bf16.mxu0 %v436
        %567 = vmatpush1.bf16.msra.mxu0 %v435
        %568 = vmatprep.subr.bf16.mxu0 %v440
        %569 = vmatpush1.bf16.msra.mxu0 %v439
        %570 = vmatprep.subr.bf16.mxu0 %v444
        %571 = vmatpush1.bf16.msra.mxu0 %v443
        %572 = vmatprep.subr.bf16.mxu0 %v448
        %573 = vmatpush1.bf16.msra.mxu0 %v447
        %574 = vmatprep.subr.bf16.mxu0 %v452
        %575 = vmatpush1.bf16.msra.mxu0 %v451
        %576 = vmatprep.subr.bf16.mxu0 %v456
        %577 = vmatpush1.bf16.msra.mxu0 %v455
        %578 = vmatprep.subr.bf16.mxu0 0
        %579 = vmatpush1.bf16.msra.mxu0 0
        %580 = vmatprep.subr.bf16.mxu0 0
        %581 = vmatpush1.bf16.msra.mxu0 0
        %582 = vmatprep.subr.bf16.mxu0 0
        %583 = vmatpush1.bf16.msra.mxu0 0
        %584 = vmatprep.subr.bf16.mxu0 0
        %585 = vmatpush1.bf16.msra.mxu0 0
        %586 = vmatprep.subr.bf16.mxu0 0
        %587 = vmatpush1.bf16.msra.mxu0 0
        %588 = vmatprep.subr.bf16.mxu0 0
        %589 = vmatpush1.bf16.msra.mxu0 0
        %590 = vmatprep.subr.bf16.mxu0 0
        %591 = vmatpush1.bf16.msra.mxu0 0
        %592 = vmatprep.subr.bf16.mxu0 0
        %593 = vmatpush1.bf16.msra.mxu0 0
        %594 = vmatprep.mubr.bf16.mxu0 0
        %595 = vmatmul.mubr.bf16.gmra.mrb[0].mxu0 %v321
        %v596 = vpop.f32.mrb[0].mxu0
        %v597 = vadd.f32 %v296, %v596
        %v598 = vpop.f32.mrb[0].mxu0
        %v599 = vadd.f32 %v300, %v598
        %v600 = vpop.f32.mrb[0].mxu0
        %v601 = vadd.f32 %v296, %v600
        %v602 = vpop.f32.mrb[0].mxu0
        %v603 = vadd.f32 %v300, %v602
        %604 = vmatprep.mubr.bf16.mxu0 0
        %605 = vmatmul.mubr.bf16.gmra.mrb[0].mxu0 %v322
        %v606 = vpop.f32.mrb[0].mxu0
        %v607 = vadd.f32 %v296, %v606
        %v608 = vpop.f32.mrb[0].mxu0
        %v609 = vadd.f32 %v300, %v608
        %v610 = vpop.f32.mrb[0].mxu0
        %v611 = vadd.f32 %v296, %v610
        %v612 = vpop.f32.mrb[0].mxu0
        %v613 = vadd.f32 %v300, %v612
        %614 = vmatprep.mubr.bf16.mxu0 0
        %615 = vmatmul.mubr.bf16.gmra.mrb[0].mxu0 %v323
        %v616 = vpop.f32.mrb[0].mxu0
        %v617 = vadd.f32 %v296, %v616
        %v618 = vpop.f32.mrb[0].mxu0
        %v619 = vadd.f32 %v300, %v618
        %v620 = vpop.f32.mrb[0].mxu0
        %v621 = vadd.f32 %v296, %v620
        %v622 = vpop.f32.mrb[0].mxu0
        %v623 = vadd.f32 %v300, %v622
        %624 = vmatprep.mubr.bf16.mxu0 0
        %625 = vmatmul.mubr.bf16.gmra.mrb[0].mxu0 %v324
        %v626 = vpop.f32.mrb[0].mxu0
        %v627 = vadd.f32 %v296, %v626
        %v628 = vpop.f32.mrb[0].mxu0
        %v629 = vadd.f32 %v300, %v628
        %v630 = vpop.f32.mrb[0].mxu0
        %v631 = vadd.f32 %v296, %v630
        %v632 = vpop.f32.mrb[0].mxu0
        %v633 = vadd.f32 %v300, %v632
        %634 = vdwg.mxu0
        %635 = vst [vmem:[#allocation2] sm:$0xff] %v524
        %636 = vst [vmem:[#allocation2 + $0x8] sm:$0xff] %v526
        %637 = vst [vmem:[#allocation2 + $0x10] sm:$0xff] %v597
        %638 = vst [vmem:[#allocation2 + $0x18] sm:$0xff] %v599
        %639 = vst [vmem:[#allocation2 + $0x20] sm:$0xff] %v528
        %640 = vst [vmem:[#allocation2 + $0x28] sm:$0xff] %v530
        %641 = vst [vmem:[#allocation2 + $0x30] sm:$0xff] %v601
        %642 = vst [vmem:[#allocation2 + $0x38] sm:$0xff] %v603
        %643 = vst [vmem:[#allocation2 + $0x40] sm:$0xff] %v534
        %644 = vst [vmem:[#allocation2 + $0x48] sm:$0xff] %v536
        %645 = vst [vmem:[#allocation2 + $0x50] sm:$0xff] %v607
        %646 = vst [vmem:[#allocation2 + $0x58] sm:$0xff] %v609
        %647 = vst [vmem:[#allocation2 + $0x60] sm:$0xff] %v538
        %648 = vst [vmem:[#allocation2 + $0x68] sm:$0xff] %v540
        %649 = vst [vmem:[#allocation2 + $0x70] sm:$0xff] %v611
        %650 = vst [vmem:[#allocation2 + $0x78] sm:$0xff] %v613
        %651 = vst [vmem:[#allocation2 + $0x80] sm:$0xff] %v544
        %652 = vst [vmem:[#allocation2 + $0x88] sm:$0xff] %v546
        %653 = vst [vmem:[#allocation2 + $0x90] sm:$0xff] %v617
        %654 = vst [vmem:[#allocation2 + $0x98] sm:$0xff] %v619
        %655 = vst [vmem:[#allocation2 + $0xa0] sm:$0xff] %v548
        %656 = vst [vmem:[#allocation2 + $0xa8] sm:$0xff] %v550
        %657 = vst [vmem:[#allocation2 + $0xb0] sm:$0xff] %v621
        %658 = vst [vmem:[#allocation2 + $0xb8] sm:$0xff] %v623
        %659 = vst [vmem:[#allocation2 + $0xc0] sm:$0xff] %v554
        %660 = vst [vmem:[#allocation2 + $0xc8] sm:$0xff] %v556
        %661 = vst [vmem:[#allocation2 + $0xd0] sm:$0xff] %v627
        %662 = vst [vmem:[#allocation2 + $0xd8] sm:$0xff] %v629
        %663 = vst [vmem:[#allocation2 + $0xe0] sm:$0xff] %v558
        %664 = vst [vmem:[#allocation2 + $0xe8] sm:$0xff] %v560
        %665 = vst [vmem:[#allocation2 + $0xf0] sm:$0xff] %v631
        %666 = vst [vmem:[#allocation2 + $0xf8] sm:$0xff] %v633
        %v667 = vld [vmem:[#allocation10] sm:$0xff]
        %v668 = vld [vmem:[#allocation10 + $0x8] sm:$0xff]
        %v669 = vld [vmem:[#allocation10 + $0x10] sm:$0xff]
        %v670 = vld [vmem:[#allocation10 + $0x18] sm:$0xff]
        %v671 = vld [vmem:[#allocation10 + $0x20] sm:$0xff]
        %v672 = vld [vmem:[#allocation10 + $0x28] sm:$0xff]
        %v673 = vld [vmem:[#allocation10 + $0x30] sm:$0xff]
        %v674 = vld [vmem:[#allocation10 + $0x38] sm:$0xff]
        %v675 = vld [vmem:[#allocation10 + $0x40] sm:$0xff]
        %v676 = vld [vmem:[#allocation10 + $0x48] sm:$0xff]
        %v677 = vld [vmem:[#allocation10 + $0x50] sm:$0xff]
        %v678 = vld [vmem:[#allocation10 + $0x58] sm:$0xff]
        %v679 = vld [vmem:[#allocation10 + $0x60] sm:$0xff]
        %v680 = vld [vmem:[#allocation10 + $0x68] sm:$0xff]
        %v681 = vld [vmem:[#allocation10 + $0x70] sm:$0xff]
        %v682 = vld [vmem:[#allocation10 + $0x78] sm:$0xff]
        %v683 = vld [vmem:[#allocation10 + $0x80] sm:$0xff]
        %v684 = vld [vmem:[#allocation10 + $0x88] sm:$0xff]
        %v685 = vld [vmem:[#allocation10 + $0x90] sm:$0xff]
        %v686 = vld [vmem:[#allocation10 + $0x98] sm:$0xff]
        %v687 = vld [vmem:[#allocation10 + $0xa0] sm:$0xff]
        %v688 = vld [vmem:[#allocation10 + $0xa8] sm:$0xff]
        %v689 = vld [vmem:[#allocation10 + $0xb0] sm:$0xff]
        %v690 = vld [vmem:[#allocation10 + $0xb8] sm:$0xff]
        %v691 = vld [vmem:[#allocation10 + $0xc0] sm:$0xff]
        %v692 = vld [vmem:[#allocation10 + $0xc8] sm:$0xff]
        %v693 = vld [vmem:[#allocation10 + $0xd0] sm:$0xff]
        %v694 = vld [vmem:[#allocation10 + $0xd8] sm:$0xff]
        %v695 = vld [vmem:[#allocation10 + $0xe0] sm:$0xff]
        %v696 = vld [vmem:[#allocation10 + $0xe8] sm:$0xff]
        %v697 = vld [vmem:[#allocation10 + $0xf0] sm:$0xff]
        %v698 = vld [vmem:[#allocation10 + $0xf8] sm:$0xff]
        %v699 = vld [vmem:[#allocation3] sm:$0xff]
        %v700 = vld [vmem:[#allocation3 + $0x8] sm:$0xff]
        %v701 = vld [vmem:[#allocation4] sm:$0xff]
        %v702 = vld [vmem:[#allocation4 + $0x8] sm:$0xff]
        %s703 = smul.u32 0, 4
        %s704 = smul.addr %s703, 8
        %s705 = scalar_lea.vmem [#allocation2], %s704
        %v706 = vld [vmem:[%s705] sm:$0xff]
        %v707 = vld [vmem:[%s705 + $0x8] sm:$0xff]
        %v708 = vld [vmem:[%s705 + $0x10] sm:$0xff]
        %v709 = vld [vmem:[%s705 + $0x18] sm:$0xff]
        %v710 = vld [vmem:[%s705 + $0x20] sm:$0xff]
        %v711 = vld [vmem:[%s705 + $0x28] sm:$0xff]
        %v712 = vld [vmem:[%s705 + $0x30] sm:$0xff]
        %v713 = vld [vmem:[%s705 + $0x38] sm:$0xff]
        %v714 = vpack.c.bf16 %v700, %v699
        %v747 = vunpack.c.l.b16 %v667
        %v748 = vunpack.c.h.b16 %v667
        %v749 = vunpack.c.l.b16 %v668
        %v750 = vunpack.c.h.b16 %v668
        %v751 = vunpack.c.l.b16 %v669
        %v752 = vunpack.c.h.b16 %v669
        %v753 = vunpack.c.l.b16 %v670
        %v754 = vunpack.c.h.b16 %v670
        %v755 = vunpack.c.l.b16 %v671
        %v756 = vunpack.c.h.b16 %v671
        %v757 = vunpack.c.l.b16 %v672
        %v758 = vunpack.c.h.b16 %v672
        %v759 = vunpack.c.l.b16 %v673
        %v760 = vunpack.c.h.b16 %v673
        %v761 = vunpack.c.l.b16 %v674
        %v762 = vunpack.c.h.b16 %v674
        %v763 = vunpack.c.l.b16 %v675
        %v764 = vunpack.c.h.b16 %v675
        %v765 = vunpack.c.l.b16 %v676
        %v766 = vunpack.c.h.b16 %v676
        %v767 = vunpack.c.l.b16 %v677
        %v768 = vunpack.c.h.b16 %v677
        %v769 = vunpack.c.l.b16 %v678
        %v770 = vunpack.c.h.b16 %v678
        %v771 = vunpack.c.l.b16 %v679
        %v772 = vunpack.c.h.b16 %v679
        %v773 = vunpack.c.l.b16 %v680
        %v774 = vunpack.c.h.b16 %v680
        %v775 = vunpack.c.l.b16 %v681
        %v776 = vunpack.c.h.b16 %v681
        %v777 = vunpack.c.l.b16 %v682
        %v778 = vunpack.c.h.b16 %v682
        %v779 = vunpack.c.l.b16 %v683
        %v780 = vunpack.c.h.b16 %v683
        %v781 = vunpack.c.l.b16 %v684
        %v782 = vunpack.c.h.b16 %v684
        %v783 = vunpack.c.l.b16 %v685
        %v784 = vunpack.c.h.b16 %v685
        %v785 = vunpack.c.l.b16 %v686
        %v786 = vunpack.c.h.b16 %v686
        %v787 = vunpack.c.l.b16 %v687
        %v788 = vunpack.c.h.b16 %v687
        %v789 = vunpack.c.l.b16 %v688
        %v790 = vunpack.c.h.b16 %v688
        %v791 = vunpack.c.l.b16 %v689
        %v792 = vunpack.c.h.b16 %v689
        %v793 = vunpack.c.l.b16 %v690
        %v794 = vunpack.c.h.b16 %v690
        %v795 = vunpack.c.l.b16 %v691
        %v796 = vunpack.c.h.b16 %v691
        %v797 = vunpack.c.l.b16 %v692
        %v798 = vunpack.c.h.b16 %v692
        %v799 = vunpack.c.l.b16 %v693
        %v800 = vunpack.c.h.b16 %v693
        %v801 = vunpack.c.l.b16 %v694
        %v802 = vunpack.c.h.b16 %v694
        %v803 = vunpack.c.l.b16 %v695
        %v804 = vunpack.c.h.b16 %v695
        %v805 = vunpack.c.l.b16 %v696
        %v806 = vunpack.c.h.b16 %v696
        %v807 = vunpack.c.l.b16 %v697
        %v808 = vunpack.c.h.b16 %v697
        %v809 = vunpack.c.l.b16 %v698
        %v810 = vunpack.c.h.b16 %v698
        %v811 = vpack.c.b16 %v751, %v747
        %v812 = vpack.c.b16 %v752, %v748
        %v813 = vpack.c.b16 %v753, %v749
        %v814 = vpack.c.b16 %v754, %v750
        %v815 = vpack.c.b16 %v759, %v755
        %v816 = vpack.c.b16 %v760, %v756
        %v817 = vpack.c.b16 %v761, %v757
        %v818 = vpack.c.b16 %v762, %v758
        %v819 = vpack.c.b16 %v767, %v763
        %v820 = vpack.c.b16 %v768, %v764
        %v821 = vpack.c.b16 %v769, %v765
        %v822 = vpack.c.b16 %v770, %v766
        %v823 = vpack.c.b16 %v775, %v771
        %v824 = vpack.c.b16 %v776, %v772
        %v825 = vpack.c.b16 %v777, %v773
        %v826 = vpack.c.b16 %v778, %v774
        %v827 = vpack.c.b16 %v783, %v779
        %v828 = vpack.c.b16 %v784, %v780
        %v829 = vpack.c.b16 %v785, %v781
        %v830 = vpack.c.b16 %v786, %v782
        %v831 = vpack.c.b16 %v791, %v787
        %v832 = vpack.c.b16 %v792, %v788
        %v833 = vpack.c.b16 %v793, %v789
        %v834 = vpack.c.b16 %v794, %v790
        %v835 = vpack.c.b16 %v799, %v795
        %v836 = vpack.c.b16 %v800, %v796
        %v837 = vpack.c.b16 %v801, %v797
        %v838 = vpack.c.b16 %v802, %v798
        %v839 = vpack.c.b16 %v807, %v803
        %v840 = vpack.c.b16 %v808, %v804
        %v841 = vpack.c.b16 %v809, %v805
        %v842 = vpack.c.b16 %v810, %v806
        %875 = vmatprep.subr.bf16.mxu0 %v812
        %876 = vmatpush1.bf16.msra.mxu0 %v811
        %877 = vmatprep.subr.bf16.mxu0 %v816
        %878 = vmatpush1.bf16.msra.mxu0 %v815
        %879 = vmatprep.subr.bf16.mxu0 %v820
        %880 = vmatpush1.bf16.msra.mxu0 %v819
        %881 = vmatprep.subr.bf16.mxu0 %v824
        %882 = vmatpush1.bf16.msra.mxu0 %v823
        %883 = vmatprep.subr.bf16.mxu0 %v828
        %884 = vmatpush1.bf16.msra.mxu0 %v827
        %885 = vmatprep.subr.bf16.mxu0 %v832
        %886 = vmatpush1.bf16.msra.mxu0 %v831
        %887 = vmatprep.subr.bf16.mxu0 %v836
        %888 = vmatpush1.bf16.msra.mxu0 %v835
        %889 = vmatprep.subr.bf16.mxu0 %v840
        %890 = vmatpush1.bf16.msra.mxu0 %v839
        %891 = vmatprep.subr.bf16.mxu0 0
        %892 = vmatpush1.bf16.msra.mxu0 0
        %893 = vmatprep.subr.bf16.mxu0 0
        %894 = vmatpush1.bf16.msra.mxu0 0
        %895 = vmatprep.subr.bf16.mxu0 0
        %896 = vmatpush1.bf16.msra.mxu0 0
        %897 = vmatprep.subr.bf16.mxu0 0
        %898 = vmatpush1.bf16.msra.mxu0 0
        %899 = vmatprep.subr.bf16.mxu0 0
        %900 = vmatpush1.bf16.msra.mxu0 0
        %901 = vmatprep.subr.bf16.mxu0 0
        %902 = vmatpush1.bf16.msra.mxu0 0
        %903 = vmatprep.subr.bf16.mxu0 0
        %904 = vmatpush1.bf16.msra.mxu0 0
        %905 = vmatprep.subr.bf16.mxu0 0
        %906 = vmatpush1.bf16.msra.mxu0 0
        %907 = vmatprep.mubr.bf16.mxu0 0
        %908 = vmatmul.mubr.bf16.gmra.mrb[0].mxu0 %v714
        %v909 = vpop.f32.mrb[0].mxu0
        %v910 = vadd.f32 0.0, %v909
        %v911 = vpop.f32.mrb[0].mxu0
        %v912 = vadd.f32 0.0, %v911
        %v913 = vpop.f32.mrb[0].mxu0
        %v914 = vadd.f32 0.0, %v913
        %v915 = vpop.f32.mrb[0].mxu0
        %v916 = vadd.f32 0.0, %v915
        %917 = vdwg.mxu0
        %918 = vmatprep.subr.bf16.mxu0 %v814
        %919 = vmatpush1.bf16.msra.mxu0 %v813
        %920 = vmatprep.subr.bf16.mxu0 %v818
        %921 = vmatpush1.bf16.msra.mxu0 %v817
        %922 = vmatprep.subr.bf16.mxu0 %v822
        %923 = vmatpush1.bf16.msra.mxu0 %v821
        %924 = vmatprep.subr.bf16.mxu0 %v826
        %925 = vmatpush1.bf16.msra.mxu0 %v825
        %926 = vmatprep.subr.bf16.mxu0 %v830
        %927 = vmatpush1.bf16.msra.mxu0 %v829
        %928 = vmatprep.subr.bf16.mxu0 %v834
        %929 = vmatpush1.bf16.msra.mxu0 %v833
        %930 = vmatprep.subr.bf16.mxu0 %v838
        %931 = vmatpush1.bf16.msra.mxu0 %v837
        %932 = vmatprep.subr.bf16.mxu0 %v842
        %933 = vmatpush1.bf16.msra.mxu0 %v841
        %934 = vmatprep.subr.bf16.mxu0 0
        %935 = vmatpush1.bf16.msra.mxu0 0
        %936 = vmatprep.subr.bf16.mxu0 0
        %937 = vmatpush1.bf16.msra.mxu0 0
        %938 = vmatprep.subr.bf16.mxu0 0
        %939 = vmatpush1.bf16.msra.mxu0 0
        %940 = vmatprep.subr.bf16.mxu0 0
        %941 = vmatpush1.bf16.msra.mxu0 0
        %942 = vmatprep.subr.bf16.mxu0 0
        %943 = vmatpush1.bf16.msra.mxu0 0
        %944 = vmatprep.subr.bf16.mxu0 0
        %945 = vmatpush1.bf16.msra.mxu0 0
        %946 = vmatprep.subr.bf16.mxu0 0
        %947 = vmatpush1.bf16.msra.mxu0 0
        %948 = vmatprep.subr.bf16.mxu0 0
        %949 = vmatpush1.bf16.msra.mxu0 0
        %950 = vmatprep.mubr.bf16.mxu0 0
        %951 = vmatmul.mubr.bf16.gmra.mrb[0].mxu0 %v714
        %v952 = vpop.f32.mrb[0].mxu0
        %v953 = vadd.f32 0.0, %v952
        %v954 = vpop.f32.mrb[0].mxu0
        %v955 = vadd.f32 0.0, %v954
        %v956 = vpop.f32.mrb[0].mxu0
        %v957 = vadd.f32 0.0, %v956
        %v958 = vpop.f32.mrb[0].mxu0
        %v959 = vadd.f32 0.0, %v958
        %960 = vdwg.mxu0
        %v961 = vadd.f32 %v706, %v910
        %v962 = vadd.f32 %v707, %v912
        %v963 = vadd.f32 %v708, %v953
        %v964 = vadd.f32 %v709, %v955
        %v965 = vadd.f32 %v710, %v914
        %v966 = vadd.f32 %v711, %v916
        %v967 = vadd.f32 %v712, %v957
        %v968 = vadd.f32 %v713, %v959
        %v969 = vxor.u32 %v961, 2147483648
        %v970 = vxor.u32 %v962, 2147483648
        %v971 = vxor.u32 %v963, 2147483648
        %v972 = vxor.u32 %v965, 2147483648
        %v973 = vxor.u32 %v966, 2147483648
        %v974 = vxor.u32 %v967, 2147483648
        %v975 = vmul.f32 %v969, 1.442695
        %v976 = vpow.pop %v975
        %v977 = vmul.f32 %v970, 1.442695
        %v978 = vpow.pop %v977
        %v979 = vmul.f32 %v971, 1.442695
        %v980 = vpow.pop %v979
        %v981 = vmul.f32 %v972, 1.442695
        %v982 = vpow.pop %v981
        %v983 = vmul.f32 %v973, 1.442695
        %v984 = vpow.pop %v983
        %v985 = vmul.f32 %v974, 1.442695
        %v986 = vpow.pop %v985
        %v987 = vadd.f32 %v976, 1.0
        %v988 = vadd.f32 %v978, 1.0
        %v989 = vadd.f32 %v980, 1.0
        %v990 = vadd.f32 %v982, 1.0
        %v991 = vadd.f32 %v984, 1.0
        %v992 = vadd.f32 %v986, 1.0
        %v993 = vrcp.pop %v987
        %v994 = vmul.f32 1.0, %v993
        %v995 = vrcp.pop %v988
        %v996 = vmul.f32 1.0, %v995
        %v997 = vrcp.pop %v989
        %v998 = vmul.f32 1.0, %v997
        %v999 = vrcp.pop %v990
        %v1000 = vmul.f32 1.0, %v999
        %v1001 = vrcp.pop %v991
        %v1002 = vmul.f32 1.0, %v1001
        %v1003 = vrcp.pop %v992
        %v1004 = vmul.f32 1.0, %v1003
        %v1005 = vtanh.pop %v964
        %v1006 = vtanh.pop %v968
        %v1007 = vmul.f32 %v996, %v701
        %v1008 = vmul.f32 %v1002, %v702
        %v1009 = vmul.f32 %v994, %v1005
        %v1010 = vmul.f32 %v1000, %v1006
        %v1011 = vadd.f32 %v1007, %v1009
        %v1012 = vadd.f32 %v1008, %v1010
        %v1013 = vtanh.pop %v1011
        %v1014 = vtanh.pop %v1012
        %v1015 = vmul.f32 %v998, %v1013
        %v1016 = vmul.f32 %v1004, %v1014
        %s1017 = smul.u32 2, 4
        %s1018 = smul.addr %s1017, 8
        %s1019 = scalar_lea.vmem [#allocation2], %s1018
        %v1020 = vld [vmem:[%s1019] sm:$0xff]
        %v1021 = vld [vmem:[%s1019 + $0x8] sm:$0xff]
        %v1022 = vld [vmem:[%s1019 + $0x10] sm:$0xff]
        %v1023 = vld [vmem:[%s1019 + $0x18] sm:$0xff]
        %v1024 = vld [vmem:[%s1019 + $0x20] sm:$0xff]
        %v1025 = vld [vmem:[%s1019 + $0x28] sm:$0xff]
        %v1026 = vld [vmem:[%s1019 + $0x30] sm:$0xff]
        %v1027 = vld [vmem:[%s1019 + $0x38] sm:$0xff]
        %v1028 = vpack.c.bf16 %v1016, %v1015
        %1029 = vmatprep.subr.bf16.mxu0 %v812
        %1030 = vmatpush1.bf16.msra.mxu0 %v811
        %1031 = vmatprep.subr.bf16.mxu0 %v816
        %1032 = vmatpush1.bf16.msra.mxu0 %v815
        %1033 = vmatprep.subr.bf16.mxu0 %v820
        %1034 = vmatpush1.bf16.msra.mxu0 %v819
        %1035 = vmatprep.subr.bf16.mxu0 %v824
        %1036 = vmatpush1.bf16.msra.mxu0 %v823
        %1037 = vmatprep.subr.bf16.mxu0 %v828
        %1038 = vmatpush1.bf16.msra.mxu0 %v827
        %1039 = vmatprep.subr.bf16.mxu0 %v832
        %1040 = vmatpush1.bf16.msra.mxu0 %v831
        %1041 = vmatprep.subr.bf16.mxu0 %v836
        %1042 = vmatpush1.bf16.msra.mxu0 %v835
        %1043 = vmatprep.subr.bf16.mxu0 %v840
        %1044 = vmatpush1.bf16.msra.mxu0 %v839
        %1045 = vmatprep.subr.bf16.mxu0 0
        %1046 = vmatpush1.bf16.msra.mxu0 0
        %1047 = vmatprep.subr.bf16.mxu0 0
        %1048 = vmatpush1.bf16.msra.mxu0 0
        %1049 = vmatprep.subr.bf16.mxu0 0
        %1050 = vmatpush1.bf16.msra.mxu0 0
        %1051 = vmatprep.subr.bf16.mxu0 0
        %1052 = vmatpush1.bf16.msra.mxu0 0
        %1053 = vmatprep.subr.bf16.mxu0 0
        %1054 = vmatpush1.bf16.msra.mxu0 0
        %1055 = vmatprep.subr.bf16.mxu0 0
        %1056 = vmatpush1.bf16.msra.mxu0 0
        %1057 = vmatprep.subr.bf16.mxu0 0
        %1058 = vmatpush1.bf16.msra.mxu0 0
        %1059 = vmatprep.subr.bf16.mxu0 0
        %1060 = vmatpush1.bf16.msra.mxu0 0
        %1061 = vmatprep.mubr.bf16.mxu0 0
        %1062 = vmatmul.mubr.bf16.gmra.mrb[0].mxu0 %v1028
        %v1063 = vpop.f32.mrb[0].mxu0
        %v1064 = vadd.f32 0.0, %v1063
        %v1065 = vpop.f32.mrb[0].mxu0
        %v1066 = vadd.f32 0.0, %v1065
        %v1067 = vpop.f32.mrb[0].mxu0
        %v1068 = vadd.f32 0.0, %v1067
        %v1069 = vpop.f32.mrb[0].mxu0
        %v1070 = vadd.f32 0.0, %v1069
        %1071 = vdwg.mxu0
        %1072 = vmatprep.subr.bf16.mxu0 %v814
        %1073 = vmatpush1.bf16.msra.mxu0 %v813
        %1074 = vmatprep.subr.bf16.mxu0 %v818
        %1075 = vmatpush1.bf16.msra.mxu0 %v817
        %1076 = vmatprep.subr.bf16.mxu0 %v822
        %1077 = vmatpush1.bf16.msra.mxu0 %v821
        %1078 = vmatprep.subr.bf16.mxu0 %v826
        %1079 = vmatpush1.bf16.msra.mxu0 %v825
        %1080 = vmatprep.subr.bf16.mxu0 %v830
        %1081 = vmatpush1.bf16.msra.mxu0 %v829
        %1082 = vmatprep.subr.bf16.mxu0 %v834
        %1083 = vmatpush1.bf16.msra.mxu0 %v833
        %1084 = vmatprep.subr.bf16.mxu0 %v838
        %1085 = vmatpush1.bf16.msra.mxu0 %v837
        %1086 = vmatprep.subr.bf16.mxu0 %v842
        %1087 = vmatpush1.bf16.msra.mxu0 %v841
        %1088 = vmatprep.subr.bf16.mxu0 0
        %1089 = vmatpush1.bf16.msra.mxu0 0
        %1090 = vmatprep.subr.bf16.mxu0 0
        %1091 = vmatpush1.bf16.msra.mxu0 0
        %1092 = vmatprep.subr.bf16.mxu0 0
        %1093 = vmatpush1.bf16.msra.mxu0 0
        %1094 = vmatprep.subr.bf16.mxu0 0
        %1095 = vmatpush1.bf16.msra.mxu0 0
        %1096 = vmatprep.subr.bf16.mxu0 0
        %1097 = vmatpush1.bf16.msra.mxu0 0
        %1098 = vmatprep.subr.bf16.mxu0 0
        %1099 = vmatpush1.bf16.msra.mxu0 0
        %1100 = vmatprep.subr.bf16.mxu0 0
        %1101 = vmatpush1.bf16.msra.mxu0 0
        %1102 = vmatprep.subr.bf16.mxu0 0
        %1103 = vmatpush1.bf16.msra.mxu0 0
        %1104 = vmatprep.mubr.bf16.mxu0 0
        %1105 = vmatmul.mubr.bf16.gmra.mrb[0].mxu0 %v1028
        %v1106 = vpop.f32.mrb[0].mxu0
        %v1107 = vadd.f32 0.0, %v1106
        %v1108 = vpop.f32.mrb[0].mxu0
        %v1109 = vadd.f32 0.0, %v1108
        %v1110 = vpop.f32.mrb[0].mxu0
        %v1111 = vadd.f32 0.0, %v1110
        %v1112 = vpop.f32.mrb[0].mxu0
        %v1113 = vadd.f32 0.0, %v1112
        %1114 = vdwg.mxu0
        %v1115 = vadd.f32 %v1020, %v1064
        %v1116 = vadd.f32 %v1021, %v1066
        %v1117 = vadd.f32 %v1022, %v1107
        %v1118 = vadd.f32 %v1023, %v1109
        %v1119 = vadd.f32 %v1024, %v1068
        %v1120 = vadd.f32 %v1025, %v1070
        %v1121 = vadd.f32 %v1026, %v1111
        %v1122 = vadd.f32 %v1027, %v1113
        %v1123 = vxor.u32 %v1115, 2147483648
        %v1124 = vxor.u32 %v1116, 2147483648
        %v1125 = vxor.u32 %v1117, 2147483648
        %v1126 = vxor.u32 %v1119, 2147483648
        %v1127 = vxor.u32 %v1120, 2147483648
        %v1128 = vxor.u32 %v1121, 2147483648
        %v1129 = vmul.f32 %v1123, 1.442695
        %v1130 = vpow.pop %v1129
        %v1131 = vmul.f32 %v1124, 1.442695
        %v1132 = vpow.pop %v1131
        %v1133 = vmul.f32 %v1125, 1.442695
        %v1134 = vpow.pop %v1133
        %v1135 = vmul.f32 %v1126, 1.442695
        %v1136 = vpow.pop %v1135
        %v1137 = vmul.f32 %v1127, 1.442695
        %v1138 = vpow.pop %v1137
        %v1139 = vmul.f32 %v1128, 1.442695
        %v1140 = vpow.pop %v1139
        %v1141 = vadd.f32 %v1130, 1.0
        %v1142 = vadd.f32 %v1132, 1.0
        %v1143 = vadd.f32 %v1134, 1.0
        %v1144 = vadd.f32 %v1136, 1.0
        %v1145 = vadd.f32 %v1138, 1.0
        %v1146 = vadd.f32 %v1140, 1.0
        %v1147 = vrcp.pop %v1141
        %v1148 = vmul.f32 1.0, %v1147
        %v1149 = vrcp.pop %v1142
        %v1150 = vmul.f32 1.0, %v1149
        %v1151 = vrcp.pop %v1143
        %v1152 = vmul.f32 1.0, %v1151
        %v1153 = vrcp.pop %v1144
        %v1154 = vmul.f32 1.0, %v1153
        %v1155 = vrcp.pop %v1145
        %v1156 = vmul.f32 1.0, %v1155
        %v1157 = vrcp.pop %v1146
        %v1158 = vmul.f32 1.0, %v1157
        %v1159 = vtanh.pop %v1118
        %v1160 = vtanh.pop %v1122
        %v1161 = vmul.f32 %v1150, %v1011
        %v1162 = vmul.f32 %v1156, %v1012
        %v1163 = vmul.f32 %v1148, %v1159
        %v1164 = vmul.f32 %v1154, %v1160
        %v1165 = vadd.f32 %v1161, %v1163
        %v1166 = vadd.f32 %v1162, %v1164
        %v1167 = vtanh.pop %v1165
        %v1168 = vtanh.pop %v1166
        %v1169 = vmul.f32 %v1152, %v1167
        %v1170 = vmul.f32 %v1158, %v1168
        %s1171 = smul.u32 4, 4
        %s1172 = smul.addr %s1171, 8
        %s1173 = scalar_lea.vmem [#allocation2], %s1172
        %v1174 = vld [vmem:[%s1173] sm:$0xff]
        %v1175 = vld [vmem:[%s1173 + $0x8] sm:$0xff]
        %v1176 = vld [vmem:[%s1173 + $0x10] sm:$0xff]
        %v1177 = vld [vmem:[%s1173 + $0x18] sm:$0xff]
        %v1178 = vld [vmem:[%s1173 + $0x20] sm:$0xff]
        %v1179 = vld [vmem:[%s1173 + $0x28] sm:$0xff]
        %v1180 = vld [vmem:[%s1173 + $0x30] sm:$0xff]
        %v1181 = vld [vmem:[%s1173 + $0x38] sm:$0xff]
        %v1182 = vpack.c.bf16 %v1170, %v1169
        %1183 = vmatprep.subr.bf16.mxu0 %v812
        %1184 = vmatpush1.bf16.msra.mxu0 %v811
        %1185 = vmatprep.subr.bf16.mxu0 %v816
        %1186 = vmatpush1.bf16.msra.mxu0 %v815
        %1187 = vmatprep.subr.bf16.mxu0 %v820
        %1188 = vmatpush1.bf16.msra.mxu0 %v819
        %1189 = vmatprep.subr.bf16.mxu0 %v824
        %1190 = vmatpush1.bf16.msra.mxu0 %v823
        %1191 = vmatprep.subr.bf16.mxu0 %v828
        %1192 = vmatpush1.bf16.msra.mxu0 %v827
        %1193 = vmatprep.subr.bf16.mxu0 %v832
        %1194 = vmatpush1.bf16.msra.mxu0 %v831
        %1195 = vmatprep.subr.bf16.mxu0 %v836
        %1196 = vmatpush1.bf16.msra.mxu0 %v835
        %1197 = vmatprep.subr.bf16.mxu0 %v840
        %1198 = vmatpush1.bf16.msra.mxu0 %v839
        %1199 = vmatprep.subr.bf16.mxu0 0
        %1200 = vmatpush1.bf16.msra.mxu0 0
        %1201 = vmatprep.subr.bf16.mxu0 0
        %1202 = vmatpush1.bf16.msra.mxu0 0
        %1203 = vmatprep.subr.bf16.mxu0 0
        %1204 = vmatpush1.bf16.msra.mxu0 0
        %1205 = vmatprep.subr.bf16.mxu0 0
        %1206 = vmatpush1.bf16.msra.mxu0 0
        %1207 = vmatprep.subr.bf16.mxu0 0
        %1208 = vmatpush1.bf16.msra.mxu0 0
        %1209 = vmatprep.subr.bf16.mxu0 0
        %1210 = vmatpush1.bf16.msra.mxu0 0
        %1211 = vmatprep.subr.bf16.mxu0 0
        %1212 = vmatpush1.bf16.msra.mxu0 0
        %1213 = vmatprep.subr.bf16.mxu0 0
        %1214 = vmatpush1.bf16.msra.mxu0 0
        %1215 = vmatprep.mubr.bf16.mxu0 0
        %1216 = vmatmul.mubr.bf16.gmra.mrb[0].mxu0 %v1182
        %v1217 = vpop.f32.mrb[0].mxu0
        %v1218 = vadd.f32 0.0, %v1217
        %v1219 = vpop.f32.mrb[0].mxu0
        %v1220 = vadd.f32 0.0, %v1219
        %v1221 = vpop.f32.mrb[0].mxu0
        %v1222 = vadd.f32 0.0, %v1221
        %v1223 = vpop.f32.mrb[0].mxu0
        %v1224 = vadd.f32 0.0, %v1223
        %1225 = vdwg.mxu0
        %1226 = vmatprep.subr.bf16.mxu0 %v814
        %1227 = vmatpush1.bf16.msra.mxu0 %v813
        %1228 = vmatprep.subr.bf16.mxu0 %v818
        %1229 = vmatpush1.bf16.msra.mxu0 %v817
        %1230 = vmatprep.subr.bf16.mxu0 %v822
        %1231 = vmatpush1.bf16.msra.mxu0 %v821
        %1232 = vmatprep.subr.bf16.mxu0 %v826
        %1233 = vmatpush1.bf16.msra.mxu0 %v825
        %1234 = vmatprep.subr.bf16.mxu0 %v830
        %1235 = vmatpush1.bf16.msra.mxu0 %v829
        %1236 = vmatprep.subr.bf16.mxu0 %v834
        %1237 = vmatpush1.bf16.msra.mxu0 %v833
        %1238 = vmatprep.subr.bf16.mxu0 %v838
        %1239 = vmatpush1.bf16.msra.mxu0 %v837
        %1240 = vmatprep.subr.bf16.mxu0 %v842
        %1241 = vmatpush1.bf16.msra.mxu0 %v841
        %1242 = vmatprep.subr.bf16.mxu0 0
        %1243 = vmatpush1.bf16.msra.mxu0 0
        %1244 = vmatprep.subr.bf16.mxu0 0
        %1245 = vmatpush1.bf16.msra.mxu0 0
        %1246 = vmatprep.subr.bf16.mxu0 0
        %1247 = vmatpush1.bf16.msra.mxu0 0
        %1248 = vmatprep.subr.bf16.mxu0 0
        %1249 = vmatpush1.bf16.msra.mxu0 0
        %1250 = vmatprep.subr.bf16.mxu0 0
        %1251 = vmatpush1.bf16.msra.mxu0 0
        %1252 = vmatprep.subr.bf16.mxu0 0
        %1253 = vmatpush1.bf16.msra.mxu0 0
        %1254 = vmatprep.subr.bf16.mxu0 0
        %1255 = vmatpush1.bf16.msra.mxu0 0
        %1256 = vmatprep.subr.bf16.mxu0 0
        %1257 = vmatpush1.bf16.msra.mxu0 0
        %1258 = vmatprep.mubr.bf16.mxu0 0
        %1259 = vmatmul.mubr.bf16.gmra.mrb[0].mxu0 %v1182
        %v1260 = vpop.f32.mrb[0].mxu0
        %v1261 = vadd.f32 0.0, %v1260
        %v1262 = vpop.f32.mrb[0].mxu0
        %v1263 = vadd.f32 0.0, %v1262
        %v1264 = vpop.f32.mrb[0].mxu0
        %v1265 = vadd.f32 0.0, %v1264
        %v1266 = vpop.f32.mrb[0].mxu0
        %v1267 = vadd.f32 0.0, %v1266
        %1268 = vdwg.mxu0
        %v1269 = vadd.f32 %v1174, %v1218
        %v1270 = vadd.f32 %v1175, %v1220
        %v1271 = vadd.f32 %v1176, %v1261
        %v1272 = vadd.f32 %v1177, %v1263
        %v1273 = vadd.f32 %v1178, %v1222
        %v1274 = vadd.f32 %v1179, %v1224
        %v1275 = vadd.f32 %v1180, %v1265
        %v1276 = vadd.f32 %v1181, %v1267
        %v1277 = vxor.u32 %v1269, 2147483648
        %v1278 = vxor.u32 %v1270, 2147483648
        %v1279 = vxor.u32 %v1271, 2147483648
        %v1280 = vxor.u32 %v1273, 2147483648
        %v1281 = vxor.u32 %v1274, 2147483648
        %v1282 = vxor.u32 %v1275, 2147483648
        %v1283 = vmul.f32 %v1277, 1.442695
        %v1284 = vpow.pop %v1283
        %v1285 = vmul.f32 %v1278, 1.442695
        %v1286 = vpow.pop %v1285
        %v1287 = vmul.f32 %v1279, 1.442695
        %v1288 = vpow.pop %v1287
        %v1289 = vmul.f32 %v1280, 1.442695
        %v1290 = vpow.pop %v1289
        %v1291 = vmul.f32 %v1281, 1.442695
        %v1292 = vpow.pop %v1291
        %v1293 = vmul.f32 %v1282, 1.442695
        %v1294 = vpow.pop %v1293
        %v1295 = vadd.f32 %v1284, 1.0
        %v1296 = vadd.f32 %v1286, 1.0
        %v1297 = vadd.f32 %v1288, 1.0
        %v1298 = vadd.f32 %v1290, 1.0
        %v1299 = vadd.f32 %v1292, 1.0
        %v1300 = vadd.f32 %v1294, 1.0
        %v1301 = vrcp.pop %v1295
        %v1302 = vmul.f32 1.0, %v1301
        %v1303 = vrcp.pop %v1296
        %v1304 = vmul.f32 1.0, %v1303
        %v1305 = vrcp.pop %v1297
        %v1306 = vmul.f32 1.0, %v1305
        %v1307 = vrcp.pop %v1298
        %v1308 = vmul.f32 1.0, %v1307
        %v1309 = vrcp.pop %v1299
        %v1310 = vmul.f32 1.0, %v1309
        %v1311 = vrcp.pop %v1300
        %v1312 = vmul.f32 1.0, %v1311
        %v1313 = vtanh.pop %v1272
        %v1314 = vtanh.pop %v1276
        %v1315 = vmul.f32 %v1304, %v1165
        %v1316 = vmul.f32 %v1310, %v1166
        %v1317 = vmul.f32 %v1302, %v1313
        %v1318 = vmul.f32 %v1308, %v1314
        %v1319 = vadd.f32 %v1315, %v1317
        %v1320 = vadd.f32 %v1316, %v1318
        %v1321 = vtanh.pop %v1319
        %v1322 = vtanh.pop %v1320
        %v1323 = vmul.f32 %v1306, %v1321
        %v1324 = vmul.f32 %v1312, %v1322
        %s1325 = smul.u32 6, 4
        %s1326 = smul.addr %s1325, 8
        %s1327 = scalar_lea.vmem [#allocation2], %s1326
        %v1328 = vld [vmem:[%s1327] sm:$0xff]
        %v1329 = vld [vmem:[%s1327 + $0x8] sm:$0xff]
        %v1330 = vld [vmem:[%s1327 + $0x10] sm:$0xff]
        %v1331 = vld [vmem:[%s1327 + $0x18] sm:$0xff]
        %v1332 = vld [vmem:[%s1327 + $0x20] sm:$0xff]
        %v1333 = vld [vmem:[%s1327 + $0x28] sm:$0xff]
        %v1334 = vld [vmem:[%s1327 + $0x30] sm:$0xff]
        %v1335 = vld [vmem:[%s1327 + $0x38] sm:$0xff]
        %v1336 = vpack.c.bf16 %v1324, %v1323
        %1337 = vmatprep.subr.bf16.mxu0 %v812
        %1338 = vmatpush1.bf16.msra.mxu0 %v811
        %1339 = vmatprep.subr.bf16.mxu0 %v816
        %1340 = vmatpush1.bf16.msra.mxu0 %v815
        %1341 = vmatprep.subr.bf16.mxu0 %v820
        %1342 = vmatpush1.bf16.msra.mxu0 %v819
        %1343 = vmatprep.subr.bf16.mxu0 %v824
        %1344 = vmatpush1.bf16.msra.mxu0 %v823
        %1345 = vmatprep.subr.bf16.mxu0 %v828
        %1346 = vmatpush1.bf16.msra.mxu0 %v827
        %1347 = vmatprep.subr.bf16.mxu0 %v832
        %1348 = vmatpush1.bf16.msra.mxu0 %v831
        %1349 = vmatprep.subr.bf16.mxu0 %v836
        %1350 = vmatpush1.bf16.msra.mxu0 %v835
        %1351 = vmatprep.subr.bf16.mxu0 %v840
        %1352 = vmatpush1.bf16.msra.mxu0 %v839
        %1353 = vmatprep.subr.bf16.mxu0 0
        %1354 = vmatpush1.bf16.msra.mxu0 0
        %1355 = vmatprep.subr.bf16.mxu0 0
        %1356 = vmatpush1.bf16.msra.mxu0 0
        %1357 = vmatprep.subr.bf16.mxu0 0
        %1358 = vmatpush1.bf16.msra.mxu0 0
        %1359 = vmatprep.subr.bf16.mxu0 0
        %1360 = vmatpush1.bf16.msra.mxu0 0
        %1361 = vmatprep.subr.bf16.mxu0 0
        %1362 = vmatpush1.bf16.msra.mxu0 0
        %1363 = vmatprep.subr.bf16.mxu0 0
        %1364 = vmatpush1.bf16.msra.mxu0 0
        %1365 = vmatprep.subr.bf16.mxu0 0
        %1366 = vmatpush1.bf16.msra.mxu0 0
        %1367 = vmatprep.subr.bf16.mxu0 0
        %1368 = vmatpush1.bf16.msra.mxu0 0
        %1369 = vmatprep.mubr.bf16.mxu0 0
        %1370 = vmatmul.mubr.bf16.gmra.mrb[0].mxu0 %v1336
        %v1371 = vpop.f32.mrb[0].mxu0
        %v1372 = vadd.f32 0.0, %v1371
        %v1373 = vpop.f32.mrb[0].mxu0
        %v1374 = vadd.f32 0.0, %v1373
        %v1375 = vpop.f32.mrb[0].mxu0
        %v1376 = vadd.f32 0.0, %v1375
        %v1377 = vpop.f32.mrb[0].mxu0
        %v1378 = vadd.f32 0.0, %v1377
        %1379 = vdwg.mxu0
        %1380 = vmatprep.subr.bf16.mxu0 %v814
        %1381 = vmatpush1.bf16.msra.mxu0 %v813
        %1382 = vmatprep.subr.bf16.mxu0 %v818
        %1383 = vmatpush1.bf16.msra.mxu0 %v817
        %1384 = vmatprep.subr.bf16.mxu0 %v822
        %1385 = vmatpush1.bf16.msra.mxu0 %v821
        %1386 = vmatprep.subr.bf16.mxu0 %v826
        %1387 = vmatpush1.bf16.msra.mxu0 %v825
        %1388 = vmatprep.subr.bf16.mxu0 %v830
        %1389 = vmatpush1.bf16.msra.mxu0 %v829
        %1390 = vmatprep.subr.bf16.mxu0 %v834
        %1391 = vmatpush1.bf16.msra.mxu0 %v833
        %1392 = vmatprep.subr.bf16.mxu0 %v838
        %1393 = vmatpush1.bf16.msra.mxu0 %v837
        %1394 = vmatprep.subr.bf16.mxu0 %v842
        %1395 = vmatpush1.bf16.msra.mxu0 %v841
        %1396 = vmatprep.subr.bf16.mxu0 0
        %1397 = vmatpush1.bf16.msra.mxu0 0
        %1398 = vmatprep.subr.bf16.mxu0 0
        %1399 = vmatpush1.bf16.msra.mxu0 0
        %1400 = vmatprep.subr.bf16.mxu0 0
        %1401 = vmatpush1.bf16.msra.mxu0 0
        %1402 = vmatprep.subr.bf16.mxu0 0
        %1403 = vmatpush1.bf16.msra.mxu0 0
        %1404 = vmatprep.subr.bf16.mxu0 0
        %1405 = vmatpush1.bf16.msra.mxu0 0
        %1406 = vmatprep.subr.bf16.mxu0 0
        %1407 = vmatpush1.bf16.msra.mxu0 0
        %1408 = vmatprep.subr.bf16.mxu0 0
        %1409 = vmatpush1.bf16.msra.mxu0 0
        %1410 = vmatprep.subr.bf16.mxu0 0
        %1411 = vmatpush1.bf16.msra.mxu0 0
        %1412 = vmatprep.mubr.bf16.mxu0 0
        %1413 = vmatmul.mubr.bf16.gmra.mrb[0].mxu0 %v1336
        %v1414 = vpop.f32.mrb[0].mxu0
        %v1415 = vadd.f32 0.0, %v1414
        %v1416 = vpop.f32.mrb[0].mxu0
        %v1417 = vadd.f32 0.0, %v1416
        %v1418 = vpop.f32.mrb[0].mxu0
        %v1419 = vadd.f32 0.0, %v1418
        %v1420 = vpop.f32.mrb[0].mxu0
        %v1421 = vadd.f32 0.0, %v1420
        %1422 = vdwg.mxu0
        %v1423 = vadd.f32 %v1328, %v1372
        %v1424 = vadd.f32 %v1329, %v1374
        %v1425 = vadd.f32 %v1330, %v1415
        %v1426 = vadd.f32 %v1331, %v1417
        %v1427 = vadd.f32 %v1332, %v1376
        %v1428 = vadd.f32 %v1333, %v1378
        %v1429 = vadd.f32 %v1334, %v1419
        %v1430 = vadd.f32 %v1335, %v1421
        %v1431 = vxor.u32 %v1423, 2147483648
        %v1432 = vxor.u32 %v1424, 2147483648
        %v1433 = vxor.u32 %v1425, 2147483648
        %v1434 = vxor.u32 %v1427, 2147483648
        %v1435 = vxor.u32 %v1428, 2147483648
        %v1436 = vxor.u32 %v1429, 2147483648
        %v1437 = vmul.f32 %v1431, 1.442695
        %v1438 = vpow.pop %v1437
        %v1439 = vmul.f32 %v1432, 1.442695
        %v1440 = vpow.pop %v1439
        %v1441 = vmul.f32 %v1433, 1.442695
        %v1442 = vpow.pop %v1441
        %v1443 = vmul.f32 %v1434, 1.442695
        %v1444 = vpow.pop %v1443
        %v1445 = vmul.f32 %v1435, 1.442695
        %v1446 = vpow.pop %v1445
        %v1447 = vmul.f32 %v1436, 1.442695
        %v1448 = vpow.pop %v1447
        %v1449 = vadd.f32 %v1438, 1.0
        %v1450 = vadd.f32 %v1440, 1.0
        %v1451 = vadd.f32 %v1442, 1.0
        %v1452 = vadd.f32 %v1444, 1.0
        %v1453 = vadd.f32 %v1446, 1.0
        %v1454 = vadd.f32 %v1448, 1.0
        %v1455 = vrcp.pop %v1449
        %v1456 = vmul.f32 1.0, %v1455
        %v1457 = vrcp.pop %v1450
        %v1458 = vmul.f32 1.0, %v1457
        %v1459 = vrcp.pop %v1451
        %v1460 = vmul.f32 1.0, %v1459
        %v1461 = vrcp.pop %v1452
        %v1462 = vmul.f32 1.0, %v1461
        %v1463 = vrcp.pop %v1453
        %v1464 = vmul.f32 1.0, %v1463
        %v1465 = vrcp.pop %v1454
        %v1466 = vmul.f32 1.0, %v1465
        %v1467 = vtanh.pop %v1426
        %v1468 = vtanh.pop %v1430
        %v1469 = vmul.f32 %v1458, %v1319
        %v1470 = vmul.f32 %v1464, %v1320
        %v1471 = vmul.f32 %v1456, %v1467
        %v1472 = vmul.f32 %v1462, %v1468
        %v1473 = vadd.f32 %v1469, %v1471
        %v1474 = vadd.f32 %v1470, %v1472
        %v1475 = vtanh.pop %v1473
        %v1476 = vtanh.pop %v1474
        %v1477 = vmul.f32 %v1460, %v1475
        %v1478 = vmul.f32 %v1466, %v1476
        %1479 = vst [vmem:[#allocation3] sm:$0xff] %v1477
        %1480 = vst [vmem:[#allocation3 + $0x8] sm:$0xff] %v1478
        %1481 = vst [vmem:[#allocation4] sm:$0xff] %v1473
        %1482 = vst [vmem:[#allocation4 + $0x8] sm:$0xff] %v1474
        %p1483 = scmp.eq.s32.totalorder %s20, 1
        // Predicated region
        $region53: #{tpu_custom_call.1} parent=35 // pred_check
          %p1484 = pneg %p1483
        $region54: #{tpu_custom_call.1} parent=35 // pred_check_branch
          %1486 = sbr.rel (%p1484) target = $region56
        $region55: #{tpu_custom_call.1} parent=35 // pred_region
          %1487 = vst [vmem:[#allocation11] sm:$0xff] %v1477
          %1488 = vst [vmem:[#allocation11 + $0x8] sm:$0xff] %v1478
        $region56: #{tpu_custom_call.1} parent=35 // pred_fallthru
          _
        // Predicated region
        $region57: #{tpu_custom_call.1} parent=35 // pred_check
          %p1489 = pneg %p122
        $region58: #{tpu_custom_call.1} parent=35 // pred_check_branch
          %1491 = sbr.rel (%p1489) target = $region60
        $region59: #{tpu_custom_call.1} parent=35 // pred_region
          %s1493 = ssub.s32 256, 256
          %1494 = vsyncadd [#allocation7], %s1493
          %s1495 = sshll.u32 [#allocation11], 4
          %s1496 = int_to_ptr.vmem [resolvable:$true] %s1495
          %1501 = dma.vmem_to_hbm [thread:$0]  %s1496, 256, %s4, [#allocation7], 128, 128, 8
        $region60: #{tpu_custom_call.1} parent=35 // pred_fallthru
          _
        // Predicated region
        $region61: #{tpu_custom_call.1} parent=35 // pred_check
          %p1502 = pneg %p122
        $region62: #{tpu_custom_call.1} parent=35 // pred_check_branch
          %1504 = sbr.rel (%p1502) target = $region64
        $region63: #{tpu_custom_call.1} parent=35 // pred_region
          %1505 = dma.done [#allocation7], 256
        $region64: #{tpu_custom_call.1} parent=35 // pred_fallthru
          _
      $region36: #{tpu_custom_call.1} parent=5 // pred_fallthru
        _
      %p1506 = scmp.le.s32.totalorder 2, %s15
      // Predicated region
      $region65: #{tpu_custom_call.1} parent=5 // pred_check
        %p1507 = pneg %p1506
      $region66: #{tpu_custom_call.1} parent=5 // pred_check_branch
        %1509 = sbr.rel (%p1507) target = $region68
      $region67: #{tpu_custom_call.1} parent=5 // pred_region
        %s1510 = ssub.s32 %s15, 2
      $region68: #{tpu_custom_call.1} parent=5 // pred_fallthru
        _
    $region6: #{tpu_custom_call.1} parent=1 // loop_footer
      %s19 = sadd.s32 1, %s15
    $region7: #{tpu_custom_call.1} parent=1 // loop_footer_branch
      %14 = sbr.rel target = $region3
    $region8: #{tpu_custom_call.1} parent=1 // loop_exit
      _
    %1511 = vsyncpa [#allocation6], 1
    %s1512 = scalar_lea.sflag [#allocation6], 1
    %1513 = vsyncpa %s1512, 1
    %1514 = vsyncpa [#allocation9], 1
    %1515 = vsyncpa [#allocation7], 1
    %s1516 = scalar_lea.sflag [#allocation7], 1
    %1517 = vsyncpa %s1516, 1

</llo_original>
